<compile_context>
chip_gen: v7x
topology: tpu7x:2x2x1
jax: 0.10.0
libtpu: 0.0.40
codegen_flags: <defaults>
</compile_context>

<pallas_src>
import functools

import jax
import jax.numpy as jnp
from jax.experimental import pallas as pl
from jax.experimental.pallas import tpu as pltpu


def _round_up(x, m):
    return (x + m - 1) // m * m


# ---------------------------------------------------------------------------
# Fused kernel: per-view backbone -> view aggregation -> LayerNorm -> FC tile
# ---------------------------------------------------------------------------
def _fused_kernel(x_ref, wexp_ref, g_ref, bta_ref, wfc_ref, bfc_ref,
                  preds_ref, pooled_ref, *, eps, agr_type, n_views):
    # x_ref:    (B, M, C*HW) f32   resident (constant index_map)
    # wexp_ref: (C*HW, F)    f32   resident expanded backbone weight (GAP folded in)
    # g_ref/bta_ref: (1, F)  f32   LayerNorm params, resident
    # wfc_ref:  (F, tile_n)  bf16  streamed per grid step (class tile)
    # bfc_ref:  (1, tile_n)  f32   streamed per grid step
    # preds_ref:(B, tile_n)  f32   lane-dense output tile
    # pooled_ref:(1, B, F)   f32   pooled features, replicated per grid step (wrapper takes [0])
    wexp = wexp_ref[...]

    # --- synthetic per-view backbone + view aggregation (max / mean over M views) ---
    pooled = None
    for m in range(n_views):                       # M is tiny (3) -> static unroll
        xm = x_ref[:, m, :]                        # (B, C*HW)
        fm = jnp.dot(xm, wexp, preferred_element_type=jnp.float32)   # (B, F), GAP folded in
        if pooled is None:
            pooled = fm
        elif agr_type == "max":
            pooled = jnp.maximum(pooled, fm)
        else:                                      # mean
            pooled = pooled + fm
    if agr_type == "mean":
        pooled = pooled * (1.0 / n_views)

    pooled_ref[0] = pooled                         # identical value each grid step

    # --- LayerNorm(feat_dim) ---
    mu = jnp.mean(pooled, axis=-1, keepdims=True)
    var = jnp.mean(jnp.square(pooled - mu), axis=-1, keepdims=True)
    h = (pooled - mu) * jax.lax.rsqrt(var + eps) * g_ref[...] + bta_ref[...]

    # --- Linear(feat_dim, num_classes) tile: bf16 operands, f32 accumulate ---
    acc = jnp.dot(h.astype(wfc_ref.dtype), wfc_ref[...],
                  preferred_element_type=jnp.float32)
    preds_ref[...] = (acc + bfc_ref[...]).astype(preds_ref.dtype)


def _fused_forward(x, prep, agr_type, *, eps=1e-5):
    """x: (B, M, C*HW) f32 -> (preds_padded (B, N_pad) f32, pooled_rep (n_tiles, B, F) f32)."""
    B, M, CHW = x.shape
    F = prep["w_exp"].shape[1]
    N_pad = prep["w_fc"].shape[1]
    tile_n = min(512, N_pad)
    n_tiles = N_pad // tile_n

    kernel = functools.partial(_fused_kernel, eps=eps, agr_type=agr_type, n_views=M)
    preds, pooled_rep = pl.pallas_call(
        kernel,
        out_shape=(jax.ShapeDtypeStruct((B, N_pad), jnp.float32),
                   jax.ShapeDtypeStruct((n_tiles, B, F), jnp.float32)),
        grid_spec=pltpu.PrefetchScalarGridSpec(
            num_scalar_prefetch=0,
            grid=(n_tiles,),
            in_specs=[
                pl.BlockSpec((B, M, CHW), lambda j: (0, 0, 0)),   # input, resident
                pl.BlockSpec((CHW, F), lambda j: (0, 0)),          # expanded backbone weight
                pl.BlockSpec((1, F), lambda j: (0, 0)),            # LN gamma
                pl.BlockSpec((1, F), lambda j: (0, 0)),            # LN beta
                pl.BlockSpec((F, tile_n), lambda j: (0, j)),       # FC weight tile (bf16 stream)
                pl.BlockSpec((1, tile_n), lambda j: (0, j)),       # FC bias tile
            ],
            out_specs=[
                pl.BlockSpec((B, tile_n), lambda j: (0, j)),       # predictions tile (lane-dense)
                pl.BlockSpec((1, B, F), lambda j: (j, 0, 0)),      # pooled, replicated per tile
            ],
        ),
        compiler_params=pltpu.CompilerParams(
            dimension_semantics=("parallel",)),                    # 2 steps -> both v7x TCs busy
    )(x, prep["w_exp"], prep["gamma"], prep["beta"], prep["w_fc"], prep["b_fc"])
    return preds, pooled_rep


# ---------------------------------------------------------------------------
# One-time parameter preparation (padding / expansion / casts done once, not per forward)
# ---------------------------------------------------------------------------
def prepare_params(params, hw, num_classes):
    C, F = params["w_backbone"].shape
    N_pad = _round_up(num_classes, 512)            # always 512-wide lane-dense tiles
    # Fold the spatial mean into the projection: w_exp[c*hw + i, f] = w_backbone[c, f] / hw
    w_exp = (jnp.repeat(params["w_backbone"].astype(jnp.float32), hw, axis=0)
             * jnp.float32(1.0 / hw))                              # (C*hw, F) f32
    w_fc = jnp.pad(params["w_fc"], ((0, 0), (0, N_pad - num_classes))).astype(jnp.bfloat16)
    b_fc = jnp.pad(params["b_fc"], (0, N_pad - num_classes)).reshape(1, N_pad).astype(jnp.float32)
    return {
        "w_exp": w_exp,
        "gamma": params["ln_gamma"].reshape(1, F).astype(jnp.float32),
        "beta": params["ln_beta"].reshape(1, F).astype(jnp.float32),
        "w_fc": w_fc,
        "b_fc": b_fc,
    }


# ---------------------------------------------------------------------------
# ResNet.forward
# ---------------------------------------------------------------------------
def resnet_forward(mvimages, prep, num_classes, agr_type="max"):
    """Returns (predictions, pooled_view), matching ResNet.forward."""
    B, M, C, H, W = mvimages.shape
    # batch_tensor(mvimages, dim=1, squeeze=True) equivalent: pure reshape, no transpose.
    x = mvimages.reshape(B, M, C * H * W).astype(jnp.float32)
    preds_pad, pooled_rep = _fused_forward(x, prep, agr_type)
    pooled = pooled_rep[0]
    predictions = preds_pad[:, :num_classes]       # drop padded class columns (tiny slice)
    if agr_type == "mean":
        # ViewAvgAgregate returns pooled_view.squeeze() (rank drops when B == 1, as in PyTorch).
        pooled_view = jnp.squeeze(pooled)
    elif agr_type == "max":
        pooled_view = pooled
    else:
        raise ValueError(f"unknown agr_type {agr_type!r}")
    return predictions, pooled_view


# ---------------------------------------------------------------------------
# Plain-JAX reference
# ---------------------------------------------------------------------------
def _reference(mvimages, params, agr_type, eps=1e-5):
    B, M, C, H, W = mvimages.shape
    x = mvimages.reshape(B * M, C, H * W)
    feats = jnp.dot(jnp.mean(x, axis=-1), params["w_backbone"],
                    precision=jax.lax.Precision.HIGHEST).reshape(B, M, -1)
    pooled = jnp.max(feats, axis=1) if agr_type == "max" else jnp.mean(feats, axis=1)
    mu = jnp.mean(pooled, axis=-1, keepdims=True)
    var = jnp.mean(jnp.square(pooled - mu), axis=-1, keepdims=True)
    h = (pooled - mu) / jnp.sqrt(var + eps) * params["ln_gamma"] + params["ln_beta"]
    preds = jnp.dot(h, params["w_fc"], precision=jax.lax.Precision.HIGHEST) + params["b_fc"]
    return preds, pooled


if __name__ == "__main__":
    key = jax.random.PRNGKey(0)
    ks = jax.random.split(key, 6)

    B, M, C, H, W = 2, 3, 4, 16, 16
    feat_dim, num_classes = 512, 1000              # module defaults

    mvimages = jax.random.normal(ks[0], (B, M, C, H, W), dtype=jnp.float32)
    params = {
        "w_backbone": jax.random.normal(ks[1], (C, feat_dim), jnp.float32) * 0.5,
        "ln_gamma": 1.0 + 0.1 * jax.random.normal(ks[2], (feat_dim,), jnp.float32),
        "ln_beta": 0.1 * jax.random.normal(ks[3], (feat_dim,), jnp.float32),
        "w_fc": jax.random.normal(ks[4], (feat_dim, num_classes), jnp.float32) * 0.05,
        "b_fc": 0.1 * jax.random.normal(ks[5], (num_classes,), jnp.float32),
    }

    prep = prepare_params(params, H * W, num_classes)   # padding/expansion/bf16 cast done once

    for agr in ("max", "mean"):
        fwd = jax.jit(functools.partial(resnet_forward, prep=prep,
                                        num_classes=num_classes, agr_type=agr))
        preds, pooled = fwd(mvimages)
        preds, pooled = jax.block_until_ready((preds, pooled))
        preds_ref, pooled_ref = _reference(mvimages, params, agr)
        assert preds.shape == (B, num_classes)
        assert pooled.shape == (B, feat_dim)
        assert jnp.allclose(pooled, pooled_ref, atol=1e-3, rtol=1e-3), f"pooled mismatch ({agr})"
        assert jnp.allclose(preds, preds_ref, atol=1e-2, rtol=1e-2), f"preds mismatch ({agr})"

    print("KERNEL_OK")
</pallas_src>

<mosaic_0001>
module attributes {stable_mosaic.version = 11 : i64} {
  func.func @_fused_kernel(%arg0: i32, %arg1: memref<2x3x1024xf32, #tpu.memory_space<vmem>>, %arg2: memref<1024x512xf32, #tpu.memory_space<vmem>>, %arg3: memref<1x512xf32, #tpu.memory_space<vmem>>, %arg4: memref<1x512xf32, #tpu.memory_space<vmem>>, %arg5: memref<512x512xbf16, #tpu.memory_space<vmem>>, %arg6: memref<1x512xf32, #tpu.memory_space<vmem>>, %arg7: memref<2x512xf32, #tpu.memory_space<vmem>>, %arg8: memref<1x2x512xf32, #tpu.memory_space<vmem>>) attributes {dimension_semantics = [#tpu.dimension_semantics<parallel>], iteration_bounds = array<i64: 2>, scalar_prefetch = 0 : i64, scratch_operands = 0 : i64, tpu.core_type = #tpu.core_type<tc>, window_params = [{pipeline_mode = #tpu.pipeline_mode<synchronous>, transform_indices = @transform_0, window_bounds = array<i64: 2, 3, 1024>}, {pipeline_mode = #tpu.pipeline_mode<synchronous>, transform_indices = @transform_1, window_bounds = array<i64: 1024, 512>}, {pipeline_mode = #tpu.pipeline_mode<synchronous>, transform_indices = @transform_2, window_bounds = array<i64: 1, 512>}, {pipeline_mode = #tpu.pipeline_mode<synchronous>, transform_indices = @transform_3, window_bounds = array<i64: 1, 512>}, {transform_indices = @transform_4, window_bounds = array<i64: 512, 512>}, {transform_indices = @transform_5, window_bounds = array<i64: 1, 512>}, {transform_indices = @transform_6, window_bounds = array<i64: 2, 512>}, {transform_indices = @transform_7, window_bounds = array<i64: 1, 2, 512>}]} {
    %c0 = arith.constant 0 : index
    %c0_0 = arith.constant 0 : index
    %0 = vector.load %arg2[%c0, %c0_0] : memref<1024x512xf32, #tpu.memory_space<vmem>>, vector<1024x512xf32>
    %c0_1 = arith.constant 0 : index
    %c0_2 = arith.constant 0 : index
    %c0_3 = arith.constant 0 : index
    %1 = vector.load %arg1[%c0_1, %c0_2, %c0_3] : memref<2x3x1024xf32, #tpu.memory_space<vmem>>, vector<2x1x1024xf32>
    %2 = vector.shape_cast %1 : vector<2x1x1024xf32> to vector<2x1024xf32>
    %cst = arith.constant dense<0.000000e+00> : vector<2x512xf32>
    %3 = tpu.matmul %2, %0, %cst {dimension_numbers = #tpu.dot_dimension_numbers<[1], [0], [0], [1], [0, 0, 1, 1], [], []>} : vector<2x1024xf32>, vector<1024x512xf32>, vector<2x512xf32> -> vector<2x512xf32>
    %c0_4 = arith.constant 0 : index
    %c1 = arith.constant 1 : index
    %c0_5 = arith.constant 0 : index
    %4 = vector.load %arg1[%c0_4, %c1, %c0_5] : memref<2x3x1024xf32, #tpu.memory_space<vmem>>, vector<2x1x1024xf32>
    %5 = vector.shape_cast %4 : vector<2x1x1024xf32> to vector<2x1024xf32>
    %cst_6 = arith.constant dense<0.000000e+00> : vector<2x512xf32>
    %6 = tpu.matmul %5, %0, %cst_6 {dimension_numbers = #tpu.dot_dimension_numbers<[1], [0], [0], [1], [0, 0, 1, 1], [], []>} : vector<2x1024xf32>, vector<1024x512xf32>, vector<2x512xf32> -> vector<2x512xf32>
    %7 = arith.maximumf %3, %6 : vector<2x512xf32>
    %c0_7 = arith.constant 0 : index
    %c2 = arith.constant 2 : index
    %c0_8 = arith.constant 0 : index
    %8 = vector.load %arg1[%c0_7, %c2, %c0_8] : memref<2x3x1024xf32, #tpu.memory_space<vmem>>, vector<2x1x1024xf32>
    %9 = vector.shape_cast %8 : vector<2x1x1024xf32> to vector<2x1024xf32>
    %cst_9 = arith.constant dense<0.000000e+00> : vector<2x512xf32>
    %10 = tpu.matmul %9, %0, %cst_9 {dimension_numbers = #tpu.dot_dimension_numbers<[1], [0], [0], [1], [0, 0, 1, 1], [], []>} : vector<2x1024xf32>, vector<1024x512xf32>, vector<2x512xf32> -> vector<2x512xf32>
    %11 = arith.maximumf %7, %10 : vector<2x512xf32>
    %c0_10 = arith.constant 0 : index
    %c0_11 = arith.constant 0 : index
    %c0_12 = arith.constant 0 : index
    %12 = vector.load %arg8[%c0_10, %c0_11, %c0_12] : memref<1x2x512xf32, #tpu.memory_space<vmem>>, vector<1x2x512xf32>
    %13 = vector.shape_cast %12 : vector<1x2x512xf32> to vector<2x512xf32>
    %14 = vector.shape_cast %11 : vector<2x512xf32> to vector<1x2x512xf32>
    tpu.vector_store %arg8[%c0_10, %c0_11, %c0_12], %14 {strides = array<i32>} : memref<1x2x512xf32, #tpu.memory_space<vmem>>, vector<1x2x512xf32>,
    %cst_13 = arith.constant dense<0.000000e+00> : vector<2xf32>
    %15 = vector.multi_reduction <add>, %11, %cst_13 [1] : vector<2x512xf32> to vector<2xf32>
    %16 = vector.shape_cast %15 : vector<2xf32> to vector<2x1xf32>
    %cst_14 = arith.constant 5.120000e+02 : f32
    %17 = vector.broadcast %cst_14 : f32 to vector<2x1xf32>
    %18 = arith.divf %16, %17 : vector<2x1xf32>
    %19 = vector.broadcast %18 : vector<2x1xf32> to vector<2x512xf32>
    %20 = arith.subf %11, %19 : vector<2x512xf32>
    %21 = arith.mulf %20, %20 : vector<2x512xf32>
    %cst_15 = arith.constant dense<0.000000e+00> : vector<2xf32>
    %22 = vector.multi_reduction <add>, %21, %cst_15 [1] : vector<2x512xf32> to vector<2xf32>
    %23 = vector.shape_cast %22 : vector<2xf32> to vector<2x1xf32>
    %cst_16 = arith.constant 5.120000e+02 : f32
    %24 = vector.broadcast %cst_16 : f32 to vector<2x1xf32>
    %25 = arith.divf %23, %24 : vector<2x1xf32>
    %26 = vector.broadcast %18 : vector<2x1xf32> to vector<2x512xf32>
    %27 = arith.subf %11, %26 : vector<2x512xf32>
    %cst_17 = arith.constant 9.99999974E-6 : f32
    %28 = vector.broadcast %cst_17 : f32 to vector<2x1xf32>
    %29 = arith.addf %25, %28 : vector<2x1xf32>
    %30 = math.rsqrt %29 : vector<2x1xf32>
    %31 = vector.broadcast %30 : vector<2x1xf32> to vector<2x512xf32>
    %32 = arith.mulf %27, %31 : vector<2x512xf32>
    %c0_18 = arith.constant 0 : index
    %c0_19 = arith.constant 0 : index
    %33 = vector.load %arg3[%c0_18, %c0_19] : memref<1x512xf32, #tpu.memory_space<vmem>>, vector<1x512xf32>
    %34 = vector.broadcast %33 : vector<1x512xf32> to vector<2x512xf32>
    %35 = arith.mulf %32, %34 : vector<2x512xf32>
    %c0_20 = arith.constant 0 : index
    %c0_21 = arith.constant 0 : index
    %36 = vector.load %arg4[%c0_20, %c0_21] : memref<1x512xf32, #tpu.memory_space<vmem>>, vector<1x512xf32>
    %37 = vector.broadcast %36 : vector<1x512xf32> to vector<2x512xf32>
    %38 = arith.addf %35, %37 : vector<2x512xf32>
    %39 = arith.truncf %38 : vector<2x512xf32> to vector<2x512xbf16>
    %c0_22 = arith.constant 0 : index
    %c0_23 = arith.constant 0 : index
    %40 = vector.load %arg5[%c0_22, %c0_23] : memref<512x512xbf16, #tpu.memory_space<vmem>>, vector<512x512xbf16>
    %cst_24 = arith.constant dense<0.000000e+00> : vector<2x512xf32>
    %41 = tpu.matmul %39, %40, %cst_24 {dimension_numbers = #tpu.dot_dimension_numbers<[1], [0], [0], [1], [0, 0, 1, 1], [], []>} : vector<2x512xbf16>, vector<512x512xbf16>, vector<2x512xf32> -> vector<2x512xf32>
    %c0_25 = arith.constant 0 : index
    %c0_26 = arith.constant 0 : index
    %42 = vector.load %arg6[%c0_25, %c0_26] : memref<1x512xf32, #tpu.memory_space<vmem>>, vector<1x512xf32>
    %43 = vector.broadcast %42 : vector<1x512xf32> to vector<2x512xf32>
    %44 = arith.addf %41, %43 : vector<2x512xf32>
    %c0_27 = arith.constant 0 : index
    %c0_28 = arith.constant 0 : index
    %45 = vector.load %arg7[%c0_27, %c0_28] : memref<2x512xf32, #tpu.memory_space<vmem>>, vector<2x512xf32>
    tpu.vector_store %arg7[%c0_27, %c0_28], %44 {strides = array<i32>} : memref<2x512xf32, #tpu.memory_space<vmem>>, vector<2x512xf32>,
    return
  }
  func.func @transform_0(%arg0: i32) -> (i32, i32, i32) {
    %c0_i32 = arith.constant 0 : i32
    %c0_i32_0 = arith.constant 0 : i32
    %c0_i32_1 = arith.constant 0 : i32
    %c0_i32_2 = arith.constant 0 : i32
    return %c0_i32, %c0_i32_0, %c0_i32_1 : i32, i32, i32
  }
  func.func @transform_1(%arg0: i32) -> (i32, i32) {
    %c0_i32 = arith.constant 0 : i32
    %c0_i32_0 = arith.constant 0 : i32
    %c0_i32_1 = arith.constant 0 : i32
    return %c0_i32, %c0_i32_0 : i32, i32
  }
  func.func @transform_2(%arg0: i32) -> (i32, i32) {
    %c0_i32 = arith.constant 0 : i32
    %c0_i32_0 = arith.constant 0 : i32
    %c0_i32_1 = arith.constant 0 : i32
    return %c0_i32, %c0_i32_0 : i32, i32
  }
  func.func @transform_3(%arg0: i32) -> (i32, i32) {
    %c0_i32 = arith.constant 0 : i32
    %c0_i32_0 = arith.constant 0 : i32
    %c0_i32_1 = arith.constant 0 : i32
    return %c0_i32, %c0_i32_0 : i32, i32
  }
  func.func @transform_4(%arg0: i32) -> (i32, i32) {
    %c0_i32 = arith.constant 0 : i32
    %c0_i32_0 = arith.constant 0 : i32
    return %c0_i32, %arg0 : i32, i32
  }
  func.func @transform_5(%arg0: i32) -> (i32, i32) {
    %c0_i32 = arith.constant 0 : i32
    %c0_i32_0 = arith.constant 0 : i32
    return %c0_i32, %arg0 : i32, i32
  }
  func.func @transform_6(%arg0: i32) -> (i32, i32) {
    %c0_i32 = arith.constant 0 : i32
    %c0_i32_0 = arith.constant 0 : i32
    return %c0_i32, %arg0 : i32, i32
  }
  func.func @transform_7(%arg0: i32) -> (i32, i32, i32) {
    %c0_i32 = arith.constant 0 : i32
    %c0_i32_0 = arith.constant 0 : i32
    %c0_i32_1 = arith.constant 0 : i32
    return %arg0, %c0_i32, %c0_i32_0 : i32, i32, i32
  }
}

</mosaic_0001>

<llo_original>
// kernel: resnet_forward.1
$region0: #{resnet_forward.1}
  #allocation0 [shape = 'u32[]', space=smem, size = 0x4, offset = 0x4, fixed_abs, tag = 'smem constant byte address 0x4 - core index']
  #allocation1 [shape = 'u32[144,128]{1,0:T(1,128)}', space=vmem, size = 0x12000, scoped, tag = 'internal scratch']
  %s0 = inlined_call_operand.vmem [shape: f32[2,3,1024], index: 0, kind: input, shape index: {}]
  %s1 = inlined_call_operand.vmem [shape: f32[1024,512], index: 1, kind: input, shape index: {}]
  %s2 = inlined_call_operand.vmem [shape: f32[1,512], index: 2, kind: input, shape index: {}]
  %s3 = inlined_call_operand.vmem [shape: f32[1,512], index: 3, kind: input, shape index: {}]
  %s4 = inlined_call_operand.vmem [shape: bf16[512,1024], index: 4, kind: input, shape index: {}]
  %s5 = inlined_call_operand.vmem [shape: f32[1,1024], index: 5, kind: input, shape index: {}]
  %s6 = inlined_call_operand.hbm [shape: f32[2,1024], index: 6, kind: output, shape index: {0}]
  %s7 = inlined_call_operand.vmem [shape: f32[2,2,512], index: 7, kind: output, shape index: {1}]
  %8 = xla_tuple %s6, %s7
  %s9 = sld [smem:[#allocation0]]
  $region88: #{resnet_forward.1} parent=0
    _
  %s11 = ssub.s32 1, %s9
  %s12 = scalar_select 0, %s11, %s9
  $region1: #{resnet_forward.1} parent=0
    #allocation2 [shape = 'u8[1048576]{0}', space=vmem, size = 0x100000, scoped, tag = 'input window, operand 4']
    #allocation3 [shape = 'u8[8192]{0}', space=vmem, size = 0x2000, scoped, tag = 'output window, operand 0']
    #allocation4 [shape = 's32[2]{0}', space=sflag, size = 0x8, scoped, tag = 'scoped memory for resnet_forward.1']
    %13 = vsyncpa [#allocation4], 0
    %s14 = scalar_lea.sflag [#allocation4], 1
    %15 = vsyncpa %s14, 0
    loop: start=0, step=1, limit=4
    $region2: #{resnet_forward.1} parent=1 // loop_pre_header
      _
    $region3: #{resnet_forward.1} parent=1 // loop_header
      %s17 = sphi 0, %s21
      %p18 = scmp.ge.s32.totalorder %s17, 4
      %s25 = sphi 0, %s25
      %s27 = sphi 0, %s25
      %s28 = sphi 0, %s27
      %s42 = sphi 0, %s28
      %s46 = sphi 0, %s46
      %s48 = sphi 0, %s46
      %s49 = sphi 0, %s48
      %s63 = sphi 0, %s49
      %s67 = sphi 0, %s67
      %s69 = sphi 0, %s67
      %s70 = sphi 0, %s69
      %s84 = sphi 0, %s70
      %s88 = sphi 0, %s88
      %s90 = sphi 0, %s88
      %s91 = sphi 0, %s90
      %s105 = sphi 0, %s91
      %s111 = sphi 0, %s113
      %s114 = sphi 0, %s111
      %s115 = sphi 0, %s114
      %s131 = sphi 0, %s115
      %s137 = sphi 0, %s139
      %s140 = sphi 0, %s137
      %s141 = sphi 0, %s140
      %s157 = sphi 0, %s141
      %s163 = sphi 0, %s165
      %s166 = sphi 0, %s163
      %s167 = sphi 0, %s166
      %s183 = sphi 0, %s167
      %s189 = sphi 0, %s191
      %s192 = sphi 0, %s189
      %s193 = sphi 0, %s192
      %s209 = sphi 0, %s193
    $region4: #{resnet_forward.1} parent=1 // loop_header_branch
      %20 = sbr.rel (%p18) target = $region8
    $region5: #{resnet_forward.1} parent=1 // loop_body
      %s22 = ssub.s32 %s17, 1
      %s23 = ssub.s32 %s17, 2
      %s24 = sadd.s32 %s17, 1
      %s26 = sadd.s32 %s25, 1
      %p29 = scmp.eq.s32.totalorder %s17, 1
      %p30 = scmp.ne.s32.totalorder %s25, %s27
      %p31 = scmp.eq.s32.totalorder %s17, 0
      %p32 = por %p30, %p31
      %p33 = scmp.ne.s32.totalorder %s25, %s27
      %p34 = scmp.eq.s32.totalorder %s22, 1
      %p35 = por %p33, %p34
      %p36 = scmp.ne.s32.totalorder %s27, %s28
      %p37 = scmp.eq.s32.totalorder %s22, 0
      %p38 = por %p36, %p37
      %p39 = scmp.ne.s32.totalorder %s27, %s28
      %p40 = scmp.eq.s32.totalorder %s23, 1
      %p41 = por %p39, %p40
      %p43 = scmp.ne.s32.totalorder %s28, %s42
      %p44 = scmp.eq.s32.totalorder %s23, 0
      %p45 = por %p43, %p44
      %s47 = sadd.s32 %s46, 1
      %p50 = scmp.eq.s32.totalorder %s17, 1
      %p51 = scmp.ne.s32.totalorder %s46, %s48
      %p52 = scmp.eq.s32.totalorder %s17, 0
      %p53 = por %p51, %p52
      %p54 = scmp.ne.s32.totalorder %s46, %s48
      %p55 = scmp.eq.s32.totalorder %s22, 1
      %p56 = por %p54, %p55
      %p57 = scmp.ne.s32.totalorder %s48, %s49
      %p58 = scmp.eq.s32.totalorder %s22, 0
      %p59 = por %p57, %p58
      %p60 = scmp.ne.s32.totalorder %s48, %s49
      %p61 = scmp.eq.s32.totalorder %s23, 1
      %p62 = por %p60, %p61
      %p64 = scmp.ne.s32.totalorder %s49, %s63
      %p65 = scmp.eq.s32.totalorder %s23, 0
      %p66 = por %p64, %p65
      %s68 = sadd.s32 %s67, 1
      %p71 = scmp.eq.s32.totalorder %s17, 1
      %p72 = scmp.ne.s32.totalorder %s67, %s69
      %p73 = scmp.eq.s32.totalorder %s17, 0
      %p74 = por %p72, %p73
      %p75 = scmp.ne.s32.totalorder %s67, %s69
      %p76 = scmp.eq.s32.totalorder %s22, 1
      %p77 = por %p75, %p76
      %p78 = scmp.ne.s32.totalorder %s69, %s70
      %p79 = scmp.eq.s32.totalorder %s22, 0
      %p80 = por %p78, %p79
      %p81 = scmp.ne.s32.totalorder %s69, %s70
      %p82 = scmp.eq.s32.totalorder %s23, 1
      %p83 = por %p81, %p82
      %p85 = scmp.ne.s32.totalorder %s70, %s84
      %p86 = scmp.eq.s32.totalorder %s23, 0
      %p87 = por %p85, %p86
      %s89 = sadd.s32 %s88, 1
      %p92 = scmp.eq.s32.totalorder %s17, 1
      %p93 = scmp.ne.s32.totalorder %s88, %s90
      %p94 = scmp.eq.s32.totalorder %s17, 0
      %p95 = por %p93, %p94
      %p96 = scmp.ne.s32.totalorder %s88, %s90
      %p97 = scmp.eq.s32.totalorder %s22, 1
      %p98 = por %p96, %p97
      %p99 = scmp.ne.s32.totalorder %s90, %s91
      %p100 = scmp.eq.s32.totalorder %s22, 0
      %p101 = por %p99, %p100
      %p102 = scmp.ne.s32.totalorder %s90, %s91
      %p103 = scmp.eq.s32.totalorder %s23, 1
      %p104 = por %p102, %p103
      %p106 = scmp.ne.s32.totalorder %s91, %s105
      %p107 = scmp.eq.s32.totalorder %s23, 0
      %p108 = por %p106, %p107
      %s109 = ssub.s32 %s17, %s24
      %p110 = scmp.eq.s32.totalorder %s109, 0
      %s112 = sadd.s32 %s111, 1
      %s113 = scalar_select %p110, %s111, %s112
      %p116 = pneg %p110
      %p117 = scmp.eq.s32.totalorder %s17, 1
      %p118 = por %p116, %p117
      %p119 = scmp.ne.s32.totalorder %s111, %s114
      %p120 = scmp.eq.s32.totalorder %s17, 0
      %p121 = por %p119, %p120
      %p122 = scmp.ne.s32.totalorder %s111, %s114
      %p123 = scmp.eq.s32.totalorder %s22, 1
      %p124 = por %p122, %p123
      %p125 = scmp.ne.s32.totalorder %s114, %s115
      %p126 = scmp.eq.s32.totalorder %s22, 0
      %p127 = por %p125, %p126
      %p128 = scmp.ne.s32.totalorder %s114, %s115
      %p129 = scmp.eq.s32.totalorder %s23, 1
      %p130 = por %p128, %p129
      %p132 = scmp.ne.s32.totalorder %s115, %s131
      %p133 = scmp.eq.s32.totalorder %s23, 0
      %p134 = por %p132, %p133
      %s135 = ssub.s32 %s17, %s24
      %p136 = scmp.eq.s32.totalorder %s135, 0
      %s138 = sadd.s32 %s137, 1
      %s139 = scalar_select %p136, %s137, %s138
      %p142 = pneg %p136
      %p143 = scmp.eq.s32.totalorder %s17, 1
      %p144 = por %p142, %p143
      %p145 = scmp.ne.s32.totalorder %s137, %s140
      %p146 = scmp.eq.s32.totalorder %s17, 0
      %p147 = por %p145, %p146
      %p148 = scmp.ne.s32.totalorder %s137, %s140
      %p149 = scmp.eq.s32.totalorder %s22, 1
      %p150 = por %p148, %p149
      %p151 = scmp.ne.s32.totalorder %s140, %s141
      %p152 = scmp.eq.s32.totalorder %s22, 0
      %p153 = por %p151, %p152
      %p154 = scmp.ne.s32.totalorder %s140, %s141
      %p155 = scmp.eq.s32.totalorder %s23, 1
      %p156 = por %p154, %p155
      %p158 = scmp.ne.s32.totalorder %s141, %s157
      %p159 = scmp.eq.s32.totalorder %s23, 0
      %p160 = por %p158, %p159
      %s161 = ssub.s32 %s17, %s24
      %p162 = scmp.eq.s32.totalorder %s161, 0
      %s164 = sadd.s32 %s163, 1
      %s165 = scalar_select %p162, %s163, %s164
      %p168 = pneg %p162
      %p169 = scmp.eq.s32.totalorder %s17, 1
      %p170 = por %p168, %p169
      %p171 = scmp.ne.s32.totalorder %s163, %s166
      %p172 = scmp.eq.s32.totalorder %s17, 0
      %p173 = por %p171, %p172
      %p174 = scmp.ne.s32.totalorder %s163, %s166
      %p175 = scmp.eq.s32.totalorder %s22, 1
      %p176 = por %p174, %p175
      %p177 = scmp.ne.s32.totalorder %s166, %s167
      %p178 = scmp.eq.s32.totalorder %s22, 0
      %p179 = por %p177, %p178
      %p180 = scmp.ne.s32.totalorder %s166, %s167
      %p181 = scmp.eq.s32.totalorder %s23, 1
      %p182 = por %p180, %p181
      %p184 = scmp.ne.s32.totalorder %s167, %s183
      %p185 = scmp.eq.s32.totalorder %s23, 0
      %p186 = por %p184, %p185
      %s187 = ssub.s32 %s17, %s24
      %p188 = scmp.eq.s32.totalorder %s187, 0
      %s190 = sadd.s32 %s189, 1
      %s191 = scalar_select %p188, %s189, %s190
      %p194 = pneg %p188
      %p195 = scmp.eq.s32.totalorder %s17, 1
      %p196 = por %p194, %p195
      %p197 = scmp.ne.s32.totalorder %s189, %s192
      %p198 = scmp.eq.s32.totalorder %s17, 0
      %p199 = por %p197, %p198
      %p200 = scmp.ne.s32.totalorder %s189, %s192
      %p201 = scmp.eq.s32.totalorder %s22, 1
      %p202 = por %p200, %p201
      %p203 = scmp.ne.s32.totalorder %s192, %s193
      %p204 = scmp.eq.s32.totalorder %s22, 0
      %p205 = por %p203, %p204
      %p206 = scmp.ne.s32.totalorder %s192, %s193
      %p207 = scmp.eq.s32.totalorder %s23, 1
      %p208 = por %p206, %p207
      %p210 = scmp.ne.s32.totalorder %s193, %s209
      %p211 = scmp.eq.s32.totalorder %s23, 0
      %p212 = por %p210, %p211
      %p213 = scmp.le.s32.totalorder 1, %s17
      %p214 = scmp.lt.s32.totalorder %s17, 3
      %p215 = pnand %p213, %p214
      %p216 = pneg %p215
      // Predicated region
      $region9: #{resnet_forward.1} parent=5 // pred_check
        _
      $region10: #{resnet_forward.1} parent=5 // pred_check_branch
        %218 = sbr.rel (%p215) target = $region12
      $region11: #{resnet_forward.1} parent=5 // pred_region
        %s219 = ssub.s32 %s17, 1
        // Predicated region
        $region13: #{resnet_forward.1} parent=11 // pred_check
          %p220 = pneg %p38
        $region14: #{resnet_forward.1} parent=11 // pred_check_branch
          %222 = sbr.rel (%p220) target = $region16
        $region15: #{resnet_forward.1} parent=11 // pred_region
          _
        $region16: #{resnet_forward.1} parent=11 // pred_fallthru
          _
        // Predicated region
        $region17: #{resnet_forward.1} parent=11 // pred_check
          %p223 = pneg %p59
        $region18: #{resnet_forward.1} parent=11 // pred_check_branch
          %225 = sbr.rel (%p223) target = $region20
        $region19: #{resnet_forward.1} parent=11 // pred_region
          _
        $region20: #{resnet_forward.1} parent=11 // pred_fallthru
          _
        // Predicated region
        $region21: #{resnet_forward.1} parent=11 // pred_check
          %p226 = pneg %p80
        $region22: #{resnet_forward.1} parent=11 // pred_check_branch
          %228 = sbr.rel (%p226) target = $region24
        $region23: #{resnet_forward.1} parent=11 // pred_region
          _
        $region24: #{resnet_forward.1} parent=11 // pred_fallthru
          _
        // Predicated region
        $region25: #{resnet_forward.1} parent=11 // pred_check
          %p229 = pneg %p101
        $region26: #{resnet_forward.1} parent=11 // pred_check_branch
          %231 = sbr.rel (%p229) target = $region28
        $region27: #{resnet_forward.1} parent=11 // pred_region
          _
        $region28: #{resnet_forward.1} parent=11 // pred_fallthru
          _
      $region12: #{resnet_forward.1} parent=5 // pred_fallthru
        _
      %p232 = scmp.lt.s32.totalorder %s17, 2
      // Predicated region
      $region29: #{resnet_forward.1} parent=5 // pred_check
        %p233 = pneg %p232
      $region30: #{resnet_forward.1} parent=5 // pred_check_branch
        %235 = sbr.rel (%p233) target = $region32
      $region31: #{resnet_forward.1} parent=5 // pred_region
        // Predicated region
        $region33: #{resnet_forward.1} parent=31 // pred_check
          %p236 = pneg %p121
        $region34: #{resnet_forward.1} parent=31 // pred_check_branch
          %238 = sbr.rel (%p236) target = $region36
        $region35: #{resnet_forward.1} parent=31 // pred_region
          %s239 = sand.u32 %s111, 1
          %s240 = sand.u32 %s111, 1
          %s241 = smul.addr %s240, 1024
          %s242 = scalar_lea.vmem [#allocation2], %s241
          %s243 = smul.u32 4, %s17
          %s244 = smul.addr %s243, 4
          %s245 = scalar_lea.vmem %s4, %s244
          // Predicated region
          $region37: #{resnet_forward.1} parent=35 // pred_check
            _
          $region38: #{resnet_forward.1} parent=35 // pred_check_branch
            %247 = sbr.rel (0) target = $region40
          $region39: #{resnet_forward.1} parent=35 // pred_region
            // Predicated region
            $region41: #{resnet_forward.1} parent=39 // pred_check
              _
            $region42: #{resnet_forward.1} parent=39 // pred_check_branch
              %249 = sbr.rel (0) target = $region44
            $region43: #{resnet_forward.1} parent=39 // pred_region
              loop: start=0, step=1, limit=1
              $region45: #{resnet_forward.1} parent=43 // loop_pre_header
                _
              $region46: #{resnet_forward.1} parent=43 // loop_header
                %s251 = sphi 0, %s255
                %p252 = scmp.ge.s32.totalorder %s251, 1
                %s256 = sphi %s245, %s245
                %s257 = sphi %s242, %s242
              $region47: #{resnet_forward.1} parent=43 // loop_header_branch
                %254 = sbr.rel (%p252) target = $region51
              $region48: #{resnet_forward.1} parent=43 // loop_body
                %v258 = vld [vmem:[%s256] sm:$0xff]
                %259 = vst [vmem:[%s257] sm:$0xff] %v258
                %v260 = vld [vmem:[%s256 + $0x8] sm:$0xff]
                %261 = vst [vmem:[%s257 + $0x8] sm:$0xff] %v260
                %v262 = vld [vmem:[%s256 + $0x20] sm:$0xff]
                %263 = vst [vmem:[%s257 + $0x10] sm:$0xff] %v262
                %v264 = vld [vmem:[%s256 + $0x28] sm:$0xff]
                %265 = vst [vmem:[%s257 + $0x18] sm:$0xff] %v264
                %v266 = vld [vmem:[%s256 + $0x40] sm:$0xff]
                %267 = vst [vmem:[%s257 + $0x20] sm:$0xff] %v266
                %v268 = vld [vmem:[%s256 + $0x48] sm:$0xff]
                %269 = vst [vmem:[%s257 + $0x28] sm:$0xff] %v268
                %v270 = vld [vmem:[%s256 + $0x60] sm:$0xff]
                %271 = vst [vmem:[%s257 + $0x30] sm:$0xff] %v270
                %v272 = vld [vmem:[%s256 + $0x68] sm:$0xff]
                %273 = vst [vmem:[%s257 + $0x38] sm:$0xff] %v272
                %v274 = vld [vmem:[%s256 + $0x80] sm:$0xff]
                %275 = vst [vmem:[%s257 + $0x40] sm:$0xff] %v274
                %v276 = vld [vmem:[%s256 + $0x88] sm:$0xff]
                %277 = vst [vmem:[%s257 + $0x48] sm:$0xff] %v276
                %v278 = vld [vmem:[%s256 + $0xa0] sm:$0xff]
                %279 = vst [vmem:[%s257 + $0x50] sm:$0xff] %v278
                %v280 = vld [vmem:[%s256 + $0xa8] sm:$0xff]
                %281 = vst [vmem:[%s257 + $0x58] sm:$0xff] %v280
                %v282 = vld [vmem:[%s256 + $0xc0] sm:$0xff]
                %283 = vst [vmem:[%s257 + $0x60] sm:$0xff] %v282
                %v284 = vld [vmem:[%s256 + $0xc8] sm:$0xff]
                %285 = vst [vmem:[%s257 + $0x68] sm:$0xff] %v284
                %v286 = vld [vmem:[%s256 + $0xe0] sm:$0xff]
                %287 = vst [vmem:[%s257 + $0x70] sm:$0xff] %v286
                %v288 = vld [vmem:[%s256 + $0xe8] sm:$0xff]
                %289 = vst [vmem:[%s257 + $0x78] sm:$0xff] %v288
                %v290 = vld [vmem:[%s256 + $0x100] sm:$0xff]
                %291 = vst [vmem:[%s257 + $0x80] sm:$0xff] %v290
                %v292 = vld [vmem:[%s256 + $0x108] sm:$0xff]
                %293 = vst [vmem:[%s257 + $0x88] sm:$0xff] %v292
                %v294 = vld [vmem:[%s256 + $0x120] sm:$0xff]
                %295 = vst [vmem:[%s257 + $0x90] sm:$0xff] %v294
                %v296 = vld [vmem:[%s256 + $0x128] sm:$0xff]
                %297 = vst [vmem:[%s257 + $0x98] sm:$0xff] %v296
                %v298 = vld [vmem:[%s256 + $0x140] sm:$0xff]
                %299 = vst [vmem:[%s257 + $0xa0] sm:$0xff] %v298
                %v300 = vld [vmem:[%s256 + $0x148] sm:$0xff]
                %301 = vst [vmem:[%s257 + $0xa8] sm:$0xff] %v300
                %v302 = vld [vmem:[%s256 + $0x160] sm:$0xff]
                %303 = vst [vmem:[%s257 + $0xb0] sm:$0xff] %v302
                %v304 = vld [vmem:[%s256 + $0x168] sm:$0xff]
                %305 = vst [vmem:[%s257 + $0xb8] sm:$0xff] %v304
                %v306 = vld [vmem:[%s256 + $0x180] sm:$0xff]
                %307 = vst [vmem:[%s257 + $0xc0] sm:$0xff] %v306
                %v308 = vld [vmem:[%s256 + $0x188] sm:$0xff]
                %309 = vst [vmem:[%s257 + $0xc8] sm:$0xff] %v308
                %v310 = vld [vmem:[%s256 + $0x1a0] sm:$0xff]
                %311 = vst [vmem:[%s257 + $0xd0] sm:$0xff] %v310
                %v312 = vld [vmem:[%s256 + $0x1a8] sm:$0xff]
                %313 = vst [vmem:[%s257 + $0xd8] sm:$0xff] %v312
                %v314 = vld [vmem:[%s256 + $0x1c0] sm:$0xff]
                %315 = vst [vmem:[%s257 + $0xe0] sm:$0xff] %v314
                %v316 = vld [vmem:[%s256 + $0x1c8] sm:$0xff]
                %317 = vst [vmem:[%s257 + $0xe8] sm:$0xff] %v316
                %v318 = vld [vmem:[%s256 + $0x1e0] sm:$0xff]
                %319 = vst [vmem:[%s257 + $0xf0] sm:$0xff] %v318
                %v320 = vld [vmem:[%s256 + $0x1e8] sm:$0xff]
                %321 = vst [vmem:[%s257 + $0xf8] sm:$0xff] %v320
                %v322 = vld [vmem:[%s256 + $0x200] sm:$0xff]
                %323 = vst [vmem:[%s257 + $0x100] sm:$0xff] %v322
                %v324 = vld [vmem:[%s256 + $0x208] sm:$0xff]
                %325 = vst [vmem:[%s257 + $0x108] sm:$0xff] %v324
                %v326 = vld [vmem:[%s256 + $0x220] sm:$0xff]
                %327 = vst [vmem:[%s257 + $0x110] sm:$0xff] %v326
                %v328 = vld [vmem:[%s256 + $0x228] sm:$0xff]
                %329 = vst [vmem:[%s257 + $0x118] sm:$0xff] %v328
                %v330 = vld [vmem:[%s256 + $0x240] sm:$0xff]
                %331 = vst [vmem:[%s257 + $0x120] sm:$0xff] %v330
                %v332 = vld [vmem:[%s256 + $0x248] sm:$0xff]
                %333 = vst [vmem:[%s257 + $0x128] sm:$0xff] %v332
                %v334 = vld [vmem:[%s256 + $0x260] sm:$0xff]
                %335 = vst [vmem:[%s257 + $0x130] sm:$0xff] %v334
                %v336 = vld [vmem:[%s256 + $0x268] sm:$0xff]
                %337 = vst [vmem:[%s257 + $0x138] sm:$0xff] %v336
                %v338 = vld [vmem:[%s256 + $0x280] sm:$0xff]
                %339 = vst [vmem:[%s257 + $0x140] sm:$0xff] %v338
                %v340 = vld [vmem:[%s256 + $0x288] sm:$0xff]
                %341 = vst [vmem:[%s257 + $0x148] sm:$0xff] %v340
                %v342 = vld [vmem:[%s256 + $0x2a0] sm:$0xff]
                %343 = vst [vmem:[%s257 + $0x150] sm:$0xff] %v342
                %v344 = vld [vmem:[%s256 + $0x2a8] sm:$0xff]
                %345 = vst [vmem:[%s257 + $0x158] sm:$0xff] %v344
                %v346 = vld [vmem:[%s256 + $0x2c0] sm:$0xff]
                %347 = vst [vmem:[%s257 + $0x160] sm:$0xff] %v346
                %v348 = vld [vmem:[%s256 + $0x2c8] sm:$0xff]
                %349 = vst [vmem:[%s257 + $0x168] sm:$0xff] %v348
                %v350 = vld [vmem:[%s256 + $0x2e0] sm:$0xff]
                %351 = vst [vmem:[%s257 + $0x170] sm:$0xff] %v350
                %v352 = vld [vmem:[%s256 + $0x2e8] sm:$0xff]
                %353 = vst [vmem:[%s257 + $0x178] sm:$0xff] %v352
                %v354 = vld [vmem:[%s256 + $0x300] sm:$0xff]
                %355 = vst [vmem:[%s257 + $0x180] sm:$0xff] %v354
                %v356 = vld [vmem:[%s256 + $0x308] sm:$0xff]
                %357 = vst [vmem:[%s257 + $0x188] sm:$0xff] %v356
                %v358 = vld [vmem:[%s256 + $0x320] sm:$0xff]
                %359 = vst [vmem:[%s257 + $0x190] sm:$0xff] %v358
                %v360 = vld [vmem:[%s256 + $0x328] sm:$0xff]
                %361 = vst [vmem:[%s257 + $0x198] sm:$0xff] %v360
                %v362 = vld [vmem:[%s256 + $0x340] sm:$0xff]
                %363 = vst [vmem:[%s257 + $0x1a0] sm:$0xff] %v362
                %v364 = vld [vmem:[%s256 + $0x348] sm:$0xff]
                %365 = vst [vmem:[%s257 + $0x1a8] sm:$0xff] %v364
                %v366 = vld [vmem:[%s256 + $0x360] sm:$0xff]
                %367 = vst [vmem:[%s257 + $0x1b0] sm:$0xff] %v366
                %v368 = vld [vmem:[%s256 + $0x368] sm:$0xff]
                %369 = vst [vmem:[%s257 + $0x1b8] sm:$0xff] %v368
                %v370 = vld [vmem:[%s256 + $0x380] sm:$0xff]
                %371 = vst [vmem:[%s257 + $0x1c0] sm:$0xff] %v370
                %v372 = vld [vmem:[%s256 + $0x388] sm:$0xff]
                %373 = vst [vmem:[%s257 + $0x1c8] sm:$0xff] %v372
                %v374 = vld [vmem:[%s256 + $0x3a0] sm:$0xff]
                %375 = vst [vmem:[%s257 + $0x1d0] sm:$0xff] %v374
                %v376 = vld [vmem:[%s256 + $0x3a8] sm:$0xff]
                %377 = vst [vmem:[%s257 + $0x1d8] sm:$0xff] %v376
                %v378 = vld [vmem:[%s256 + $0x3c0] sm:$0xff]
                %379 = vst [vmem:[%s257 + $0x1e0] sm:$0xff] %v378
                %v380 = vld [vmem:[%s256 + $0x3c8] sm:$0xff]
                %381 = vst [vmem:[%s257 + $0x1e8] sm:$0xff] %v380
                %v382 = vld [vmem:[%s256 + $0x3e0] sm:$0xff]
                %383 = vst [vmem:[%s257 + $0x1f0] sm:$0xff] %v382
                %v384 = vld [vmem:[%s256 + $0x3e8] sm:$0xff]
                %385 = vst [vmem:[%s257 + $0x1f8] sm:$0xff] %v384
                %v386 = vld [vmem:[%s256 + $0x400] sm:$0xff]
                %387 = vst [vmem:[%s257 + $0x200] sm:$0xff] %v386
                %v388 = vld [vmem:[%s256 + $0x408] sm:$0xff]
                %389 = vst [vmem:[%s257 + $0x208] sm:$0xff] %v388
                %v390 = vld [vmem:[%s256 + $0x420] sm:$0xff]
                %391 = vst [vmem:[%s257 + $0x210] sm:$0xff] %v390
                %v392 = vld [vmem:[%s256 + $0x428] sm:$0xff]
                %393 = vst [vmem:[%s257 + $0x218] sm:$0xff] %v392
                %v394 = vld [vmem:[%s256 + $0x440] sm:$0xff]
                %395 = vst [vmem:[%s257 + $0x220] sm:$0xff] %v394
                %v396 = vld [vmem:[%s256 + $0x448] sm:$0xff]
                %397 = vst [vmem:[%s257 + $0x228] sm:$0xff] %v396
                %v398 = vld [vmem:[%s256 + $0x460] sm:$0xff]
                %399 = vst [vmem:[%s257 + $0x230] sm:$0xff] %v398
                %v400 = vld [vmem:[%s256 + $0x468] sm:$0xff]
                %401 = vst [vmem:[%s257 + $0x238] sm:$0xff] %v400
                %v402 = vld [vmem:[%s256 + $0x480] sm:$0xff]
                %403 = vst [vmem:[%s257 + $0x240] sm:$0xff] %v402
                %v404 = vld [vmem:[%s256 + $0x488] sm:$0xff]
                %405 = vst [vmem:[%s257 + $0x248] sm:$0xff] %v404
                %v406 = vld [vmem:[%s256 + $0x4a0] sm:$0xff]
                %407 = vst [vmem:[%s257 + $0x250] sm:$0xff] %v406
                %v408 = vld [vmem:[%s256 + $0x4a8] sm:$0xff]
                %409 = vst [vmem:[%s257 + $0x258] sm:$0xff] %v408
                %v410 = vld [vmem:[%s256 + $0x4c0] sm:$0xff]
                %411 = vst [vmem:[%s257 + $0x260] sm:$0xff] %v410
                %v412 = vld [vmem:[%s256 + $0x4c8] sm:$0xff]
                %413 = vst [vmem:[%s257 + $0x268] sm:$0xff] %v412
                %v414 = vld [vmem:[%s256 + $0x4e0] sm:$0xff]
                %415 = vst [vmem:[%s257 + $0x270] sm:$0xff] %v414
                %v416 = vld [vmem:[%s256 + $0x4e8] sm:$0xff]
                %417 = vst [vmem:[%s257 + $0x278] sm:$0xff] %v416
                %v418 = vld [vmem:[%s256 + $0x500] sm:$0xff]
                %419 = vst [vmem:[%s257 + $0x280] sm:$0xff] %v418
                %v420 = vld [vmem:[%s256 + $0x508] sm:$0xff]
                %421 = vst [vmem:[%s257 + $0x288] sm:$0xff] %v420
                %v422 = vld [vmem:[%s256 + $0x520] sm:$0xff]
                %423 = vst [vmem:[%s257 + $0x290] sm:$0xff] %v422
                %v424 = vld [vmem:[%s256 + $0x528] sm:$0xff]
                %425 = vst [vmem:[%s257 + $0x298] sm:$0xff] %v424
                %v426 = vld [vmem:[%s256 + $0x540] sm:$0xff]
                %427 = vst [vmem:[%s257 + $0x2a0] sm:$0xff] %v426
                %v428 = vld [vmem:[%s256 + $0x548] sm:$0xff]
                %429 = vst [vmem:[%s257 + $0x2a8] sm:$0xff] %v428
                %v430 = vld [vmem:[%s256 + $0x560] sm:$0xff]
                %431 = vst [vmem:[%s257 + $0x2b0] sm:$0xff] %v430
                %v432 = vld [vmem:[%s256 + $0x568] sm:$0xff]
                %433 = vst [vmem:[%s257 + $0x2b8] sm:$0xff] %v432
                %v434 = vld [vmem:[%s256 + $0x580] sm:$0xff]
                %435 = vst [vmem:[%s257 + $0x2c0] sm:$0xff] %v434
                %v436 = vld [vmem:[%s256 + $0x588] sm:$0xff]
                %437 = vst [vmem:[%s257 + $0x2c8] sm:$0xff] %v436
                %v438 = vld [vmem:[%s256 + $0x5a0] sm:$0xff]
                %439 = vst [vmem:[%s257 + $0x2d0] sm:$0xff] %v438
                %v440 = vld [vmem:[%s256 + $0x5a8] sm:$0xff]
                %441 = vst [vmem:[%s257 + $0x2d8] sm:$0xff] %v440
                %v442 = vld [vmem:[%s256 + $0x5c0] sm:$0xff]
                %443 = vst [vmem:[%s257 + $0x2e0] sm:$0xff] %v442
                %v444 = vld [vmem:[%s256 + $0x5c8] sm:$0xff]
                %445 = vst [vmem:[%s257 + $0x2e8] sm:$0xff] %v444
                %v446 = vld [vmem:[%s256 + $0x5e0] sm:$0xff]
                %447 = vst [vmem:[%s257 + $0x2f0] sm:$0xff] %v446
                %v448 = vld [vmem:[%s256 + $0x5e8] sm:$0xff]
                %449 = vst [vmem:[%s257 + $0x2f8] sm:$0xff] %v448
                %v450 = vld [vmem:[%s256 + $0x600] sm:$0xff]
                %451 = vst [vmem:[%s257 + $0x300] sm:$0xff] %v450
                %v452 = vld [vmem:[%s256 + $0x608] sm:$0xff]
                %453 = vst [vmem:[%s257 + $0x308] sm:$0xff] %v452
                %v454 = vld [vmem:[%s256 + $0x620] sm:$0xff]
                %455 = vst [vmem:[%s257 + $0x310] sm:$0xff] %v454
                %v456 = vld [vmem:[%s256 + $0x628] sm:$0xff]
                %457 = vst [vmem:[%s257 + $0x318] sm:$0xff] %v456
                %v458 = vld [vmem:[%s256 + $0x640] sm:$0xff]
                %459 = vst [vmem:[%s257 + $0x320] sm:$0xff] %v458
                %v460 = vld [vmem:[%s256 + $0x648] sm:$0xff]
                %461 = vst [vmem:[%s257 + $0x328] sm:$0xff] %v460
                %v462 = vld [vmem:[%s256 + $0x660] sm:$0xff]
                %463 = vst [vmem:[%s257 + $0x330] sm:$0xff] %v462
                %v464 = vld [vmem:[%s256 + $0x668] sm:$0xff]
                %465 = vst [vmem:[%s257 + $0x338] sm:$0xff] %v464
                %v466 = vld [vmem:[%s256 + $0x680] sm:$0xff]
                %467 = vst [vmem:[%s257 + $0x340] sm:$0xff] %v466
                %v468 = vld [vmem:[%s256 + $0x688] sm:$0xff]
                %469 = vst [vmem:[%s257 + $0x348] sm:$0xff] %v468
                %v470 = vld [vmem:[%s256 + $0x6a0] sm:$0xff]
                %471 = vst [vmem:[%s257 + $0x350] sm:$0xff] %v470
                %v472 = vld [vmem:[%s256 + $0x6a8] sm:$0xff]
                %473 = vst [vmem:[%s257 + $0x358] sm:$0xff] %v472
                %v474 = vld [vmem:[%s256 + $0x6c0] sm:$0xff]
                %475 = vst [vmem:[%s257 + $0x360] sm:$0xff] %v474
                %v476 = vld [vmem:[%s256 + $0x6c8] sm:$0xff]
                %477 = vst [vmem:[%s257 + $0x368] sm:$0xff] %v476
                %v478 = vld [vmem:[%s256 + $0x6e0] sm:$0xff]
                %479 = vst [vmem:[%s257 + $0x370] sm:$0xff] %v478
                %v480 = vld [vmem:[%s256 + $0x6e8] sm:$0xff]
                %481 = vst [vmem:[%s257 + $0x378] sm:$0xff] %v480
                %v482 = vld [vmem:[%s256 + $0x700] sm:$0xff]
                %483 = vst [vmem:[%s257 + $0x380] sm:$0xff] %v482
                %v484 = vld [vmem:[%s256 + $0x708] sm:$0xff]
                %485 = vst [vmem:[%s257 + $0x388] sm:$0xff] %v484
                %v486 = vld [vmem:[%s256 + $0x720] sm:$0xff]
                %487 = vst [vmem:[%s257 + $0x390] sm:$0xff] %v486
                %v488 = vld [vmem:[%s256 + $0x728] sm:$0xff]
                %489 = vst [vmem:[%s257 + $0x398] sm:$0xff] %v488
                %v490 = vld [vmem:[%s256 + $0x740] sm:$0xff]
                %491 = vst [vmem:[%s257 + $0x3a0] sm:$0xff] %v490
                %v492 = vld [vmem:[%s256 + $0x748] sm:$0xff]
                %493 = vst [vmem:[%s257 + $0x3a8] sm:$0xff] %v492
                %v494 = vld [vmem:[%s256 + $0x760] sm:$0xff]
                %495 = vst [vmem:[%s257 + $0x3b0] sm:$0xff] %v494
                %v496 = vld [vmem:[%s256 + $0x768] sm:$0xff]
                %497 = vst [vmem:[%s257 + $0x3b8] sm:$0xff] %v496
                %v498 = vld [vmem:[%s256 + $0x780] sm:$0xff]
                %499 = vst [vmem:[%s257 + $0x3c0] sm:$0xff] %v498
                %v500 = vld [vmem:[%s256 + $0x788] sm:$0xff]
                %501 = vst [vmem:[%s257 + $0x3c8] sm:$0xff] %v500
                %v502 = vld [vmem:[%s256 + $0x7a0] sm:$0xff]
                %503 = vst [vmem:[%s257 + $0x3d0] sm:$0xff] %v502
                %v504 = vld [vmem:[%s256 + $0x7a8] sm:$0xff]
                %505 = vst [vmem:[%s257 + $0x3d8] sm:$0xff] %v504
                %v506 = vld [vmem:[%s256 + $0x7c0] sm:$0xff]
                %507 = vst [vmem:[%s257 + $0x3e0] sm:$0xff] %v506
                %v508 = vld [vmem:[%s256 + $0x7c8] sm:$0xff]
                %509 = vst [vmem:[%s257 + $0x3e8] sm:$0xff] %v508
                %v510 = vld [vmem:[%s256 + $0x7e0] sm:$0xff]
                %511 = vst [vmem:[%s257 + $0x3f0] sm:$0xff] %v510
                %v512 = vld [vmem:[%s256 + $0x7e8] sm:$0xff]
                %513 = vst [vmem:[%s257 + $0x3f8] sm:$0xff] %v512
              $region49: #{resnet_forward.1} parent=43 // loop_footer
                %s255 = sadd.s32 1, %s251
              $region50: #{resnet_forward.1} parent=43 // loop_footer_branch
                %250 = sbr.rel target = $region46
              $region51: #{resnet_forward.1} parent=43 // loop_exit
                _
            $region44: #{resnet_forward.1} parent=39 // pred_fallthru
              _
            // Predicated region
            $region52: #{resnet_forward.1} parent=39 // pred_check
              _
            $region53: #{resnet_forward.1} parent=39 // pred_check_branch
              %515 = sbr.rel target = $region55
            $region54: #{resnet_forward.1} parent=39 // pred_region
              _
            $region55: #{resnet_forward.1} parent=39 // pred_fallthru
              _
          $region40: #{resnet_forward.1} parent=35 // pred_fallthru
            _
          %516 = vnop
        $region36: #{resnet_forward.1} parent=31 // pred_fallthru
          _
        // Predicated region
        $region56: #{resnet_forward.1} parent=31 // pred_check
          %p517 = pneg %p147
        $region57: #{resnet_forward.1} parent=31 // pred_check_branch
          %519 = sbr.rel (%p517) target = $region59
        $region58: #{resnet_forward.1} parent=31 // pred_region
          %s520 = smul.u32 4, %s17
          %p521 = scmp.lt.s32.totalorder %s520, 7
          %s522 = scalar_select %p521, %s520, 7
          %s523 = scalar_lea.vmem %s5, %s522
          %s524 = smul.u32 4, %s17
        $region59: #{resnet_forward.1} parent=31 // pred_fallthru
          _
      $region32: #{resnet_forward.1} parent=5 // pred_fallthru
        _
      %p525 = scmp.le.s32.totalorder 1, %s17
      %p526 = scmp.lt.s32.totalorder %s17, 3
      %p527 = pnand %p525, %p526
      %p528 = pneg %p527
      // Predicated region
      $region60: #{resnet_forward.1} parent=5 // pred_check
        _
      $region61: #{resnet_forward.1} parent=5 // pred_check_branch
        %530 = sbr.rel (%p527) target = $region63
      $region62: #{resnet_forward.1} parent=5 // pred_region
        %s531 = ssub.s32 %s17, 1
        %s532 = sand.u32 %s114, 1
        %s533 = sand.u32 %s114, 1
        %s534 = smul.addr %s533, 1024
        %s535 = scalar_lea.vmem [#allocation2], %s534
        // Predicated region
        $region64: #{resnet_forward.1} parent=62 // pred_check
          %p536 = pneg %p127
        $region65: #{resnet_forward.1} parent=62 // pred_check_branch
          %538 = sbr.rel (%p536) target = $region67
        $region66: #{resnet_forward.1} parent=62 // pred_region
          _
        $region67: #{resnet_forward.1} parent=62 // pred_fallthru
          _
        %p539 = pneg %p38
        %p540 = pneg %p35
        %p541 = pneg %p59
        %p542 = pneg %p56
        %p543 = pneg %p80
        %p544 = pneg %p77
        %p545 = pneg %p101
        %p546 = pneg %p98
        %s547 = sand.u32 %s114, 1
        %s548 = sand.u32 %s114, 1
        %s549 = smul.addr %s548, 1024
        %s550 = scalar_lea.vmem [#allocation2], %s549
        %p551 = pneg %p127
        %p552 = pneg %p124
        %s553 = smul.u32 4, %s22
        %p554 = scmp.lt.s32.totalorder %s553, 7
        %s555 = scalar_select %p554, %s553, 7
        %s556 = scalar_lea.vmem %s5, %s555
        %p557 = pneg %p153
        %p558 = pneg %p150
        %p559 = pneg %p179
        %p560 = pneg %p176
        %s561 = sand.u32 %s166, 1
        %s562 = scalar_lea.sflag [#allocation4], %s561
        %s563 = sand.u32 %s166, 1
        %s564 = smul.addr %s563, 8
        %s565 = scalar_lea.vmem [#allocation3], %s564
        %p566 = pneg %p205
        %p567 = pneg %p202
        %p568 = scmp.lt.s32.totalorder %s22, 1
        %s569 = scalar_select %p568, %s22, 1
        %s570 = smul.addr %s569, 4
        %s571 = smul.addr %s570, 2
        %s572 = scalar_lea.vmem %s7, %s571
        %s573 = smul.u32 4, %s22
        %s574 = smul.u32 4, %s22
        %p575 = scmp.lt.s32.totalorder %s574, 7
        %s576 = scalar_select %p575, %s574, 7
        %s577 = scalar_lea.vmem %s5, %s576
        %s578 = smul.u32 4, %s22
        %s579 = smul.u32 4, %s22
        %p580 = scmp.lt.s32.totalorder %s22, 1
        %s581 = scalar_select %p580, %s22, 1
        %s582 = smul.addr %s581, 4
        %s583 = smul.addr %s582, 2
        %s584 = scalar_lea.vmem %s7, %s583
        %v585 = vld [vmem:[%s1] sm:$0xff]
        %v586 = vld [vmem:[%s1 + $0x8] sm:$0xff]
        %v587 = vld [vmem:[%s1 + $0x10] sm:$0xff]
        %v588 = vld [vmem:[%s1 + $0x18] sm:$0xff]
        %v589 = vld [vmem:[%s1 + $0x20] sm:$0xff]
        %v590 = vld [vmem:[%s1 + $0x28] sm:$0xff]
        %v591 = vld [vmem:[%s1 + $0x30] sm:$0xff]
        %v592 = vld [vmem:[%s1 + $0x38] sm:$0xff]
        %v593 = vld [vmem:[%s1 + $0x40] sm:$0xff]
        %v594 = vld [vmem:[%s1 + $0x48] sm:$0xff]
        %v595 = vld [vmem:[%s1 + $0x50] sm:$0xff]
        %v596 = vld [vmem:[%s1 + $0x58] sm:$0xff]
        %v597 = vld [vmem:[%s1 + $0x60] sm:$0xff]
        %v598 = vld [vmem:[%s1 + $0x68] sm:$0xff]
        %v599 = vld [vmem:[%s1 + $0x70] sm:$0xff]
        %v600 = vld [vmem:[%s1 + $0x78] sm:$0xff]
        %v601 = vld [vmem:[%s1 + $0x80] sm:$0xff]
        %v602 = vld [vmem:[%s1 + $0x88] sm:$0xff]
        %v603 = vld [vmem:[%s1 + $0x90] sm:$0xff]
        %v604 = vld [vmem:[%s1 + $0x98] sm:$0xff]
        %v605 = vld [vmem:[%s1 + $0xa0] sm:$0xff]
        %v606 = vld [vmem:[%s1 + $0xa8] sm:$0xff]
        %v607 = vld [vmem:[%s1 + $0xb0] sm:$0xff]
        %v608 = vld [vmem:[%s1 + $0xb8] sm:$0xff]
        %v609 = vld [vmem:[%s1 + $0xc0] sm:$0xff]
        %v610 = vld [vmem:[%s1 + $0xc8] sm:$0xff]
        %v611 = vld [vmem:[%s1 + $0xd0] sm:$0xff]
        %v612 = vld [vmem:[%s1 + $0xd8] sm:$0xff]
        %v613 = vld [vmem:[%s1 + $0xe0] sm:$0xff]
        %v614 = vld [vmem:[%s1 + $0xe8] sm:$0xff]
        %v615 = vld [vmem:[%s1 + $0xf0] sm:$0xff]
        %v616 = vld [vmem:[%s1 + $0xf8] sm:$0xff]
        %v617 = vld [vmem:[%s1 + $0x100] sm:$0xff]
        %v618 = vld [vmem:[%s1 + $0x108] sm:$0xff]
        %v619 = vld [vmem:[%s1 + $0x110] sm:$0xff]
        %v620 = vld [vmem:[%s1 + $0x118] sm:$0xff]
        %v621 = vld [vmem:[%s1 + $0x120] sm:$0xff]
        %v622 = vld [vmem:[%s1 + $0x128] sm:$0xff]
        %v623 = vld [vmem:[%s1 + $0x130] sm:$0xff]
        %v624 = vld [vmem:[%s1 + $0x138] sm:$0xff]
        %v625 = vld [vmem:[%s1 + $0x140] sm:$0xff]
        %v626 = vld [vmem:[%s1 + $0x148] sm:$0xff]
        %v627 = vld [vmem:[%s1 + $0x150] sm:$0xff]
        %v628 = vld [vmem:[%s1 + $0x158] sm:$0xff]
        %v629 = vld [vmem:[%s1 + $0x160] sm:$0xff]
        %v630 = vld [vmem:[%s1 + $0x168] sm:$0xff]
        %v631 = vld [vmem:[%s1 + $0x170] sm:$0xff]
        %v632 = vld [vmem:[%s1 + $0x178] sm:$0xff]
        %v633 = vld [vmem:[%s1 + $0x180] sm:$0xff]
        %v634 = vld [vmem:[%s1 + $0x188] sm:$0xff]
        %v635 = vld [vmem:[%s1 + $0x190] sm:$0xff]
        %v636 = vld [vmem:[%s1 + $0x198] sm:$0xff]
        %v637 = vld [vmem:[%s1 + $0x1a0] sm:$0xff]
        %v638 = vld [vmem:[%s1 + $0x1a8] sm:$0xff]
        %v639 = vld [vmem:[%s1 + $0x1b0] sm:$0xff]
        %v640 = vld [vmem:[%s1 + $0x1b8] sm:$0xff]
        %v641 = vld [vmem:[%s1 + $0x1c0] sm:$0xff]
        %v642 = vld [vmem:[%s1 + $0x1c8] sm:$0xff]
        %v643 = vld [vmem:[%s1 + $0x1d0] sm:$0xff]
        %v644 = vld [vmem:[%s1 + $0x1d8] sm:$0xff]
        %v645 = vld [vmem:[%s1 + $0x1e0] sm:$0xff]
        %v646 = vld [vmem:[%s1 + $0x1e8] sm:$0xff]
        %v647 = vld [vmem:[%s1 + $0x1f0] sm:$0xff]
        %v648 = vld [vmem:[%s1 + $0x1f8] sm:$0xff]
        %v649 = vld [vmem:[%s1 + $0x200] sm:$0xff]
        %v650 = vld [vmem:[%s1 + $0x208] sm:$0xff]
        %v651 = vld [vmem:[%s1 + $0x210] sm:$0xff]
        %v652 = vld [vmem:[%s1 + $0x218] sm:$0xff]
        %v653 = vld [vmem:[%s1 + $0x220] sm:$0xff]
        %v654 = vld [vmem:[%s1 + $0x228] sm:$0xff]
        %v655 = vld [vmem:[%s1 + $0x230] sm:$0xff]
        %v656 = vld [vmem:[%s1 + $0x238] sm:$0xff]
        %v657 = vld [vmem:[%s1 + $0x240] sm:$0xff]
        %v658 = vld [vmem:[%s1 + $0x248] sm:$0xff]
        %v659 = vld [vmem:[%s1 + $0x250] sm:$0xff]
        %v660 = vld [vmem:[%s1 + $0x258] sm:$0xff]
        %v661 = vld [vmem:[%s1 + $0x260] sm:$0xff]
        %v662 = vld [vmem:[%s1 + $0x268] sm:$0xff]
        %v663 = vld [vmem:[%s1 + $0x270] sm:$0xff]
        %v664 = vld [vmem:[%s1 + $0x278] sm:$0xff]
        %v665 = vld [vmem:[%s1 + $0x280] sm:$0xff]
        %v666 = vld [vmem:[%s1 + $0x288] sm:$0xff]
        %v667 = vld [vmem:[%s1 + $0x290] sm:$0xff]
        %v668 = vld [vmem:[%s1 + $0x298] sm:$0xff]
        %v669 = vld [vmem:[%s1 + $0x2a0] sm:$0xff]
        %v670 = vld [vmem:[%s1 + $0x2a8] sm:$0xff]
        %v671 = vld [vmem:[%s1 + $0x2b0] sm:$0xff]
        %v672 = vld [vmem:[%s1 + $0x2b8] sm:$0xff]
        %v673 = vld [vmem:[%s1 + $0x2c0] sm:$0xff]
        %v674 = vld [vmem:[%s1 + $0x2c8] sm:$0xff]
        %v675 = vld [vmem:[%s1 + $0x2d0] sm:$0xff]
        %v676 = vld [vmem:[%s1 + $0x2d8] sm:$0xff]
        %v677 = vld [vmem:[%s1 + $0x2e0] sm:$0xff]
        %v678 = vld [vmem:[%s1 + $0x2e8] sm:$0xff]
        %v679 = vld [vmem:[%s1 + $0x2f0] sm:$0xff]
        %v680 = vld [vmem:[%s1 + $0x2f8] sm:$0xff]
        %v681 = vld [vmem:[%s1 + $0x300] sm:$0xff]
        %v682 = vld [vmem:[%s1 + $0x308] sm:$0xff]
        %v683 = vld [vmem:[%s1 + $0x310] sm:$0xff]
        %v684 = vld [vmem:[%s1 + $0x318] sm:$0xff]
        %v685 = vld [vmem:[%s1 + $0x320] sm:$0xff]
        %v686 = vld [vmem:[%s1 + $0x328] sm:$0xff]
        %v687 = vld [vmem:[%s1 + $0x330] sm:$0xff]
        %v688 = vld [vmem:[%s1 + $0x338] sm:$0xff]
        %v689 = vld [vmem:[%s1 + $0x340] sm:$0xff]
        %v690 = vld [vmem:[%s1 + $0x348] sm:$0xff]
        %v691 = vld [vmem:[%s1 + $0x350] sm:$0xff]
        %v692 = vld [vmem:[%s1 + $0x358] sm:$0xff]
        %v693 = vld [vmem:[%s1 + $0x360] sm:$0xff]
        %v694 = vld [vmem:[%s1 + $0x368] sm:$0xff]
        %v695 = vld [vmem:[%s1 + $0x370] sm:$0xff]
        %v696 = vld [vmem:[%s1 + $0x378] sm:$0xff]
        %v697 = vld [vmem:[%s1 + $0x380] sm:$0xff]
        %v698 = vld [vmem:[%s1 + $0x388] sm:$0xff]
        %v699 = vld [vmem:[%s1 + $0x390] sm:$0xff]
        %v700 = vld [vmem:[%s1 + $0x398] sm:$0xff]
        %v701 = vld [vmem:[%s1 + $0x3a0] sm:$0xff]
        %v702 = vld [vmem:[%s1 + $0x3a8] sm:$0xff]
        %v703 = vld [vmem:[%s1 + $0x3b0] sm:$0xff]
        %v704 = vld [vmem:[%s1 + $0x3b8] sm:$0xff]
        %v705 = vld [vmem:[%s1 + $0x3c0] sm:$0xff]
        %v706 = vld [vmem:[%s1 + $0x3c8] sm:$0xff]
        %v707 = vld [vmem:[%s1 + $0x3d0] sm:$0xff]
        %v708 = vld [vmem:[%s1 + $0x3d8] sm:$0xff]
        %v709 = vld [vmem:[%s1 + $0x3e0] sm:$0xff]
        %v710 = vld [vmem:[%s1 + $0x3e8] sm:$0xff]
        %v711 = vld [vmem:[%s1 + $0x3f0] sm:$0xff]
        %v712 = vld [vmem:[%s1 + $0x3f8] sm:$0xff]
        %v713 = vld [vmem:[%s1 + $0x400] sm:$0xff]
        %v714 = vld [vmem:[%s1 + $0x408] sm:$0xff]
        %v715 = vld [vmem:[%s1 + $0x410] sm:$0xff]
        %v716 = vld [vmem:[%s1 + $0x418] sm:$0xff]
        %v717 = vld [vmem:[%s1 + $0x420] sm:$0xff]
        %v718 = vld [vmem:[%s1 + $0x428] sm:$0xff]
        %v719 = vld [vmem:[%s1 + $0x430] sm:$0xff]
        %v720 = vld [vmem:[%s1 + $0x438] sm:$0xff]
        %v721 = vld [vmem:[%s1 + $0x440] sm:$0xff]
        %v722 = vld [vmem:[%s1 + $0x448] sm:$0xff]
        %v723 = vld [vmem:[%s1 + $0x450] sm:$0xff]
        %v724 = vld [vmem:[%s1 + $0x458] sm:$0xff]
        %v725 = vld [vmem:[%s1 + $0x460] sm:$0xff]
        %v726 = vld [vmem:[%s1 + $0x468] sm:$0xff]
        %v727 = vld [vmem:[%s1 + $0x470] sm:$0xff]
        %v728 = vld [vmem:[%s1 + $0x478] sm:$0xff]
        %v729 = vld [vmem:[%s1 + $0x480] sm:$0xff]
        %v730 = vld [vmem:[%s1 + $0x488] sm:$0xff]
        %v731 = vld [vmem:[%s1 + $0x490] sm:$0xff]
        %v732 = vld [vmem:[%s1 + $0x498] sm:$0xff]
        %v733 = vld [vmem:[%s1 + $0x4a0] sm:$0xff]
        %v734 = vld [vmem:[%s1 + $0x4a8] sm:$0xff]
        %v735 = vld [vmem:[%s1 + $0x4b0] sm:$0xff]
        %v736 = vld [vmem:[%s1 + $0x4b8] sm:$0xff]
        %v737 = vld [vmem:[%s1 + $0x4c0] sm:$0xff]
        %v738 = vld [vmem:[%s1 + $0x4c8] sm:$0xff]
        %v739 = vld [vmem:[%s1 + $0x4d0] sm:$0xff]
        %v740 = vld [vmem:[%s1 + $0x4d8] sm:$0xff]
        %v741 = vld [vmem:[%s1 + $0x4e0] sm:$0xff]
        %v742 = vld [vmem:[%s1 + $0x4e8] sm:$0xff]
        %v743 = vld [vmem:[%s1 + $0x4f0] sm:$0xff]
        %v744 = vld [vmem:[%s1 + $0x4f8] sm:$0xff]
        %v745 = vld [vmem:[%s1 + $0x500] sm:$0xff]
        %v746 = vld [vmem:[%s1 + $0x508] sm:$0xff]
        %v747 = vld [vmem:[%s1 + $0x510] sm:$0xff]
        %v748 = vld [vmem:[%s1 + $0x518] sm:$0xff]
        %v749 = vld [vmem:[%s1 + $0x520] sm:$0xff]
        %v750 = vld [vmem:[%s1 + $0x528] sm:$0xff]
        %v751 = vld [vmem:[%s1 + $0x530] sm:$0xff]
        %v752 = vld [vmem:[%s1 + $0x538] sm:$0xff]
        %v753 = vld [vmem:[%s1 + $0x540] sm:$0xff]
        %v754 = vld [vmem:[%s1 + $0x548] sm:$0xff]
        %v755 = vld [vmem:[%s1 + $0x550] sm:$0xff]
        %v756 = vld [vmem:[%s1 + $0x558] sm:$0xff]
        %v757 = vld [vmem:[%s1 + $0x560] sm:$0xff]
        %v758 = vld [vmem:[%s1 + $0x568] sm:$0xff]
        %v759 = vld [vmem:[%s1 + $0x570] sm:$0xff]
        %v760 = vld [vmem:[%s1 + $0x578] sm:$0xff]
        %v761 = vld [vmem:[%s1 + $0x580] sm:$0xff]
        %v762 = vld [vmem:[%s1 + $0x588] sm:$0xff]
        %v763 = vld [vmem:[%s1 + $0x590] sm:$0xff]
        %v764 = vld [vmem:[%s1 + $0x598] sm:$0xff]
        %v765 = vld [vmem:[%s1 + $0x5a0] sm:$0xff]
        %v766 = vld [vmem:[%s1 + $0x5a8] sm:$0xff]
        %v767 = vld [vmem:[%s1 + $0x5b0] sm:$0xff]
        %v768 = vld [vmem:[%s1 + $0x5b8] sm:$0xff]
        %v769 = vld [vmem:[%s1 + $0x5c0] sm:$0xff]
        %v770 = vld [vmem:[%s1 + $0x5c8] sm:$0xff]
        %v771 = vld [vmem:[%s1 + $0x5d0] sm:$0xff]
        %v772 = vld [vmem:[%s1 + $0x5d8] sm:$0xff]
        %v773 = vld [vmem:[%s1 + $0x5e0] sm:$0xff]
        %v774 = vld [vmem:[%s1 + $0x5e8] sm:$0xff]
        %v775 = vld [vmem:[%s1 + $0x5f0] sm:$0xff]
        %v776 = vld [vmem:[%s1 + $0x5f8] sm:$0xff]
        %v777 = vld [vmem:[%s1 + $0x600] sm:$0xff]
        %v778 = vld [vmem:[%s1 + $0x608] sm:$0xff]
        %v779 = vld [vmem:[%s1 + $0x610] sm:$0xff]
        %v780 = vld [vmem:[%s1 + $0x618] sm:$0xff]
        %v781 = vld [vmem:[%s1 + $0x620] sm:$0xff]
        %v782 = vld [vmem:[%s1 + $0x628] sm:$0xff]
        %v783 = vld [vmem:[%s1 + $0x630] sm:$0xff]
        %v784 = vld [vmem:[%s1 + $0x638] sm:$0xff]
        %v785 = vld [vmem:[%s1 + $0x640] sm:$0xff]
        %v786 = vld [vmem:[%s1 + $0x648] sm:$0xff]
        %v787 = vld [vmem:[%s1 + $0x650] sm:$0xff]
        %v788 = vld [vmem:[%s1 + $0x658] sm:$0xff]
        %v789 = vld [vmem:[%s1 + $0x660] sm:$0xff]
        %v790 = vld [vmem:[%s1 + $0x668] sm:$0xff]
        %v791 = vld [vmem:[%s1 + $0x670] sm:$0xff]
        %v792 = vld [vmem:[%s1 + $0x678] sm:$0xff]
        %v793 = vld [vmem:[%s1 + $0x680] sm:$0xff]
        %v794 = vld [vmem:[%s1 + $0x688] sm:$0xff]
        %v795 = vld [vmem:[%s1 + $0x690] sm:$0xff]
        %v796 = vld [vmem:[%s1 + $0x698] sm:$0xff]
        %v797 = vld [vmem:[%s1 + $0x6a0] sm:$0xff]
        %v798 = vld [vmem:[%s1 + $0x6a8] sm:$0xff]
        %v799 = vld [vmem:[%s1 + $0x6b0] sm:$0xff]
        %v800 = vld [vmem:[%s1 + $0x6b8] sm:$0xff]
        %v801 = vld [vmem:[%s1 + $0x6c0] sm:$0xff]
        %v802 = vld [vmem:[%s1 + $0x6c8] sm:$0xff]
        %v803 = vld [vmem:[%s1 + $0x6d0] sm:$0xff]
        %v804 = vld [vmem:[%s1 + $0x6d8] sm:$0xff]
        %v805 = vld [vmem:[%s1 + $0x6e0] sm:$0xff]
        %v806 = vld [vmem:[%s1 + $0x6e8] sm:$0xff]
        %v807 = vld [vmem:[%s1 + $0x6f0] sm:$0xff]
        %v808 = vld [vmem:[%s1 + $0x6f8] sm:$0xff]
        %v809 = vld [vmem:[%s1 + $0x700] sm:$0xff]
        %v810 = vld [vmem:[%s1 + $0x708] sm:$0xff]
        %v811 = vld [vmem:[%s1 + $0x710] sm:$0xff]
        %v812 = vld [vmem:[%s1 + $0x718] sm:$0xff]
        %v813 = vld [vmem:[%s1 + $0x720] sm:$0xff]
        %v814 = vld [vmem:[%s1 + $0x728] sm:$0xff]
        %v815 = vld [vmem:[%s1 + $0x730] sm:$0xff]
        %v816 = vld [vmem:[%s1 + $0x738] sm:$0xff]
        %v817 = vld [vmem:[%s1 + $0x740] sm:$0xff]
        %v818 = vld [vmem:[%s1 + $0x748] sm:$0xff]
        %v819 = vld [vmem:[%s1 + $0x750] sm:$0xff]
        %v820 = vld [vmem:[%s1 + $0x758] sm:$0xff]
        %v821 = vld [vmem:[%s1 + $0x760] sm:$0xff]
        %v822 = vld [vmem:[%s1 + $0x768] sm:$0xff]
        %v823 = vld [vmem:[%s1 + $0x770] sm:$0xff]
        %v824 = vld [vmem:[%s1 + $0x778] sm:$0xff]
        %v825 = vld [vmem:[%s1 + $0x780] sm:$0xff]
        %v826 = vld [vmem:[%s1 + $0x788] sm:$0xff]
        %v827 = vld [vmem:[%s1 + $0x790] sm:$0xff]
        %v828 = vld [vmem:[%s1 + $0x798] sm:$0xff]
        %v829 = vld [vmem:[%s1 + $0x7a0] sm:$0xff]
        %v830 = vld [vmem:[%s1 + $0x7a8] sm:$0xff]
        %v831 = vld [vmem:[%s1 + $0x7b0] sm:$0xff]
        %v832 = vld [vmem:[%s1 + $0x7b8] sm:$0xff]
        %v833 = vld [vmem:[%s1 + $0x7c0] sm:$0xff]
        %v834 = vld [vmem:[%s1 + $0x7c8] sm:$0xff]
        %v835 = vld [vmem:[%s1 + $0x7d0] sm:$0xff]
        %v836 = vld [vmem:[%s1 + $0x7d8] sm:$0xff]
        %v837 = vld [vmem:[%s1 + $0x7e0] sm:$0xff]
        %v838 = vld [vmem:[%s1 + $0x7e8] sm:$0xff]
        %v839 = vld [vmem:[%s1 + $0x7f0] sm:$0xff]
        %v840 = vld [vmem:[%s1 + $0x7f8] sm:$0xff]
        %v841 = vld [vmem:[%s1 + $0x800] sm:$0xff]
        %v842 = vld [vmem:[%s1 + $0x808] sm:$0xff]
        %v843 = vld [vmem:[%s1 + $0x810] sm:$0xff]
        %v844 = vld [vmem:[%s1 + $0x818] sm:$0xff]
        %v845 = vld [vmem:[%s1 + $0x820] sm:$0xff]
        %v846 = vld [vmem:[%s1 + $0x828] sm:$0xff]
        %v847 = vld [vmem:[%s1 + $0x830] sm:$0xff]
        %v848 = vld [vmem:[%s1 + $0x838] sm:$0xff]
        %v849 = vld [vmem:[%s1 + $0x840] sm:$0xff]
        %v850 = vld [vmem:[%s1 + $0x848] sm:$0xff]
        %v851 = vld [vmem:[%s1 + $0x850] sm:$0xff]
        %v852 = vld [vmem:[%s1 + $0x858] sm:$0xff]
        %v853 = vld [vmem:[%s1 + $0x860] sm:$0xff]
        %v854 = vld [vmem:[%s1 + $0x868] sm:$0xff]
        %v855 = vld [vmem:[%s1 + $0x870] sm:$0xff]
        %v856 = vld [vmem:[%s1 + $0x878] sm:$0xff]
        %v857 = vld [vmem:[%s1 + $0x880] sm:$0xff]
        %v858 = vld [vmem:[%s1 + $0x888] sm:$0xff]
        %v859 = vld [vmem:[%s1 + $0x890] sm:$0xff]
        %v860 = vld [vmem:[%s1 + $0x898] sm:$0xff]
        %v861 = vld [vmem:[%s1 + $0x8a0] sm:$0xff]
        %v862 = vld [vmem:[%s1 + $0x8a8] sm:$0xff]
        %v863 = vld [vmem:[%s1 + $0x8b0] sm:$0xff]
        %v864 = vld [vmem:[%s1 + $0x8b8] sm:$0xff]
        %v865 = vld [vmem:[%s1 + $0x8c0] sm:$0xff]
        %v866 = vld [vmem:[%s1 + $0x8c8] sm:$0xff]
        %v867 = vld [vmem:[%s1 + $0x8d0] sm:$0xff]
        %v868 = vld [vmem:[%s1 + $0x8d8] sm:$0xff]
        %v869 = vld [vmem:[%s1 + $0x8e0] sm:$0xff]
        %v870 = vld [vmem:[%s1 + $0x8e8] sm:$0xff]
        %v871 = vld [vmem:[%s1 + $0x8f0] sm:$0xff]
        %v872 = vld [vmem:[%s1 + $0x8f8] sm:$0xff]
        %v873 = vld [vmem:[%s1 + $0x900] sm:$0xff]
        %v874 = vld [vmem:[%s1 + $0x908] sm:$0xff]
        %v875 = vld [vmem:[%s1 + $0x910] sm:$0xff]
        %v876 = vld [vmem:[%s1 + $0x918] sm:$0xff]
        %v877 = vld [vmem:[%s1 + $0x920] sm:$0xff]
        %v878 = vld [vmem:[%s1 + $0x928] sm:$0xff]
        %v879 = vld [vmem:[%s1 + $0x930] sm:$0xff]
        %v880 = vld [vmem:[%s1 + $0x938] sm:$0xff]
        %v881 = vld [vmem:[%s1 + $0x940] sm:$0xff]
        %v882 = vld [vmem:[%s1 + $0x948] sm:$0xff]
        %v883 = vld [vmem:[%s1 + $0x950] sm:$0xff]
        %v884 = vld [vmem:[%s1 + $0x958] sm:$0xff]
        %v885 = vld [vmem:[%s1 + $0x960] sm:$0xff]
        %v886 = vld [vmem:[%s1 + $0x968] sm:$0xff]
        %v887 = vld [vmem:[%s1 + $0x970] sm:$0xff]
        %v888 = vld [vmem:[%s1 + $0x978] sm:$0xff]
        %v889 = vld [vmem:[%s1 + $0x980] sm:$0xff]
        %v890 = vld [vmem:[%s1 + $0x988] sm:$0xff]
        %v891 = vld [vmem:[%s1 + $0x990] sm:$0xff]
        %v892 = vld [vmem:[%s1 + $0x998] sm:$0xff]
        %v893 = vld [vmem:[%s1 + $0x9a0] sm:$0xff]
        %v894 = vld [vmem:[%s1 + $0x9a8] sm:$0xff]
        %v895 = vld [vmem:[%s1 + $0x9b0] sm:$0xff]
        %v896 = vld [vmem:[%s1 + $0x9b8] sm:$0xff]
        %v897 = vld [vmem:[%s1 + $0x9c0] sm:$0xff]
        %v898 = vld [vmem:[%s1 + $0x9c8] sm:$0xff]
        %v899 = vld [vmem:[%s1 + $0x9d0] sm:$0xff]
        %v900 = vld [vmem:[%s1 + $0x9d8] sm:$0xff]
        %v901 = vld [vmem:[%s1 + $0x9e0] sm:$0xff]
        %v902 = vld [vmem:[%s1 + $0x9e8] sm:$0xff]
        %v903 = vld [vmem:[%s1 + $0x9f0] sm:$0xff]
        %v904 = vld [vmem:[%s1 + $0x9f8] sm:$0xff]
        %v905 = vld [vmem:[%s1 + $0xa00] sm:$0xff]
        %v906 = vld [vmem:[%s1 + $0xa08] sm:$0xff]
        %v907 = vld [vmem:[%s1 + $0xa10] sm:$0xff]
        %v908 = vld [vmem:[%s1 + $0xa18] sm:$0xff]
        %v909 = vld [vmem:[%s1 + $0xa20] sm:$0xff]
        %v910 = vld [vmem:[%s1 + $0xa28] sm:$0xff]
        %v911 = vld [vmem:[%s1 + $0xa30] sm:$0xff]
        %v912 = vld [vmem:[%s1 + $0xa38] sm:$0xff]
        %v913 = vld [vmem:[%s1 + $0xa40] sm:$0xff]
        %v914 = vld [vmem:[%s1 + $0xa48] sm:$0xff]
        %v915 = vld [vmem:[%s1 + $0xa50] sm:$0xff]
        %v916 = vld [vmem:[%s1 + $0xa58] sm:$0xff]
        %v917 = vld [vmem:[%s1 + $0xa60] sm:$0xff]
        %v918 = vld [vmem:[%s1 + $0xa68] sm:$0xff]
        %v919 = vld [vmem:[%s1 + $0xa70] sm:$0xff]
        %v920 = vld [vmem:[%s1 + $0xa78] sm:$0xff]
        %v921 = vld [vmem:[%s1 + $0xa80] sm:$0xff]
        %v922 = vld [vmem:[%s1 + $0xa88] sm:$0xff]
        %v923 = vld [vmem:[%s1 + $0xa90] sm:$0xff]
        %v924 = vld [vmem:[%s1 + $0xa98] sm:$0xff]
        %v925 = vld [vmem:[%s1 + $0xaa0] sm:$0xff]
        %v926 = vld [vmem:[%s1 + $0xaa8] sm:$0xff]
        %v927 = vld [vmem:[%s1 + $0xab0] sm:$0xff]
        %v928 = vld [vmem:[%s1 + $0xab8] sm:$0xff]
        %v929 = vld [vmem:[%s1 + $0xac0] sm:$0xff]
        %v930 = vld [vmem:[%s1 + $0xac8] sm:$0xff]
        %v931 = vld [vmem:[%s1 + $0xad0] sm:$0xff]
        %v932 = vld [vmem:[%s1 + $0xad8] sm:$0xff]
        %v933 = vld [vmem:[%s1 + $0xae0] sm:$0xff]
        %v934 = vld [vmem:[%s1 + $0xae8] sm:$0xff]
        %v935 = vld [vmem:[%s1 + $0xaf0] sm:$0xff]
        %v936 = vld [vmem:[%s1 + $0xaf8] sm:$0xff]
        %v937 = vld [vmem:[%s1 + $0xb00] sm:$0xff]
        %v938 = vld [vmem:[%s1 + $0xb08] sm:$0xff]
        %v939 = vld [vmem:[%s1 + $0xb10] sm:$0xff]
        %v940 = vld [vmem:[%s1 + $0xb18] sm:$0xff]
        %v941 = vld [vmem:[%s1 + $0xb20] sm:$0xff]
        %v942 = vld [vmem:[%s1 + $0xb28] sm:$0xff]
        %v943 = vld [vmem:[%s1 + $0xb30] sm:$0xff]
        %v944 = vld [vmem:[%s1 + $0xb38] sm:$0xff]
        %v945 = vld [vmem:[%s1 + $0xb40] sm:$0xff]
        %v946 = vld [vmem:[%s1 + $0xb48] sm:$0xff]
        %v947 = vld [vmem:[%s1 + $0xb50] sm:$0xff]
        %v948 = vld [vmem:[%s1 + $0xb58] sm:$0xff]
        %v949 = vld [vmem:[%s1 + $0xb60] sm:$0xff]
        %v950 = vld [vmem:[%s1 + $0xb68] sm:$0xff]
        %v951 = vld [vmem:[%s1 + $0xb70] sm:$0xff]
        %v952 = vld [vmem:[%s1 + $0xb78] sm:$0xff]
        %v953 = vld [vmem:[%s1 + $0xb80] sm:$0xff]
        %v954 = vld [vmem:[%s1 + $0xb88] sm:$0xff]
        %v955 = vld [vmem:[%s1 + $0xb90] sm:$0xff]
        %v956 = vld [vmem:[%s1 + $0xb98] sm:$0xff]
        %v957 = vld [vmem:[%s1 + $0xba0] sm:$0xff]
        %v958 = vld [vmem:[%s1 + $0xba8] sm:$0xff]
        %v959 = vld [vmem:[%s1 + $0xbb0] sm:$0xff]
        %v960 = vld [vmem:[%s1 + $0xbb8] sm:$0xff]
        %v961 = vld [vmem:[%s1 + $0xbc0] sm:$0xff]
        %v962 = vld [vmem:[%s1 + $0xbc8] sm:$0xff]
        %v963 = vld [vmem:[%s1 + $0xbd0] sm:$0xff]
        %v964 = vld [vmem:[%s1 + $0xbd8] sm:$0xff]
        %v965 = vld [vmem:[%s1 + $0xbe0] sm:$0xff]
        %v966 = vld [vmem:[%s1 + $0xbe8] sm:$0xff]
        %v967 = vld [vmem:[%s1 + $0xbf0] sm:$0xff]
        %v968 = vld [vmem:[%s1 + $0xbf8] sm:$0xff]
        %v969 = vld [vmem:[%s1 + $0xc00] sm:$0xff]
        %v970 = vld [vmem:[%s1 + $0xc08] sm:$0xff]
        %v971 = vld [vmem:[%s1 + $0xc10] sm:$0xff]
        %v972 = vld [vmem:[%s1 + $0xc18] sm:$0xff]
        %v973 = vld [vmem:[%s1 + $0xc20] sm:$0xff]
        %v974 = vld [vmem:[%s1 + $0xc28] sm:$0xff]
        %v975 = vld [vmem:[%s1 + $0xc30] sm:$0xff]
        %v976 = vld [vmem:[%s1 + $0xc38] sm:$0xff]
        %v977 = vld [vmem:[%s1 + $0xc40] sm:$0xff]
        %v978 = vld [vmem:[%s1 + $0xc48] sm:$0xff]
        %v979 = vld [vmem:[%s1 + $0xc50] sm:$0xff]
        %v980 = vld [vmem:[%s1 + $0xc58] sm:$0xff]
        %v981 = vld [vmem:[%s1 + $0xc60] sm:$0xff]
        %v982 = vld [vmem:[%s1 + $0xc68] sm:$0xff]
        %v983 = vld [vmem:[%s1 + $0xc70] sm:$0xff]
        %v984 = vld [vmem:[%s1 + $0xc78] sm:$0xff]
        %v985 = vld [vmem:[%s1 + $0xc80] sm:$0xff]
        %v986 = vld [vmem:[%s1 + $0xc88] sm:$0xff]
        %v987 = vld [vmem:[%s1 + $0xc90] sm:$0xff]
        %v988 = vld [vmem:[%s1 + $0xc98] sm:$0xff]
        %v989 = vld [vmem:[%s1 + $0xca0] sm:$0xff]
        %v990 = vld [vmem:[%s1 + $0xca8] sm:$0xff]
        %v991 = vld [vmem:[%s1 + $0xcb0] sm:$0xff]
        %v992 = vld [vmem:[%s1 + $0xcb8] sm:$0xff]
        %v993 = vld [vmem:[%s1 + $0xcc0] sm:$0xff]
        %v994 = vld [vmem:[%s1 + $0xcc8] sm:$0xff]
        %v995 = vld [vmem:[%s1 + $0xcd0] sm:$0xff]
        %v996 = vld [vmem:[%s1 + $0xcd8] sm:$0xff]
        %v997 = vld [vmem:[%s1 + $0xce0] sm:$0xff]
        %v998 = vld [vmem:[%s1 + $0xce8] sm:$0xff]
        %v999 = vld [vmem:[%s1 + $0xcf0] sm:$0xff]
        %v1000 = vld [vmem:[%s1 + $0xcf8] sm:$0xff]
        %v1001 = vld [vmem:[%s1 + $0xd00] sm:$0xff]
        %v1002 = vld [vmem:[%s1 + $0xd08] sm:$0xff]
        %v1003 = vld [vmem:[%s1 + $0xd10] sm:$0xff]
        %v1004 = vld [vmem:[%s1 + $0xd18] sm:$0xff]
        %v1005 = vld [vmem:[%s1 + $0xd20] sm:$0xff]
        %v1006 = vld [vmem:[%s1 + $0xd28] sm:$0xff]
        %v1007 = vld [vmem:[%s1 + $0xd30] sm:$0xff]
        %v1008 = vld [vmem:[%s1 + $0xd38] sm:$0xff]
        %v1009 = vld [vmem:[%s1 + $0xd40] sm:$0xff]
        %v1010 = vld [vmem:[%s1 + $0xd48] sm:$0xff]
        %v1011 = vld [vmem:[%s1 + $0xd50] sm:$0xff]
        %v1012 = vld [vmem:[%s1 + $0xd58] sm:$0xff]
        %v1013 = vld [vmem:[%s1 + $0xd60] sm:$0xff]
        %v1014 = vld [vmem:[%s1 + $0xd68] sm:$0xff]
        %v1015 = vld [vmem:[%s1 + $0xd70] sm:$0xff]
        %v1016 = vld [vmem:[%s1 + $0xd78] sm:$0xff]
        %v1017 = vld [vmem:[%s1 + $0xd80] sm:$0xff]
        %v1018 = vld [vmem:[%s1 + $0xd88] sm:$0xff]
        %v1019 = vld [vmem:[%s1 + $0xd90] sm:$0xff]
        %v1020 = vld [vmem:[%s1 + $0xd98] sm:$0xff]
        %v1021 = vld [vmem:[%s1 + $0xda0] sm:$0xff]
        %v1022 = vld [vmem:[%s1 + $0xda8] sm:$0xff]
        %v1023 = vld [vmem:[%s1 + $0xdb0] sm:$0xff]
        %v1024 = vld [vmem:[%s1 + $0xdb8] sm:$0xff]
        %v1025 = vld [vmem:[%s1 + $0xdc0] sm:$0xff]
        %v1026 = vld [vmem:[%s1 + $0xdc8] sm:$0xff]
        %v1027 = vld [vmem:[%s1 + $0xdd0] sm:$0xff]
        %v1028 = vld [vmem:[%s1 + $0xdd8] sm:$0xff]
        %v1029 = vld [vmem:[%s1 + $0xde0] sm:$0xff]
        %v1030 = vld [vmem:[%s1 + $0xde8] sm:$0xff]
        %v1031 = vld [vmem:[%s1 + $0xdf0] sm:$0xff]
        %v1032 = vld [vmem:[%s1 + $0xdf8] sm:$0xff]
        %v1033 = vld [vmem:[%s1 + $0xe00] sm:$0xff]
        %v1034 = vld [vmem:[%s1 + $0xe08] sm:$0xff]
        %v1035 = vld [vmem:[%s1 + $0xe10] sm:$0xff]
        %v1036 = vld [vmem:[%s1 + $0xe18] sm:$0xff]
        %v1037 = vld [vmem:[%s1 + $0xe20] sm:$0xff]
        %v1038 = vld [vmem:[%s1 + $0xe28] sm:$0xff]
        %v1039 = vld [vmem:[%s1 + $0xe30] sm:$0xff]
        %v1040 = vld [vmem:[%s1 + $0xe38] sm:$0xff]
        %v1041 = vld [vmem:[%s1 + $0xe40] sm:$0xff]
        %v1042 = vld [vmem:[%s1 + $0xe48] sm:$0xff]
        %v1043 = vld [vmem:[%s1 + $0xe50] sm:$0xff]
        %v1044 = vld [vmem:[%s1 + $0xe58] sm:$0xff]
        %v1045 = vld [vmem:[%s1 + $0xe60] sm:$0xff]
        %v1046 = vld [vmem:[%s1 + $0xe68] sm:$0xff]
        %v1047 = vld [vmem:[%s1 + $0xe70] sm:$0xff]
        %v1048 = vld [vmem:[%s1 + $0xe78] sm:$0xff]
        %v1049 = vld [vmem:[%s1 + $0xe80] sm:$0xff]
        %v1050 = vld [vmem:[%s1 + $0xe88] sm:$0xff]
        %v1051 = vld [vmem:[%s1 + $0xe90] sm:$0xff]
        %v1052 = vld [vmem:[%s1 + $0xe98] sm:$0xff]
        %v1053 = vld [vmem:[%s1 + $0xea0] sm:$0xff]
        %v1054 = vld [vmem:[%s1 + $0xea8] sm:$0xff]
        %v1055 = vld [vmem:[%s1 + $0xeb0] sm:$0xff]
        %v1056 = vld [vmem:[%s1 + $0xeb8] sm:$0xff]
        %v1057 = vld [vmem:[%s1 + $0xec0] sm:$0xff]
        %v1058 = vld [vmem:[%s1 + $0xec8] sm:$0xff]
        %v1059 = vld [vmem:[%s1 + $0xed0] sm:$0xff]
        %v1060 = vld [vmem:[%s1 + $0xed8] sm:$0xff]
        %v1061 = vld [vmem:[%s1 + $0xee0] sm:$0xff]
        %v1062 = vld [vmem:[%s1 + $0xee8] sm:$0xff]
        %v1063 = vld [vmem:[%s1 + $0xef0] sm:$0xff]
        %v1064 = vld [vmem:[%s1 + $0xef8] sm:$0xff]
        %v1065 = vld [vmem:[%s1 + $0xf00] sm:$0xff]
        %v1066 = vld [vmem:[%s1 + $0xf08] sm:$0xff]
        %v1067 = vld [vmem:[%s1 + $0xf10] sm:$0xff]
        %v1068 = vld [vmem:[%s1 + $0xf18] sm:$0xff]
        %v1069 = vld [vmem:[%s1 + $0xf20] sm:$0xff]
        %v1070 = vld [vmem:[%s1 + $0xf28] sm:$0xff]
        %v1071 = vld [vmem:[%s1 + $0xf30] sm:$0xff]
        %v1072 = vld [vmem:[%s1 + $0xf38] sm:$0xff]
        %v1073 = vld [vmem:[%s1 + $0xf40] sm:$0xff]
        %v1074 = vld [vmem:[%s1 + $0xf48] sm:$0xff]
        %v1075 = vld [vmem:[%s1 + $0xf50] sm:$0xff]
        %v1076 = vld [vmem:[%s1 + $0xf58] sm:$0xff]
        %v1077 = vld [vmem:[%s1 + $0xf60] sm:$0xff]
        %v1078 = vld [vmem:[%s1 + $0xf68] sm:$0xff]
        %v1079 = vld [vmem:[%s1 + $0xf70] sm:$0xff]
        %v1080 = vld [vmem:[%s1 + $0xf78] sm:$0xff]
        %v1081 = vld [vmem:[%s1 + $0xf80] sm:$0xff]
        %v1082 = vld [vmem:[%s1 + $0xf88] sm:$0xff]
        %v1083 = vld [vmem:[%s1 + $0xf90] sm:$0xff]
        %v1084 = vld [vmem:[%s1 + $0xf98] sm:$0xff]
        %v1085 = vld [vmem:[%s1 + $0xfa0] sm:$0xff]
        %v1086 = vld [vmem:[%s1 + $0xfa8] sm:$0xff]
        %v1087 = vld [vmem:[%s1 + $0xfb0] sm:$0xff]
        %v1088 = vld [vmem:[%s1 + $0xfb8] sm:$0xff]
        %v1089 = vld [vmem:[%s1 + $0xfc0] sm:$0xff]
        %v1090 = vld [vmem:[%s1 + $0xfc8] sm:$0xff]
        %v1091 = vld [vmem:[%s1 + $0xfd0] sm:$0xff]
        %v1092 = vld [vmem:[%s1 + $0xfd8] sm:$0xff]
        %v1093 = vld [vmem:[%s1 + $0xfe0] sm:$0xff]
        %v1094 = vld [vmem:[%s1 + $0xfe8] sm:$0xff]
        %v1095 = vld [vmem:[%s1 + $0xff0] sm:$0xff]
        %v1096 = vld [vmem:[%s1 + $0xff8] sm:$0xff]
        %v1097 = vld [vmem:[%s0] ss:$4 sm:$0xff]
        %s1098 = scalar_lea.vmem %s0, 32
        %v1099 = vld [vmem:[%s1098] ss:$4 sm:$0xff]
        %v1102 = vcombine.low %v1097, %v1099
        %v1103 = vcombine.high %v1097, %v1099
        %v1105 = vunpack.c.l.s4 1966171168
        %v1106 = vunpack.c.0.s8 %v1105
        %v1107 = vlaneseq
        %v1108 = vshrl.u32 %v1107, 7
        %v1109 = vsub.s32 %v1106, %v1108
        %v1110 = vrot.slane %v1102, %v1109
        %v1112 = vunpack.c.l.s4 1966171168
        %v1113 = vunpack.c.0.s8 %v1112
        %v1114 = vlaneseq
        %v1115 = vshrl.u32 %v1114, 7
        %v1116 = vsub.s32 %v1113, %v1115
        %v1117 = vrot.slane %v1103, %v1116
        %v1118 = vcombine.high %v1110, %v1110
        %v1119 = vcombine.high %v1117, %v1117
        %v1121 = vunpack.c.l.s4 1966171168
        %v1122 = vunpack.c.0.s8 %v1121
        %v1123 = vlaneseq
        %v1124 = vshrl.u32 %v1123, 7
        %v1125 = vsub.s32 %v1122, %v1124
        %v1126 = vrot.slane %v1110, %v1125
        %v1128 = vunpack.c.l.s4 1966171168
        %v1129 = vunpack.c.0.s8 %v1128
        %v1130 = vlaneseq
        %v1131 = vshrl.u32 %v1130, 7
        %v1132 = vsub.s32 %v1129, %v1131
        %v1133 = vrot.slane %v1117, %v1132
        %v1135 = vunpack.c.l.s4 1966171168
        %v1136 = vunpack.c.0.s8 %v1135
        %v1137 = vlaneseq
        %v1138 = vshrl.u32 %v1137, 7
        %v1139 = vsub.s32 %v1136, %v1138
        %v1140 = vrot.slane %v1118, %v1139
        %v1142 = vunpack.c.l.s4 1966171168
        %v1143 = vunpack.c.0.s8 %v1142
        %v1144 = vlaneseq
        %v1145 = vshrl.u32 %v1144, 7
        %v1146 = vsub.s32 %v1143, %v1145
        %v1147 = vrot.slane %v1119, %v1146
        %v1148 = vcombine.high %v1126, %v1126
        %v1149 = vcombine.high %v1133, %v1133
        %v1150 = vcombine.high %v1140, %v1140
        %v1151 = vcombine.high %v1147, %v1147
        %1160 = vmatprep.subr.mxu0 %v586
        %1161 = vmatpush1.msra.mxu0 %v585
        %1162 = vmatprep.subr.mxu0 %v590
        %1163 = vmatpush1.msra.mxu0 %v589
        %1164 = vmatprep.subr.mxu0 %v594
        %1165 = vmatpush1.msra.mxu0 %v593
        %1166 = vmatprep.subr.mxu0 %v598
        %1167 = vmatpush1.msra.mxu0 %v597
        %1168 = vmatprep.subr.mxu0 %v602
        %1169 = vmatpush1.msra.mxu0 %v601
        %1170 = vmatprep.subr.mxu0 %v606
        %1171 = vmatpush1.msra.mxu0 %v605
        %1172 = vmatprep.subr.mxu0 %v610
        %1173 = vmatpush1.msra.mxu0 %v609
        %1174 = vmatprep.subr.mxu0 %v614
        %1175 = vmatpush1.msra.mxu0 %v613
        %1176 = vmatprep.subr.mxu0 %v618
        %1177 = vmatpush1.msra.mxu0 %v617
        %1178 = vmatprep.subr.mxu0 %v622
        %1179 = vmatpush1.msra.mxu0 %v621
        %1180 = vmatprep.subr.mxu0 %v626
        %1181 = vmatpush1.msra.mxu0 %v625
        %1182 = vmatprep.subr.mxu0 %v630
        %1183 = vmatpush1.msra.mxu0 %v629
        %1184 = vmatprep.subr.mxu0 %v634
        %1185 = vmatpush1.msra.mxu0 %v633
        %1186 = vmatprep.subr.mxu0 %v638
        %1187 = vmatpush1.msra.mxu0 %v637
        %1188 = vmatprep.subr.mxu0 %v642
        %1189 = vmatpush1.msra.mxu0 %v641
        %1190 = vmatprep.subr.mxu0 %v646
        %1191 = vmatpush1.msra.mxu0 %v645
        %1192 = vmatprep.subr.mxu0 %v650
        %1193 = vmatpush1.msra.mxu0 %v649
        %1194 = vmatprep.subr.mxu0 %v654
        %1195 = vmatpush1.msra.mxu0 %v653
        %1196 = vmatprep.subr.mxu0 %v658
        %1197 = vmatpush1.msra.mxu0 %v657
        %1198 = vmatprep.subr.mxu0 %v662
        %1199 = vmatpush1.msra.mxu0 %v661
        %1200 = vmatprep.subr.mxu0 %v666
        %1201 = vmatpush1.msra.mxu0 %v665
        %1202 = vmatprep.subr.mxu0 %v670
        %1203 = vmatpush1.msra.mxu0 %v669
        %1204 = vmatprep.subr.mxu0 %v674
        %1205 = vmatpush1.msra.mxu0 %v673
        %1206 = vmatprep.subr.mxu0 %v678
        %1207 = vmatpush1.msra.mxu0 %v677
        %1208 = vmatprep.subr.mxu0 %v682
        %1209 = vmatpush1.msra.mxu0 %v681
        %1210 = vmatprep.subr.mxu0 %v686
        %1211 = vmatpush1.msra.mxu0 %v685
        %1212 = vmatprep.subr.mxu0 %v690
        %1213 = vmatpush1.msra.mxu0 %v689
        %1214 = vmatprep.subr.mxu0 %v694
        %1215 = vmatpush1.msra.mxu0 %v693
        %1216 = vmatprep.subr.mxu0 %v698
        %1217 = vmatpush1.msra.mxu0 %v697
        %1218 = vmatprep.subr.mxu0 %v702
        %1219 = vmatpush1.msra.mxu0 %v701
        %1220 = vmatprep.subr.mxu0 %v706
        %1221 = vmatpush1.msra.mxu0 %v705
        %1222 = vmatprep.subr.mxu0 %v710
        %1223 = vmatpush1.msra.mxu0 %v709
        %1224 = vmatprep.mubr.f32.mxu0 %v1140
        %1225 = vmatmul.mubr.f32.gmra.mrb[0].mxu0 %v1126
        %v1226 = vpop.f32.mrb[0].mxu0
        %v1227 = vadd.f32 0.0, %v1226
        %v1228 = vpop.f32.mrb[0].mxu0
        %v1229 = vadd.f32 0.0, %v1228
        %1230 = vdwg.mxu0
        %1231 = vmatprep.subr.mxu0 %v714
        %1232 = vmatpush1.msra.mxu0 %v713
        %1233 = vmatprep.subr.mxu0 %v718
        %1234 = vmatpush1.msra.mxu0 %v717
        %1235 = vmatprep.subr.mxu0 %v722
        %1236 = vmatpush1.msra.mxu0 %v721
        %1237 = vmatprep.subr.mxu0 %v726
        %1238 = vmatpush1.msra.mxu0 %v725
        %1239 = vmatprep.subr.mxu0 %v730
        %1240 = vmatpush1.msra.mxu0 %v729
        %1241 = vmatprep.subr.mxu0 %v734
        %1242 = vmatpush1.msra.mxu0 %v733
        %1243 = vmatprep.subr.mxu0 %v738
        %1244 = vmatpush1.msra.mxu0 %v737
        %1245 = vmatprep.subr.mxu0 %v742
        %1246 = vmatpush1.msra.mxu0 %v741
        %1247 = vmatprep.subr.mxu0 %v746
        %1248 = vmatpush1.msra.mxu0 %v745
        %1249 = vmatprep.subr.mxu0 %v750
        %1250 = vmatpush1.msra.mxu0 %v749
        %1251 = vmatprep.subr.mxu0 %v754
        %1252 = vmatpush1.msra.mxu0 %v753
        %1253 = vmatprep.subr.mxu0 %v758
        %1254 = vmatpush1.msra.mxu0 %v757
        %1255 = vmatprep.subr.mxu0 %v762
        %1256 = vmatpush1.msra.mxu0 %v761
        %1257 = vmatprep.subr.mxu0 %v766
        %1258 = vmatpush1.msra.mxu0 %v765
        %1259 = vmatprep.subr.mxu0 %v770
        %1260 = vmatpush1.msra.mxu0 %v769
        %1261 = vmatprep.subr.mxu0 %v774
        %1262 = vmatpush1.msra.mxu0 %v773
        %1263 = vmatprep.subr.mxu0 %v778
        %1264 = vmatpush1.msra.mxu0 %v777
        %1265 = vmatprep.subr.mxu0 %v782
        %1266 = vmatpush1.msra.mxu0 %v781
        %1267 = vmatprep.subr.mxu0 %v786
        %1268 = vmatpush1.msra.mxu0 %v785
        %1269 = vmatprep.subr.mxu0 %v790
        %1270 = vmatpush1.msra.mxu0 %v789
        %1271 = vmatprep.subr.mxu0 %v794
        %1272 = vmatpush1.msra.mxu0 %v793
        %1273 = vmatprep.subr.mxu0 %v798
        %1274 = vmatpush1.msra.mxu0 %v797
        %1275 = vmatprep.subr.mxu0 %v802
        %1276 = vmatpush1.msra.mxu0 %v801
        %1277 = vmatprep.subr.mxu0 %v806
        %1278 = vmatpush1.msra.mxu0 %v805
        %1279 = vmatprep.subr.mxu0 %v810
        %1280 = vmatpush1.msra.mxu0 %v809
        %1281 = vmatprep.subr.mxu0 %v814
        %1282 = vmatpush1.msra.mxu0 %v813
        %1283 = vmatprep.subr.mxu0 %v818
        %1284 = vmatpush1.msra.mxu0 %v817
        %1285 = vmatprep.subr.mxu0 %v822
        %1286 = vmatpush1.msra.mxu0 %v821
        %1287 = vmatprep.subr.mxu0 %v826
        %1288 = vmatpush1.msra.mxu0 %v825
        %1289 = vmatprep.subr.mxu0 %v830
        %1290 = vmatpush1.msra.mxu0 %v829
        %1291 = vmatprep.subr.mxu0 %v834
        %1292 = vmatpush1.msra.mxu0 %v833
        %1293 = vmatprep.subr.mxu0 %v838
        %1294 = vmatpush1.msra.mxu0 %v837
        %1295 = vmatprep.mubr.f32.mxu0 %v1150
        %1296 = vmatmul.mubr.f32.gmra.mrb[0].mxu0 %v1148
        %v1297 = vpop.f32.mrb[0].mxu0
        %v1298 = vadd.f32 %v1227, %v1297
        %v1299 = vpop.f32.mrb[0].mxu0
        %v1300 = vadd.f32 %v1229, %v1299
        %1301 = vdwg.mxu0
        %1302 = vmatprep.subr.mxu0 %v842
        %1303 = vmatpush1.msra.mxu0 %v841
        %1304 = vmatprep.subr.mxu0 %v846
        %1305 = vmatpush1.msra.mxu0 %v845
        %1306 = vmatprep.subr.mxu0 %v850
        %1307 = vmatpush1.msra.mxu0 %v849
        %1308 = vmatprep.subr.mxu0 %v854
        %1309 = vmatpush1.msra.mxu0 %v853
        %1310 = vmatprep.subr.mxu0 %v858
        %1311 = vmatpush1.msra.mxu0 %v857
        %1312 = vmatprep.subr.mxu0 %v862
        %1313 = vmatpush1.msra.mxu0 %v861
        %1314 = vmatprep.subr.mxu0 %v866
        %1315 = vmatpush1.msra.mxu0 %v865
        %1316 = vmatprep.subr.mxu0 %v870
        %1317 = vmatpush1.msra.mxu0 %v869
        %1318 = vmatprep.subr.mxu0 %v874
        %1319 = vmatpush1.msra.mxu0 %v873
        %1320 = vmatprep.subr.mxu0 %v878
        %1321 = vmatpush1.msra.mxu0 %v877
        %1322 = vmatprep.subr.mxu0 %v882
        %1323 = vmatpush1.msra.mxu0 %v881
        %1324 = vmatprep.subr.mxu0 %v886
        %1325 = vmatpush1.msra.mxu0 %v885
        %1326 = vmatprep.subr.mxu0 %v890
        %1327 = vmatpush1.msra.mxu0 %v889
        %1328 = vmatprep.subr.mxu0 %v894
        %1329 = vmatpush1.msra.mxu0 %v893
        %1330 = vmatprep.subr.mxu0 %v898
        %1331 = vmatpush1.msra.mxu0 %v897
        %1332 = vmatprep.subr.mxu0 %v902
        %1333 = vmatpush1.msra.mxu0 %v901
        %1334 = vmatprep.subr.mxu0 %v906
        %1335 = vmatpush1.msra.mxu0 %v905
        %1336 = vmatprep.subr.mxu0 %v910
        %1337 = vmatpush1.msra.mxu0 %v909
        %1338 = vmatprep.subr.mxu0 %v914
        %1339 = vmatpush1.msra.mxu0 %v913
        %1340 = vmatprep.subr.mxu0 %v918
        %1341 = vmatpush1.msra.mxu0 %v917
        %1342 = vmatprep.subr.mxu0 %v922
        %1343 = vmatpush1.msra.mxu0 %v921
        %1344 = vmatprep.subr.mxu0 %v926
        %1345 = vmatpush1.msra.mxu0 %v925
        %1346 = vmatprep.subr.mxu0 %v930
        %1347 = vmatpush1.msra.mxu0 %v929
        %1348 = vmatprep.subr.mxu0 %v934
        %1349 = vmatpush1.msra.mxu0 %v933
        %1350 = vmatprep.subr.mxu0 %v938
        %1351 = vmatpush1.msra.mxu0 %v937
        %1352 = vmatprep.subr.mxu0 %v942
        %1353 = vmatpush1.msra.mxu0 %v941
        %1354 = vmatprep.subr.mxu0 %v946
        %1355 = vmatpush1.msra.mxu0 %v945
        %1356 = vmatprep.subr.mxu0 %v950
        %1357 = vmatpush1.msra.mxu0 %v949
        %1358 = vmatprep.subr.mxu0 %v954
        %1359 = vmatpush1.msra.mxu0 %v953
        %1360 = vmatprep.subr.mxu0 %v958
        %1361 = vmatpush1.msra.mxu0 %v957
        %1362 = vmatprep.subr.mxu0 %v962
        %1363 = vmatpush1.msra.mxu0 %v961
        %1364 = vmatprep.subr.mxu0 %v966
        %1365 = vmatpush1.msra.mxu0 %v965
        %1366 = vmatprep.mubr.f32.mxu0 %v1147
        %1367 = vmatmul.mubr.f32.gmra.mrb[0].mxu0 %v1133
        %v1368 = vpop.f32.mrb[0].mxu0
        %v1369 = vadd.f32 %v1298, %v1368
        %v1370 = vpop.f32.mrb[0].mxu0
        %v1371 = vadd.f32 %v1300, %v1370
        %1372 = vdwg.mxu0
        %1373 = vmatprep.subr.mxu0 %v970
        %1374 = vmatpush1.msra.mxu0 %v969
        %1375 = vmatprep.subr.mxu0 %v974
        %1376 = vmatpush1.msra.mxu0 %v973
        %1377 = vmatprep.subr.mxu0 %v978
        %1378 = vmatpush1.msra.mxu0 %v977
        %1379 = vmatprep.subr.mxu0 %v982
        %1380 = vmatpush1.msra.mxu0 %v981
        %1381 = vmatprep.subr.mxu0 %v986
        %1382 = vmatpush1.msra.mxu0 %v985
        %1383 = vmatprep.subr.mxu0 %v990
        %1384 = vmatpush1.msra.mxu0 %v989
        %1385 = vmatprep.subr.mxu0 %v994
        %1386 = vmatpush1.msra.mxu0 %v993
        %1387 = vmatprep.subr.mxu0 %v998
        %1388 = vmatpush1.msra.mxu0 %v997
        %1389 = vmatprep.subr.mxu0 %v1002
        %1390 = vmatpush1.msra.mxu0 %v1001
        %1391 = vmatprep.subr.mxu0 %v1006
        %1392 = vmatpush1.msra.mxu0 %v1005
        %1393 = vmatprep.subr.mxu0 %v1010
        %1394 = vmatpush1.msra.mxu0 %v1009
        %1395 = vmatprep.subr.mxu0 %v1014
        %1396 = vmatpush1.msra.mxu0 %v1013
        %1397 = vmatprep.subr.mxu0 %v1018
        %1398 = vmatpush1.msra.mxu0 %v1017
        %1399 = vmatprep.subr.mxu0 %v1022
        %1400 = vmatpush1.msra.mxu0 %v1021
        %1401 = vmatprep.subr.mxu0 %v1026
        %1402 = vmatpush1.msra.mxu0 %v1025
        %1403 = vmatprep.subr.mxu0 %v1030
        %1404 = vmatpush1.msra.mxu0 %v1029
        %1405 = vmatprep.subr.mxu0 %v1034
        %1406 = vmatpush1.msra.mxu0 %v1033
        %1407 = vmatprep.subr.mxu0 %v1038
        %1408 = vmatpush1.msra.mxu0 %v1037
        %1409 = vmatprep.subr.mxu0 %v1042
        %1410 = vmatpush1.msra.mxu0 %v1041
        %1411 = vmatprep.subr.mxu0 %v1046
        %1412 = vmatpush1.msra.mxu0 %v1045
        %1413 = vmatprep.subr.mxu0 %v1050
        %1414 = vmatpush1.msra.mxu0 %v1049
        %1415 = vmatprep.subr.mxu0 %v1054
        %1416 = vmatpush1.msra.mxu0 %v1053
        %1417 = vmatprep.subr.mxu0 %v1058
        %1418 = vmatpush1.msra.mxu0 %v1057
        %1419 = vmatprep.subr.mxu0 %v1062
        %1420 = vmatpush1.msra.mxu0 %v1061
        %1421 = vmatprep.subr.mxu0 %v1066
        %1422 = vmatpush1.msra.mxu0 %v1065
        %1423 = vmatprep.subr.mxu0 %v1070
        %1424 = vmatpush1.msra.mxu0 %v1069
        %1425 = vmatprep.subr.mxu0 %v1074
        %1426 = vmatpush1.msra.mxu0 %v1073
        %1427 = vmatprep.subr.mxu0 %v1078
        %1428 = vmatpush1.msra.mxu0 %v1077
        %1429 = vmatprep.subr.mxu0 %v1082
        %1430 = vmatpush1.msra.mxu0 %v1081
        %1431 = vmatprep.subr.mxu0 %v1086
        %1432 = vmatpush1.msra.mxu0 %v1085
        %1433 = vmatprep.subr.mxu0 %v1090
        %1434 = vmatpush1.msra.mxu0 %v1089
        %1435 = vmatprep.subr.mxu0 %v1094
        %1436 = vmatpush1.msra.mxu0 %v1093
        %1437 = vmatprep.mubr.f32.mxu0 %v1151
        %1438 = vmatmul.mubr.f32.gmra.mrb[0].mxu0 %v1149
        %v1439 = vpop.f32.mrb[0].mxu0
        %v1440 = vadd.f32 %v1369, %v1439
        %v1441 = vpop.f32.mrb[0].mxu0
        %v1442 = vadd.f32 %v1371, %v1441
        %1443 = vdwg.mxu0
        %1444 = vmatprep.subr.mxu0 %v588
        %1445 = vmatpush1.msra.mxu0 %v587
        %1446 = vmatprep.subr.mxu0 %v592
        %1447 = vmatpush1.msra.mxu0 %v591
        %1448 = vmatprep.subr.mxu0 %v596
        %1449 = vmatpush1.msra.mxu0 %v595
        %1450 = vmatprep.subr.mxu0 %v600
        %1451 = vmatpush1.msra.mxu0 %v599
        %1452 = vmatprep.subr.mxu0 %v604
        %1453 = vmatpush1.msra.mxu0 %v603
        %1454 = vmatprep.subr.mxu0 %v608
        %1455 = vmatpush1.msra.mxu0 %v607
        %1456 = vmatprep.subr.mxu0 %v612
        %1457 = vmatpush1.msra.mxu0 %v611
        %1458 = vmatprep.subr.mxu0 %v616
        %1459 = vmatpush1.msra.mxu0 %v615
        %1460 = vmatprep.subr.mxu0 %v620
        %1461 = vmatpush1.msra.mxu0 %v619
        %1462 = vmatprep.subr.mxu0 %v624
        %1463 = vmatpush1.msra.mxu0 %v623
        %1464 = vmatprep.subr.mxu0 %v628
        %1465 = vmatpush1.msra.mxu0 %v627
        %1466 = vmatprep.subr.mxu0 %v632
        %1467 = vmatpush1.msra.mxu0 %v631
        %1468 = vmatprep.subr.mxu0 %v636
        %1469 = vmatpush1.msra.mxu0 %v635
        %1470 = vmatprep.subr.mxu0 %v640
        %1471 = vmatpush1.msra.mxu0 %v639
        %1472 = vmatprep.subr.mxu0 %v644
        %1473 = vmatpush1.msra.mxu0 %v643
        %1474 = vmatprep.subr.mxu0 %v648
        %1475 = vmatpush1.msra.mxu0 %v647
        %1476 = vmatprep.subr.mxu0 %v652
        %1477 = vmatpush1.msra.mxu0 %v651
        %1478 = vmatprep.subr.mxu0 %v656
        %1479 = vmatpush1.msra.mxu0 %v655
        %1480 = vmatprep.subr.mxu0 %v660
        %1481 = vmatpush1.msra.mxu0 %v659
        %1482 = vmatprep.subr.mxu0 %v664
        %1483 = vmatpush1.msra.mxu0 %v663
        %1484 = vmatprep.subr.mxu0 %v668
        %1485 = vmatpush1.msra.mxu0 %v667
        %1486 = vmatprep.subr.mxu0 %v672
        %1487 = vmatpush1.msra.mxu0 %v671
        %1488 = vmatprep.subr.mxu0 %v676
        %1489 = vmatpush1.msra.mxu0 %v675
        %1490 = vmatprep.subr.mxu0 %v680
        %1491 = vmatpush1.msra.mxu0 %v679
        %1492 = vmatprep.subr.mxu0 %v684
        %1493 = vmatpush1.msra.mxu0 %v683
        %1494 = vmatprep.subr.mxu0 %v688
        %1495 = vmatpush1.msra.mxu0 %v687
        %1496 = vmatprep.subr.mxu0 %v692
        %1497 = vmatpush1.msra.mxu0 %v691
        %1498 = vmatprep.subr.mxu0 %v696
        %1499 = vmatpush1.msra.mxu0 %v695
        %1500 = vmatprep.subr.mxu0 %v700
        %1501 = vmatpush1.msra.mxu0 %v699
        %1502 = vmatprep.subr.mxu0 %v704
        %1503 = vmatpush1.msra.mxu0 %v703
        %1504 = vmatprep.subr.mxu0 %v708
        %1505 = vmatpush1.msra.mxu0 %v707
        %1506 = vmatprep.subr.mxu0 %v712
        %1507 = vmatpush1.msra.mxu0 %v711
        %1508 = vmatprep.mubr.f32.mxu0 %v1140
        %1509 = vmatmul.mubr.f32.gmra.mrb[0].mxu0 %v1126
        %v1510 = vpop.f32.mrb[0].mxu0
        %v1511 = vadd.f32 0.0, %v1510
        %v1512 = vpop.f32.mrb[0].mxu0
        %v1513 = vadd.f32 0.0, %v1512
        %1514 = vdwg.mxu0
        %1515 = vmatprep.subr.mxu0 %v716
        %1516 = vmatpush1.msra.mxu0 %v715
        %1517 = vmatprep.subr.mxu0 %v720
        %1518 = vmatpush1.msra.mxu0 %v719
        %1519 = vmatprep.subr.mxu0 %v724
        %1520 = vmatpush1.msra.mxu0 %v723
        %1521 = vmatprep.subr.mxu0 %v728
        %1522 = vmatpush1.msra.mxu0 %v727
        %1523 = vmatprep.subr.mxu0 %v732
        %1524 = vmatpush1.msra.mxu0 %v731
        %1525 = vmatprep.subr.mxu0 %v736
        %1526 = vmatpush1.msra.mxu0 %v735
        %1527 = vmatprep.subr.mxu0 %v740
        %1528 = vmatpush1.msra.mxu0 %v739
        %1529 = vmatprep.subr.mxu0 %v744
        %1530 = vmatpush1.msra.mxu0 %v743
        %1531 = vmatprep.subr.mxu0 %v748
        %1532 = vmatpush1.msra.mxu0 %v747
        %1533 = vmatprep.subr.mxu0 %v752
        %1534 = vmatpush1.msra.mxu0 %v751
        %1535 = vmatprep.subr.mxu0 %v756
        %1536 = vmatpush1.msra.mxu0 %v755
        %1537 = vmatprep.subr.mxu0 %v760
        %1538 = vmatpush1.msra.mxu0 %v759
        %1539 = vmatprep.subr.mxu0 %v764
        %1540 = vmatpush1.msra.mxu0 %v763
        %1541 = vmatprep.subr.mxu0 %v768
        %1542 = vmatpush1.msra.mxu0 %v767
        %1543 = vmatprep.subr.mxu0 %v772
        %1544 = vmatpush1.msra.mxu0 %v771
        %1545 = vmatprep.subr.mxu0 %v776
        %1546 = vmatpush1.msra.mxu0 %v775
        %1547 = vmatprep.subr.mxu0 %v780
        %1548 = vmatpush1.msra.mxu0 %v779
        %1549 = vmatprep.subr.mxu0 %v784
        %1550 = vmatpush1.msra.mxu0 %v783
        %1551 = vmatprep.subr.mxu0 %v788
        %1552 = vmatpush1.msra.mxu0 %v787
        %1553 = vmatprep.subr.mxu0 %v792
        %1554 = vmatpush1.msra.mxu0 %v791
        %1555 = vmatprep.subr.mxu0 %v796
        %1556 = vmatpush1.msra.mxu0 %v795
        %1557 = vmatprep.subr.mxu0 %v800
        %1558 = vmatpush1.msra.mxu0 %v799
        %1559 = vmatprep.subr.mxu0 %v804
        %1560 = vmatpush1.msra.mxu0 %v803
        %1561 = vmatprep.subr.mxu0 %v808
        %1562 = vmatpush1.msra.mxu0 %v807
        %1563 = vmatprep.subr.mxu0 %v812
        %1564 = vmatpush1.msra.mxu0 %v811
        %1565 = vmatprep.subr.mxu0 %v816
        %1566 = vmatpush1.msra.mxu0 %v815
        %1567 = vmatprep.subr.mxu0 %v820
        %1568 = vmatpush1.msra.mxu0 %v819
        %1569 = vmatprep.subr.mxu0 %v824
        %1570 = vmatpush1.msra.mxu0 %v823
        %1571 = vmatprep.subr.mxu0 %v828
        %1572 = vmatpush1.msra.mxu0 %v827
        %1573 = vmatprep.subr.mxu0 %v832
        %1574 = vmatpush1.msra.mxu0 %v831
        %1575 = vmatprep.subr.mxu0 %v836
        %1576 = vmatpush1.msra.mxu0 %v835
        %1577 = vmatprep.subr.mxu0 %v840
        %1578 = vmatpush1.msra.mxu0 %v839
        %1579 = vmatprep.mubr.f32.mxu0 %v1150
        %1580 = vmatmul.mubr.f32.gmra.mrb[0].mxu0 %v1148
        %v1581 = vpop.f32.mrb[0].mxu0
        %v1582 = vadd.f32 %v1511, %v1581
        %v1583 = vpop.f32.mrb[0].mxu0
        %v1584 = vadd.f32 %v1513, %v1583
        %1585 = vdwg.mxu0
        %1586 = vmatprep.subr.mxu0 %v844
        %1587 = vmatpush1.msra.mxu0 %v843
        %1588 = vmatprep.subr.mxu0 %v848
        %1589 = vmatpush1.msra.mxu0 %v847
        %1590 = vmatprep.subr.mxu0 %v852
        %1591 = vmatpush1.msra.mxu0 %v851
        %1592 = vmatprep.subr.mxu0 %v856
        %1593 = vmatpush1.msra.mxu0 %v855
        %1594 = vmatprep.subr.mxu0 %v860
        %1595 = vmatpush1.msra.mxu0 %v859
        %1596 = vmatprep.subr.mxu0 %v864
        %1597 = vmatpush1.msra.mxu0 %v863
        %1598 = vmatprep.subr.mxu0 %v868
        %1599 = vmatpush1.msra.mxu0 %v867
        %1600 = vmatprep.subr.mxu0 %v872
        %1601 = vmatpush1.msra.mxu0 %v871
        %1602 = vmatprep.subr.mxu0 %v876
        %1603 = vmatpush1.msra.mxu0 %v875
        %1604 = vmatprep.subr.mxu0 %v880
        %1605 = vmatpush1.msra.mxu0 %v879
        %1606 = vmatprep.subr.mxu0 %v884
        %1607 = vmatpush1.msra.mxu0 %v883
        %1608 = vmatprep.subr.mxu0 %v888
        %1609 = vmatpush1.msra.mxu0 %v887
        %1610 = vmatprep.subr.mxu0 %v892
        %1611 = vmatpush1.msra.mxu0 %v891
        %1612 = vmatprep.subr.mxu0 %v896
        %1613 = vmatpush1.msra.mxu0 %v895
        %1614 = vmatprep.subr.mxu0 %v900
        %1615 = vmatpush1.msra.mxu0 %v899
        %1616 = vmatprep.subr.mxu0 %v904
        %1617 = vmatpush1.msra.mxu0 %v903
        %1618 = vmatprep.subr.mxu0 %v908
        %1619 = vmatpush1.msra.mxu0 %v907
        %1620 = vmatprep.subr.mxu0 %v912
        %1621 = vmatpush1.msra.mxu0 %v911
        %1622 = vmatprep.subr.mxu0 %v916
        %1623 = vmatpush1.msra.mxu0 %v915
        %1624 = vmatprep.subr.mxu0 %v920
        %1625 = vmatpush1.msra.mxu0 %v919
        %1626 = vmatprep.subr.mxu0 %v924
        %1627 = vmatpush1.msra.mxu0 %v923
        %1628 = vmatprep.subr.mxu0 %v928
        %1629 = vmatpush1.msra.mxu0 %v927
        %1630 = vmatprep.subr.mxu0 %v932
        %1631 = vmatpush1.msra.mxu0 %v931
        %1632 = vmatprep.subr.mxu0 %v936
        %1633 = vmatpush1.msra.mxu0 %v935
        %1634 = vmatprep.subr.mxu0 %v940
        %1635 = vmatpush1.msra.mxu0 %v939
        %1636 = vmatprep.subr.mxu0 %v944
        %1637 = vmatpush1.msra.mxu0 %v943
        %1638 = vmatprep.subr.mxu0 %v948
        %1639 = vmatpush1.msra.mxu0 %v947
        %1640 = vmatprep.subr.mxu0 %v952
        %1641 = vmatpush1.msra.mxu0 %v951
        %1642 = vmatprep.subr.mxu0 %v956
        %1643 = vmatpush1.msra.mxu0 %v955
        %1644 = vmatprep.subr.mxu0 %v960
        %1645 = vmatpush1.msra.mxu0 %v959
        %1646 = vmatprep.subr.mxu0 %v964
        %1647 = vmatpush1.msra.mxu0 %v963
        %1648 = vmatprep.subr.mxu0 %v968
        %1649 = vmatpush1.msra.mxu0 %v967
        %1650 = vmatprep.mubr.f32.mxu0 %v1147
        %1651 = vmatmul.mubr.f32.gmra.mrb[0].mxu0 %v1133
        %v1652 = vpop.f32.mrb[0].mxu0
        %v1653 = vadd.f32 %v1582, %v1652
        %v1654 = vpop.f32.mrb[0].mxu0
        %v1655 = vadd.f32 %v1584, %v1654
        %1656 = vdwg.mxu0
        %1657 = vmatprep.subr.mxu0 %v972
        %1658 = vmatpush1.msra.mxu0 %v971
        %1659 = vmatprep.subr.mxu0 %v976
        %1660 = vmatpush1.msra.mxu0 %v975
        %1661 = vmatprep.subr.mxu0 %v980
        %1662 = vmatpush1.msra.mxu0 %v979
        %1663 = vmatprep.subr.mxu0 %v984
        %1664 = vmatpush1.msra.mxu0 %v983
        %1665 = vmatprep.subr.mxu0 %v988
        %1666 = vmatpush1.msra.mxu0 %v987
        %1667 = vmatprep.subr.mxu0 %v992
        %1668 = vmatpush1.msra.mxu0 %v991
        %1669 = vmatprep.subr.mxu0 %v996
        %1670 = vmatpush1.msra.mxu0 %v995
        %1671 = vmatprep.subr.mxu0 %v1000
        %1672 = vmatpush1.msra.mxu0 %v999
        %1673 = vmatprep.subr.mxu0 %v1004
        %1674 = vmatpush1.msra.mxu0 %v1003
        %1675 = vmatprep.subr.mxu0 %v1008
        %1676 = vmatpush1.msra.mxu0 %v1007
        %1677 = vmatprep.subr.mxu0 %v1012
        %1678 = vmatpush1.msra.mxu0 %v1011
        %1679 = vmatprep.subr.mxu0 %v1016
        %1680 = vmatpush1.msra.mxu0 %v1015
        %1681 = vmatprep.subr.mxu0 %v1020
        %1682 = vmatpush1.msra.mxu0 %v1019
        %1683 = vmatprep.subr.mxu0 %v1024
        %1684 = vmatpush1.msra.mxu0 %v1023
        %1685 = vmatprep.subr.mxu0 %v1028
        %1686 = vmatpush1.msra.mxu0 %v1027
        %1687 = vmatprep.subr.mxu0 %v1032
        %1688 = vmatpush1.msra.mxu0 %v1031
        %1689 = vmatprep.subr.mxu0 %v1036
        %1690 = vmatpush1.msra.mxu0 %v1035
        %1691 = vmatprep.subr.mxu0 %v1040
        %1692 = vmatpush1.msra.mxu0 %v1039
        %1693 = vmatprep.subr.mxu0 %v1044
        %1694 = vmatpush1.msra.mxu0 %v1043
        %1695 = vmatprep.subr.mxu0 %v1048
        %1696 = vmatpush1.msra.mxu0 %v1047
        %1697 = vmatprep.subr.mxu0 %v1052
        %1698 = vmatpush1.msra.mxu0 %v1051
        %1699 = vmatprep.subr.mxu0 %v1056
        %1700 = vmatpush1.msra.mxu0 %v1055
        %1701 = vmatprep.subr.mxu0 %v1060
        %1702 = vmatpush1.msra.mxu0 %v1059
        %1703 = vmatprep.subr.mxu0 %v1064
        %1704 = vmatpush1.msra.mxu0 %v1063
        %1705 = vmatprep.subr.mxu0 %v1068
        %1706 = vmatpush1.msra.mxu0 %v1067
        %1707 = vmatprep.subr.mxu0 %v1072
        %1708 = vmatpush1.msra.mxu0 %v1071
        %1709 = vmatprep.subr.mxu0 %v1076
        %1710 = vmatpush1.msra.mxu0 %v1075
        %1711 = vmatprep.subr.mxu0 %v1080
        %1712 = vmatpush1.msra.mxu0 %v1079
        %1713 = vmatprep.subr.mxu0 %v1084
        %1714 = vmatpush1.msra.mxu0 %v1083
        %1715 = vmatprep.subr.mxu0 %v1088
        %1716 = vmatpush1.msra.mxu0 %v1087
        %1717 = vmatprep.subr.mxu0 %v1092
        %1718 = vmatpush1.msra.mxu0 %v1091
        %1719 = vmatprep.subr.mxu0 %v1096
        %1720 = vmatpush1.msra.mxu0 %v1095
        %1721 = vmatprep.mubr.f32.mxu0 %v1151
        %1722 = vmatmul.mubr.f32.gmra.mrb[0].mxu0 %v1149
        %v1723 = vpop.f32.mrb[0].mxu0
        %v1724 = vadd.f32 %v1653, %v1723
        %v1725 = vpop.f32.mrb[0].mxu0
        %v1726 = vadd.f32 %v1655, %v1725
        %1727 = vdwg.mxu0
        %s1728 = scalar_lea.vmem %s0, 1
        %v1729 = vld [vmem:[%s1728] ss:$4 sm:$0xff]
        %s1730 = scalar_lea.vmem %s0, 33
        %v1731 = vld [vmem:[%s1730] ss:$4 sm:$0xff]
        %v1734 = vcombine.low %v1729, %v1731
        %v1735 = vcombine.high %v1729, %v1731
        %v1737 = vunpack.c.l.s4 1966171168
        %v1738 = vunpack.c.0.s8 %v1737
        %v1739 = vlaneseq
        %v1740 = vshrl.u32 %v1739, 7
        %v1741 = vsub.s32 %v1738, %v1740
        %v1742 = vrot.slane %v1734, %v1741
        %v1744 = vunpack.c.l.s4 1966171168
        %v1745 = vunpack.c.0.s8 %v1744
        %v1746 = vlaneseq
        %v1747 = vshrl.u32 %v1746, 7
        %v1748 = vsub.s32 %v1745, %v1747
        %v1749 = vrot.slane %v1735, %v1748
        %v1750 = vcombine.high %v1742, %v1742
        %v1751 = vcombine.high %v1749, %v1749
        %v1753 = vunpack.c.l.s4 1966171168
        %v1754 = vunpack.c.0.s8 %v1753
        %v1755 = vlaneseq
        %v1756 = vshrl.u32 %v1755, 7
        %v1757 = vsub.s32 %v1754, %v1756
        %v1758 = vrot.slane %v1742, %v1757
        %v1760 = vunpack.c.l.s4 1966171168
        %v1761 = vunpack.c.0.s8 %v1760
        %v1762 = vlaneseq
        %v1763 = vshrl.u32 %v1762, 7
        %v1764 = vsub.s32 %v1761, %v1763
        %v1765 = vrot.slane %v1749, %v1764
        %v1767 = vunpack.c.l.s4 1966171168
        %v1768 = vunpack.c.0.s8 %v1767
        %v1769 = vlaneseq
        %v1770 = vshrl.u32 %v1769, 7
        %v1771 = vsub.s32 %v1768, %v1770
        %v1772 = vrot.slane %v1750, %v1771
        %v1774 = vunpack.c.l.s4 1966171168
        %v1775 = vunpack.c.0.s8 %v1774
        %v1776 = vlaneseq
        %v1777 = vshrl.u32 %v1776, 7
        %v1778 = vsub.s32 %v1775, %v1777
        %v1779 = vrot.slane %v1751, %v1778
        %v1780 = vcombine.high %v1758, %v1758
        %v1781 = vcombine.high %v1765, %v1765
        %v1782 = vcombine.high %v1772, %v1772
        %v1783 = vcombine.high %v1779, %v1779
        %1792 = vmatprep.subr.mxu0 %v586
        %1793 = vmatpush1.msra.mxu0 %v585
        %1794 = vmatprep.subr.mxu0 %v590
        %1795 = vmatpush1.msra.mxu0 %v589
        %1796 = vmatprep.subr.mxu0 %v594
        %1797 = vmatpush1.msra.mxu0 %v593
        %1798 = vmatprep.subr.mxu0 %v598
        %1799 = vmatpush1.msra.mxu0 %v597
        %1800 = vmatprep.subr.mxu0 %v602
        %1801 = vmatpush1.msra.mxu0 %v601
        %1802 = vmatprep.subr.mxu0 %v606
        %1803 = vmatpush1.msra.mxu0 %v605
        %1804 = vmatprep.subr.mxu0 %v610
        %1805 = vmatpush1.msra.mxu0 %v609
        %1806 = vmatprep.subr.mxu0 %v614
        %1807 = vmatpush1.msra.mxu0 %v613
        %1808 = vmatprep.subr.mxu0 %v618
        %1809 = vmatpush1.msra.mxu0 %v617
        %1810 = vmatprep.subr.mxu0 %v622
        %1811 = vmatpush1.msra.mxu0 %v621
        %1812 = vmatprep.subr.mxu0 %v626
        %1813 = vmatpush1.msra.mxu0 %v625
        %1814 = vmatprep.subr.mxu0 %v630
        %1815 = vmatpush1.msra.mxu0 %v629
        %1816 = vmatprep.subr.mxu0 %v634
        %1817 = vmatpush1.msra.mxu0 %v633
        %1818 = vmatprep.subr.mxu0 %v638
        %1819 = vmatpush1.msra.mxu0 %v637
        %1820 = vmatprep.subr.mxu0 %v642
        %1821 = vmatpush1.msra.mxu0 %v641
        %1822 = vmatprep.subr.mxu0 %v646
        %1823 = vmatpush1.msra.mxu0 %v645
        %1824 = vmatprep.subr.mxu0 %v650
        %1825 = vmatpush1.msra.mxu0 %v649
        %1826 = vmatprep.subr.mxu0 %v654
        %1827 = vmatpush1.msra.mxu0 %v653
        %1828 = vmatprep.subr.mxu0 %v658
        %1829 = vmatpush1.msra.mxu0 %v657
        %1830 = vmatprep.subr.mxu0 %v662
        %1831 = vmatpush1.msra.mxu0 %v661
        %1832 = vmatprep.subr.mxu0 %v666
        %1833 = vmatpush1.msra.mxu0 %v665
        %1834 = vmatprep.subr.mxu0 %v670
        %1835 = vmatpush1.msra.mxu0 %v669
        %1836 = vmatprep.subr.mxu0 %v674
        %1837 = vmatpush1.msra.mxu0 %v673
        %1838 = vmatprep.subr.mxu0 %v678
        %1839 = vmatpush1.msra.mxu0 %v677
        %1840 = vmatprep.subr.mxu0 %v682
        %1841 = vmatpush1.msra.mxu0 %v681
        %1842 = vmatprep.subr.mxu0 %v686
        %1843 = vmatpush1.msra.mxu0 %v685
        %1844 = vmatprep.subr.mxu0 %v690
        %1845 = vmatpush1.msra.mxu0 %v689
        %1846 = vmatprep.subr.mxu0 %v694
        %1847 = vmatpush1.msra.mxu0 %v693
        %1848 = vmatprep.subr.mxu0 %v698
        %1849 = vmatpush1.msra.mxu0 %v697
        %1850 = vmatprep.subr.mxu0 %v702
        %1851 = vmatpush1.msra.mxu0 %v701
        %1852 = vmatprep.subr.mxu0 %v706
        %1853 = vmatpush1.msra.mxu0 %v705
        %1854 = vmatprep.subr.mxu0 %v710
        %1855 = vmatpush1.msra.mxu0 %v709
        %1856 = vmatprep.mubr.f32.mxu0 %v1772
        %1857 = vmatmul.mubr.f32.gmra.mrb[0].mxu0 %v1758
        %v1858 = vpop.f32.mrb[0].mxu0
        %v1859 = vadd.f32 0.0, %v1858
        %v1860 = vpop.f32.mrb[0].mxu0
        %v1861 = vadd.f32 0.0, %v1860
        %1862 = vdwg.mxu0
        %1863 = vmatprep.subr.mxu0 %v714
        %1864 = vmatpush1.msra.mxu0 %v713
        %1865 = vmatprep.subr.mxu0 %v718
        %1866 = vmatpush1.msra.mxu0 %v717
        %1867 = vmatprep.subr.mxu0 %v722
        %1868 = vmatpush1.msra.mxu0 %v721
        %1869 = vmatprep.subr.mxu0 %v726
        %1870 = vmatpush1.msra.mxu0 %v725
        %1871 = vmatprep.subr.mxu0 %v730
        %1872 = vmatpush1.msra.mxu0 %v729
        %1873 = vmatprep.subr.mxu0 %v734
        %1874 = vmatpush1.msra.mxu0 %v733
        %1875 = vmatprep.subr.mxu0 %v738
        %1876 = vmatpush1.msra.mxu0 %v737
        %1877 = vmatprep.subr.mxu0 %v742
        %1878 = vmatpush1.msra.mxu0 %v741
        %1879 = vmatprep.subr.mxu0 %v746
        %1880 = vmatpush1.msra.mxu0 %v745
        %1881 = vmatprep.subr.mxu0 %v750
        %1882 = vmatpush1.msra.mxu0 %v749
        %1883 = vmatprep.subr.mxu0 %v754
        %1884 = vmatpush1.msra.mxu0 %v753
        %1885 = vmatprep.subr.mxu0 %v758
        %1886 = vmatpush1.msra.mxu0 %v757
        %1887 = vmatprep.subr.mxu0 %v762
        %1888 = vmatpush1.msra.mxu0 %v761
        %1889 = vmatprep.subr.mxu0 %v766
        %1890 = vmatpush1.msra.mxu0 %v765
        %1891 = vmatprep.subr.mxu0 %v770
        %1892 = vmatpush1.msra.mxu0 %v769
        %1893 = vmatprep.subr.mxu0 %v774
        %1894 = vmatpush1.msra.mxu0 %v773
        %1895 = vmatprep.subr.mxu0 %v778
        %1896 = vmatpush1.msra.mxu0 %v777
        %1897 = vmatprep.subr.mxu0 %v782
        %1898 = vmatpush1.msra.mxu0 %v781
        %1899 = vmatprep.subr.mxu0 %v786
        %1900 = vmatpush1.msra.mxu0 %v785
        %1901 = vmatprep.subr.mxu0 %v790
        %1902 = vmatpush1.msra.mxu0 %v789
        %1903 = vmatprep.subr.mxu0 %v794
        %1904 = vmatpush1.msra.mxu0 %v793
        %1905 = vmatprep.subr.mxu0 %v798
        %1906 = vmatpush1.msra.mxu0 %v797
        %1907 = vmatprep.subr.mxu0 %v802
        %1908 = vmatpush1.msra.mxu0 %v801
        %1909 = vmatprep.subr.mxu0 %v806
        %1910 = vmatpush1.msra.mxu0 %v805
        %1911 = vmatprep.subr.mxu0 %v810
        %1912 = vmatpush1.msra.mxu0 %v809
        %1913 = vmatprep.subr.mxu0 %v814
        %1914 = vmatpush1.msra.mxu0 %v813
        %1915 = vmatprep.subr.mxu0 %v818
        %1916 = vmatpush1.msra.mxu0 %v817
        %1917 = vmatprep.subr.mxu0 %v822
        %1918 = vmatpush1.msra.mxu0 %v821
        %1919 = vmatprep.subr.mxu0 %v826
        %1920 = vmatpush1.msra.mxu0 %v825
        %1921 = vmatprep.subr.mxu0 %v830
        %1922 = vmatpush1.msra.mxu0 %v829
        %1923 = vmatprep.subr.mxu0 %v834
        %1924 = vmatpush1.msra.mxu0 %v833
        %1925 = vmatprep.subr.mxu0 %v838
        %1926 = vmatpush1.msra.mxu0 %v837
        %1927 = vmatprep.mubr.f32.mxu0 %v1782
        %1928 = vmatmul.mubr.f32.gmra.mrb[0].mxu0 %v1780
        %v1929 = vpop.f32.mrb[0].mxu0
        %v1930 = vadd.f32 %v1859, %v1929
        %v1931 = vpop.f32.mrb[0].mxu0
        %v1932 = vadd.f32 %v1861, %v1931
        %1933 = vdwg.mxu0
        %1934 = vmatprep.subr.mxu0 %v842
        %1935 = vmatpush1.msra.mxu0 %v841
        %1936 = vmatprep.subr.mxu0 %v846
        %1937 = vmatpush1.msra.mxu0 %v845
        %1938 = vmatprep.subr.mxu0 %v850
        %1939 = vmatpush1.msra.mxu0 %v849
        %1940 = vmatprep.subr.mxu0 %v854
        %1941 = vmatpush1.msra.mxu0 %v853
        %1942 = vmatprep.subr.mxu0 %v858
        %1943 = vmatpush1.msra.mxu0 %v857
        %1944 = vmatprep.subr.mxu0 %v862
        %1945 = vmatpush1.msra.mxu0 %v861
        %1946 = vmatprep.subr.mxu0 %v866
        %1947 = vmatpush1.msra.mxu0 %v865
        %1948 = vmatprep.subr.mxu0 %v870
        %1949 = vmatpush1.msra.mxu0 %v869
        %1950 = vmatprep.subr.mxu0 %v874
        %1951 = vmatpush1.msra.mxu0 %v873
        %1952 = vmatprep.subr.mxu0 %v878
        %1953 = vmatpush1.msra.mxu0 %v877
        %1954 = vmatprep.subr.mxu0 %v882
        %1955 = vmatpush1.msra.mxu0 %v881
        %1956 = vmatprep.subr.mxu0 %v886
        %1957 = vmatpush1.msra.mxu0 %v885
        %1958 = vmatprep.subr.mxu0 %v890
        %1959 = vmatpush1.msra.mxu0 %v889
        %1960 = vmatprep.subr.mxu0 %v894
        %1961 = vmatpush1.msra.mxu0 %v893
        %1962 = vmatprep.subr.mxu0 %v898
        %1963 = vmatpush1.msra.mxu0 %v897
        %1964 = vmatprep.subr.mxu0 %v902
        %1965 = vmatpush1.msra.mxu0 %v901
        %1966 = vmatprep.subr.mxu0 %v906
        %1967 = vmatpush1.msra.mxu0 %v905
        %1968 = vmatprep.subr.mxu0 %v910
        %1969 = vmatpush1.msra.mxu0 %v909
        %1970 = vmatprep.subr.mxu0 %v914
        %1971 = vmatpush1.msra.mxu0 %v913
        %1972 = vmatprep.subr.mxu0 %v918
        %1973 = vmatpush1.msra.mxu0 %v917
        %1974 = vmatprep.subr.mxu0 %v922
        %1975 = vmatpush1.msra.mxu0 %v921
        %1976 = vmatprep.subr.mxu0 %v926
        %1977 = vmatpush1.msra.mxu0 %v925
        %1978 = vmatprep.subr.mxu0 %v930
        %1979 = vmatpush1.msra.mxu0 %v929
        %1980 = vmatprep.subr.mxu0 %v934
        %1981 = vmatpush1.msra.mxu0 %v933
        %1982 = vmatprep.subr.mxu0 %v938
        %1983 = vmatpush1.msra.mxu0 %v937
        %1984 = vmatprep.subr.mxu0 %v942
        %1985 = vmatpush1.msra.mxu0 %v941
        %1986 = vmatprep.subr.mxu0 %v946
        %1987 = vmatpush1.msra.mxu0 %v945
        %1988 = vmatprep.subr.mxu0 %v950
        %1989 = vmatpush1.msra.mxu0 %v949
        %1990 = vmatprep.subr.mxu0 %v954
        %1991 = vmatpush1.msra.mxu0 %v953
        %1992 = vmatprep.subr.mxu0 %v958
        %1993 = vmatpush1.msra.mxu0 %v957
        %1994 = vmatprep.subr.mxu0 %v962
        %1995 = vmatpush1.msra.mxu0 %v961
        %1996 = vmatprep.subr.mxu0 %v966
        %1997 = vmatpush1.msra.mxu0 %v965
        %1998 = vmatprep.mubr.f32.mxu0 %v1779
        %1999 = vmatmul.mubr.f32.gmra.mrb[0].mxu0 %v1765
        %v2000 = vpop.f32.mrb[0].mxu0
        %v2001 = vadd.f32 %v1930, %v2000
        %v2002 = vpop.f32.mrb[0].mxu0
        %v2003 = vadd.f32 %v1932, %v2002
        %2004 = vdwg.mxu0
        %2005 = vmatprep.subr.mxu0 %v970
        %2006 = vmatpush1.msra.mxu0 %v969
        %2007 = vmatprep.subr.mxu0 %v974
        %2008 = vmatpush1.msra.mxu0 %v973
        %2009 = vmatprep.subr.mxu0 %v978
        %2010 = vmatpush1.msra.mxu0 %v977
        %2011 = vmatprep.subr.mxu0 %v982
        %2012 = vmatpush1.msra.mxu0 %v981
        %2013 = vmatprep.subr.mxu0 %v986
        %2014 = vmatpush1.msra.mxu0 %v985
        %2015 = vmatprep.subr.mxu0 %v990
        %2016 = vmatpush1.msra.mxu0 %v989
        %2017 = vmatprep.subr.mxu0 %v994
        %2018 = vmatpush1.msra.mxu0 %v993
        %2019 = vmatprep.subr.mxu0 %v998
        %2020 = vmatpush1.msra.mxu0 %v997
        %2021 = vmatprep.subr.mxu0 %v1002
        %2022 = vmatpush1.msra.mxu0 %v1001
        %2023 = vmatprep.subr.mxu0 %v1006
        %2024 = vmatpush1.msra.mxu0 %v1005
        %2025 = vmatprep.subr.mxu0 %v1010
        %2026 = vmatpush1.msra.mxu0 %v1009
        %2027 = vmatprep.subr.mxu0 %v1014
        %2028 = vmatpush1.msra.mxu0 %v1013
        %2029 = vmatprep.subr.mxu0 %v1018
        %2030 = vmatpush1.msra.mxu0 %v1017
        %2031 = vmatprep.subr.mxu0 %v1022
        %2032 = vmatpush1.msra.mxu0 %v1021
        %2033 = vmatprep.subr.mxu0 %v1026
        %2034 = vmatpush1.msra.mxu0 %v1025
        %2035 = vmatprep.subr.mxu0 %v1030
        %2036 = vmatpush1.msra.mxu0 %v1029
        %2037 = vmatprep.subr.mxu0 %v1034
        %2038 = vmatpush1.msra.mxu0 %v1033
        %2039 = vmatprep.subr.mxu0 %v1038
        %2040 = vmatpush1.msra.mxu0 %v1037
        %2041 = vmatprep.subr.mxu0 %v1042
        %2042 = vmatpush1.msra.mxu0 %v1041
        %2043 = vmatprep.subr.mxu0 %v1046
        %2044 = vmatpush1.msra.mxu0 %v1045
        %2045 = vmatprep.subr.mxu0 %v1050
        %2046 = vmatpush1.msra.mxu0 %v1049
        %2047 = vmatprep.subr.mxu0 %v1054
        %2048 = vmatpush1.msra.mxu0 %v1053
        %2049 = vmatprep.subr.mxu0 %v1058
        %2050 = vmatpush1.msra.mxu0 %v1057
        %2051 = vmatprep.subr.mxu0 %v1062
        %2052 = vmatpush1.msra.mxu0 %v1061
        %2053 = vmatprep.subr.mxu0 %v1066
        %2054 = vmatpush1.msra.mxu0 %v1065
        %2055 = vmatprep.subr.mxu0 %v1070
        %2056 = vmatpush1.msra.mxu0 %v1069
        %2057 = vmatprep.subr.mxu0 %v1074
        %2058 = vmatpush1.msra.mxu0 %v1073
        %2059 = vmatprep.subr.mxu0 %v1078
        %2060 = vmatpush1.msra.mxu0 %v1077
        %2061 = vmatprep.subr.mxu0 %v1082
        %2062 = vmatpush1.msra.mxu0 %v1081
        %2063 = vmatprep.subr.mxu0 %v1086
        %2064 = vmatpush1.msra.mxu0 %v1085
        %2065 = vmatprep.subr.mxu0 %v1090
        %2066 = vmatpush1.msra.mxu0 %v1089
        %2067 = vmatprep.subr.mxu0 %v1094
        %2068 = vmatpush1.msra.mxu0 %v1093
        %2069 = vmatprep.mubr.f32.mxu0 %v1783
        %2070 = vmatmul.mubr.f32.gmra.mrb[0].mxu0 %v1781
        %v2071 = vpop.f32.mrb[0].mxu0
        %v2072 = vadd.f32 %v2001, %v2071
        %v2073 = vpop.f32.mrb[0].mxu0
        %v2074 = vadd.f32 %v2003, %v2073
        %2075 = vdwg.mxu0
        %2076 = vmatprep.subr.mxu0 %v588
        %2077 = vmatpush1.msra.mxu0 %v587
        %2078 = vmatprep.subr.mxu0 %v592
        %2079 = vmatpush1.msra.mxu0 %v591
        %2080 = vmatprep.subr.mxu0 %v596
        %2081 = vmatpush1.msra.mxu0 %v595
        %2082 = vmatprep.subr.mxu0 %v600
        %2083 = vmatpush1.msra.mxu0 %v599
        %2084 = vmatprep.subr.mxu0 %v604
        %2085 = vmatpush1.msra.mxu0 %v603
        %2086 = vmatprep.subr.mxu0 %v608
        %2087 = vmatpush1.msra.mxu0 %v607
        %2088 = vmatprep.subr.mxu0 %v612
        %2089 = vmatpush1.msra.mxu0 %v611
        %2090 = vmatprep.subr.mxu0 %v616
        %2091 = vmatpush1.msra.mxu0 %v615
        %2092 = vmatprep.subr.mxu0 %v620
        %2093 = vmatpush1.msra.mxu0 %v619
        %2094 = vmatprep.subr.mxu0 %v624
        %2095 = vmatpush1.msra.mxu0 %v623
        %2096 = vmatprep.subr.mxu0 %v628
        %2097 = vmatpush1.msra.mxu0 %v627
        %2098 = vmatprep.subr.mxu0 %v632
        %2099 = vmatpush1.msra.mxu0 %v631
        %2100 = vmatprep.subr.mxu0 %v636
        %2101 = vmatpush1.msra.mxu0 %v635
        %2102 = vmatprep.subr.mxu0 %v640
        %2103 = vmatpush1.msra.mxu0 %v639
        %2104 = vmatprep.subr.mxu0 %v644
        %2105 = vmatpush1.msra.mxu0 %v643
        %2106 = vmatprep.subr.mxu0 %v648
        %2107 = vmatpush1.msra.mxu0 %v647
        %2108 = vmatprep.subr.mxu0 %v652
        %2109 = vmatpush1.msra.mxu0 %v651
        %2110 = vmatprep.subr.mxu0 %v656
        %2111 = vmatpush1.msra.mxu0 %v655
        %2112 = vmatprep.subr.mxu0 %v660
        %2113 = vmatpush1.msra.mxu0 %v659
        %2114 = vmatprep.subr.mxu0 %v664
        %2115 = vmatpush1.msra.mxu0 %v663
        %2116 = vmatprep.subr.mxu0 %v668
        %2117 = vmatpush1.msra.mxu0 %v667
        %2118 = vmatprep.subr.mxu0 %v672
        %2119 = vmatpush1.msra.mxu0 %v671
        %2120 = vmatprep.subr.mxu0 %v676
        %2121 = vmatpush1.msra.mxu0 %v675
        %2122 = vmatprep.subr.mxu0 %v680
        %2123 = vmatpush1.msra.mxu0 %v679
        %2124 = vmatprep.subr.mxu0 %v684
        %2125 = vmatpush1.msra.mxu0 %v683
        %2126 = vmatprep.subr.mxu0 %v688
        %2127 = vmatpush1.msra.mxu0 %v687
        %2128 = vmatprep.subr.mxu0 %v692
        %2129 = vmatpush1.msra.mxu0 %v691
        %2130 = vmatprep.subr.mxu0 %v696
        %2131 = vmatpush1.msra.mxu0 %v695
        %2132 = vmatprep.subr.mxu0 %v700
        %2133 = vmatpush1.msra.mxu0 %v699
        %2134 = vmatprep.subr.mxu0 %v704
        %2135 = vmatpush1.msra.mxu0 %v703
        %2136 = vmatprep.subr.mxu0 %v708
        %2137 = vmatpush1.msra.mxu0 %v707
        %2138 = vmatprep.subr.mxu0 %v712
        %2139 = vmatpush1.msra.mxu0 %v711
        %2140 = vmatprep.mubr.f32.mxu0 %v1772
        %2141 = vmatmul.mubr.f32.gmra.mrb[0].mxu0 %v1758
        %v2142 = vpop.f32.mrb[0].mxu0
        %v2143 = vadd.f32 0.0, %v2142
        %v2144 = vpop.f32.mrb[0].mxu0
        %v2145 = vadd.f32 0.0, %v2144
        %2146 = vdwg.mxu0
        %2147 = vmatprep.subr.mxu0 %v716
        %2148 = vmatpush1.msra.mxu0 %v715
        %2149 = vmatprep.subr.mxu0 %v720
        %2150 = vmatpush1.msra.mxu0 %v719
        %2151 = vmatprep.subr.mxu0 %v724
        %2152 = vmatpush1.msra.mxu0 %v723
        %2153 = vmatprep.subr.mxu0 %v728
        %2154 = vmatpush1.msra.mxu0 %v727
        %2155 = vmatprep.subr.mxu0 %v732
        %2156 = vmatpush1.msra.mxu0 %v731
        %2157 = vmatprep.subr.mxu0 %v736
        %2158 = vmatpush1.msra.mxu0 %v735
        %2159 = vmatprep.subr.mxu0 %v740
        %2160 = vmatpush1.msra.mxu0 %v739
        %2161 = vmatprep.subr.mxu0 %v744
        %2162 = vmatpush1.msra.mxu0 %v743
        %2163 = vmatprep.subr.mxu0 %v748
        %2164 = vmatpush1.msra.mxu0 %v747
        %2165 = vmatprep.subr.mxu0 %v752
        %2166 = vmatpush1.msra.mxu0 %v751
        %2167 = vmatprep.subr.mxu0 %v756
        %2168 = vmatpush1.msra.mxu0 %v755
        %2169 = vmatprep.subr.mxu0 %v760
        %2170 = vmatpush1.msra.mxu0 %v759
        %2171 = vmatprep.subr.mxu0 %v764
        %2172 = vmatpush1.msra.mxu0 %v763
        %2173 = vmatprep.subr.mxu0 %v768
        %2174 = vmatpush1.msra.mxu0 %v767
        %2175 = vmatprep.subr.mxu0 %v772
        %2176 = vmatpush1.msra.mxu0 %v771
        %2177 = vmatprep.subr.mxu0 %v776
        %2178 = vmatpush1.msra.mxu0 %v775
        %2179 = vmatprep.subr.mxu0 %v780
        %2180 = vmatpush1.msra.mxu0 %v779
        %2181 = vmatprep.subr.mxu0 %v784
        %2182 = vmatpush1.msra.mxu0 %v783
        %2183 = vmatprep.subr.mxu0 %v788
        %2184 = vmatpush1.msra.mxu0 %v787
        %2185 = vmatprep.subr.mxu0 %v792
        %2186 = vmatpush1.msra.mxu0 %v791
        %2187 = vmatprep.subr.mxu0 %v796
        %2188 = vmatpush1.msra.mxu0 %v795
        %2189 = vmatprep.subr.mxu0 %v800
        %2190 = vmatpush1.msra.mxu0 %v799
        %2191 = vmatprep.subr.mxu0 %v804
        %2192 = vmatpush1.msra.mxu0 %v803
        %2193 = vmatprep.subr.mxu0 %v808
        %2194 = vmatpush1.msra.mxu0 %v807
        %2195 = vmatprep.subr.mxu0 %v812
        %2196 = vmatpush1.msra.mxu0 %v811
        %2197 = vmatprep.subr.mxu0 %v816
        %2198 = vmatpush1.msra.mxu0 %v815
        %2199 = vmatprep.subr.mxu0 %v820
        %2200 = vmatpush1.msra.mxu0 %v819
        %2201 = vmatprep.subr.mxu0 %v824
        %2202 = vmatpush1.msra.mxu0 %v823
        %2203 = vmatprep.subr.mxu0 %v828
        %2204 = vmatpush1.msra.mxu0 %v827
        %2205 = vmatprep.subr.mxu0 %v832
        %2206 = vmatpush1.msra.mxu0 %v831
        %2207 = vmatprep.subr.mxu0 %v836
        %2208 = vmatpush1.msra.mxu0 %v835
        %2209 = vmatprep.subr.mxu0 %v840
        %2210 = vmatpush1.msra.mxu0 %v839
        %2211 = vmatprep.mubr.f32.mxu0 %v1782
        %2212 = vmatmul.mubr.f32.gmra.mrb[0].mxu0 %v1780
        %v2213 = vpop.f32.mrb[0].mxu0
        %v2214 = vadd.f32 %v2143, %v2213
        %v2215 = vpop.f32.mrb[0].mxu0
        %v2216 = vadd.f32 %v2145, %v2215
        %2217 = vdwg.mxu0
        %2218 = vmatprep.subr.mxu0 %v844
        %2219 = vmatpush1.msra.mxu0 %v843
        %2220 = vmatprep.subr.mxu0 %v848
        %2221 = vmatpush1.msra.mxu0 %v847
        %2222 = vmatprep.subr.mxu0 %v852
        %2223 = vmatpush1.msra.mxu0 %v851
        %2224 = vmatprep.subr.mxu0 %v856
        %2225 = vmatpush1.msra.mxu0 %v855
        %2226 = vmatprep.subr.mxu0 %v860
        %2227 = vmatpush1.msra.mxu0 %v859
        %2228 = vmatprep.subr.mxu0 %v864
        %2229 = vmatpush1.msra.mxu0 %v863
        %2230 = vmatprep.subr.mxu0 %v868
        %2231 = vmatpush1.msra.mxu0 %v867
        %2232 = vmatprep.subr.mxu0 %v872
        %2233 = vmatpush1.msra.mxu0 %v871
        %2234 = vmatprep.subr.mxu0 %v876
        %2235 = vmatpush1.msra.mxu0 %v875
        %2236 = vmatprep.subr.mxu0 %v880
        %2237 = vmatpush1.msra.mxu0 %v879
        %2238 = vmatprep.subr.mxu0 %v884
        %2239 = vmatpush1.msra.mxu0 %v883
        %2240 = vmatprep.subr.mxu0 %v888
        %2241 = vmatpush1.msra.mxu0 %v887
        %2242 = vmatprep.subr.mxu0 %v892
        %2243 = vmatpush1.msra.mxu0 %v891
        %2244 = vmatprep.subr.mxu0 %v896
        %2245 = vmatpush1.msra.mxu0 %v895
        %2246 = vmatprep.subr.mxu0 %v900
        %2247 = vmatpush1.msra.mxu0 %v899
        %2248 = vmatprep.subr.mxu0 %v904
        %2249 = vmatpush1.msra.mxu0 %v903
        %2250 = vmatprep.subr.mxu0 %v908
        %2251 = vmatpush1.msra.mxu0 %v907
        %2252 = vmatprep.subr.mxu0 %v912
        %2253 = vmatpush1.msra.mxu0 %v911
        %2254 = vmatprep.subr.mxu0 %v916
        %2255 = vmatpush1.msra.mxu0 %v915
        %2256 = vmatprep.subr.mxu0 %v920
        %2257 = vmatpush1.msra.mxu0 %v919
        %2258 = vmatprep.subr.mxu0 %v924
        %2259 = vmatpush1.msra.mxu0 %v923
        %2260 = vmatprep.subr.mxu0 %v928
        %2261 = vmatpush1.msra.mxu0 %v927
        %2262 = vmatprep.subr.mxu0 %v932
        %2263 = vmatpush1.msra.mxu0 %v931
        %2264 = vmatprep.subr.mxu0 %v936
        %2265 = vmatpush1.msra.mxu0 %v935
        %2266 = vmatprep.subr.mxu0 %v940
        %2267 = vmatpush1.msra.mxu0 %v939
        %2268 = vmatprep.subr.mxu0 %v944
        %2269 = vmatpush1.msra.mxu0 %v943
        %2270 = vmatprep.subr.mxu0 %v948
        %2271 = vmatpush1.msra.mxu0 %v947
        %2272 = vmatprep.subr.mxu0 %v952
        %2273 = vmatpush1.msra.mxu0 %v951
        %2274 = vmatprep.subr.mxu0 %v956
        %2275 = vmatpush1.msra.mxu0 %v955
        %2276 = vmatprep.subr.mxu0 %v960
        %2277 = vmatpush1.msra.mxu0 %v959
        %2278 = vmatprep.subr.mxu0 %v964
        %2279 = vmatpush1.msra.mxu0 %v963
        %2280 = vmatprep.subr.mxu0 %v968
        %2281 = vmatpush1.msra.mxu0 %v967
        %2282 = vmatprep.mubr.f32.mxu0 %v1779
        %2283 = vmatmul.mubr.f32.gmra.mrb[0].mxu0 %v1765
        %v2284 = vpop.f32.mrb[0].mxu0
        %v2285 = vadd.f32 %v2214, %v2284
        %v2286 = vpop.f32.mrb[0].mxu0
        %v2287 = vadd.f32 %v2216, %v2286
        %2288 = vdwg.mxu0
        %2289 = vmatprep.subr.mxu0 %v972
        %2290 = vmatpush1.msra.mxu0 %v971
        %2291 = vmatprep.subr.mxu0 %v976
        %2292 = vmatpush1.msra.mxu0 %v975
        %2293 = vmatprep.subr.mxu0 %v980
        %2294 = vmatpush1.msra.mxu0 %v979
        %2295 = vmatprep.subr.mxu0 %v984
        %2296 = vmatpush1.msra.mxu0 %v983
        %2297 = vmatprep.subr.mxu0 %v988
        %2298 = vmatpush1.msra.mxu0 %v987
        %2299 = vmatprep.subr.mxu0 %v992
        %2300 = vmatpush1.msra.mxu0 %v991
        %2301 = vmatprep.subr.mxu0 %v996
        %2302 = vmatpush1.msra.mxu0 %v995
        %2303 = vmatprep.subr.mxu0 %v1000
        %2304 = vmatpush1.msra.mxu0 %v999
        %2305 = vmatprep.subr.mxu0 %v1004
        %2306 = vmatpush1.msra.mxu0 %v1003
        %2307 = vmatprep.subr.mxu0 %v1008
        %2308 = vmatpush1.msra.mxu0 %v1007
        %2309 = vmatprep.subr.mxu0 %v1012
        %2310 = vmatpush1.msra.mxu0 %v1011
        %2311 = vmatprep.subr.mxu0 %v1016
        %2312 = vmatpush1.msra.mxu0 %v1015
        %2313 = vmatprep.subr.mxu0 %v1020
        %2314 = vmatpush1.msra.mxu0 %v1019
        %2315 = vmatprep.subr.mxu0 %v1024
        %2316 = vmatpush1.msra.mxu0 %v1023
        %2317 = vmatprep.subr.mxu0 %v1028
        %2318 = vmatpush1.msra.mxu0 %v1027
        %2319 = vmatprep.subr.mxu0 %v1032
        %2320 = vmatpush1.msra.mxu0 %v1031
        %2321 = vmatprep.subr.mxu0 %v1036
        %2322 = vmatpush1.msra.mxu0 %v1035
        %2323 = vmatprep.subr.mxu0 %v1040
        %2324 = vmatpush1.msra.mxu0 %v1039
        %2325 = vmatprep.subr.mxu0 %v1044
        %2326 = vmatpush1.msra.mxu0 %v1043
        %2327 = vmatprep.subr.mxu0 %v1048
        %2328 = vmatpush1.msra.mxu0 %v1047
        %2329 = vmatprep.subr.mxu0 %v1052
        %2330 = vmatpush1.msra.mxu0 %v1051
        %2331 = vmatprep.subr.mxu0 %v1056
        %2332 = vmatpush1.msra.mxu0 %v1055
        %2333 = vmatprep.subr.mxu0 %v1060
        %2334 = vmatpush1.msra.mxu0 %v1059
        %2335 = vmatprep.subr.mxu0 %v1064
        %2336 = vmatpush1.msra.mxu0 %v1063
        %2337 = vmatprep.subr.mxu0 %v1068
        %2338 = vmatpush1.msra.mxu0 %v1067
        %2339 = vmatprep.subr.mxu0 %v1072
        %2340 = vmatpush1.msra.mxu0 %v1071
        %2341 = vmatprep.subr.mxu0 %v1076
        %2342 = vmatpush1.msra.mxu0 %v1075
        %2343 = vmatprep.subr.mxu0 %v1080
        %2344 = vmatpush1.msra.mxu0 %v1079
        %2345 = vmatprep.subr.mxu0 %v1084
        %2346 = vmatpush1.msra.mxu0 %v1083
        %2347 = vmatprep.subr.mxu0 %v1088
        %2348 = vmatpush1.msra.mxu0 %v1087
        %2349 = vmatprep.subr.mxu0 %v1092
        %2350 = vmatpush1.msra.mxu0 %v1091
        %2351 = vmatprep.subr.mxu0 %v1096
        %2352 = vmatpush1.msra.mxu0 %v1095
        %2353 = vmatprep.mubr.f32.mxu0 %v1783
        %2354 = vmatmul.mubr.f32.gmra.mrb[0].mxu0 %v1781
        %v2355 = vpop.f32.mrb[0].mxu0
        %v2356 = vadd.f32 %v2285, %v2355
        %v2357 = vpop.f32.mrb[0].mxu0
        %v2358 = vadd.f32 %v2287, %v2357
        %2359 = vdwg.mxu0
        %v2360 = vmax.f32 %v1440, %v2072
        %v2361 = vmax.f32 %v1442, %v2074
        %v2362 = vmax.f32 %v1724, %v2356
        %v2363 = vmax.f32 %v1726, %v2358
        %s2364 = scalar_lea.vmem %s0, 2
        %v2365 = vld [vmem:[%s2364] ss:$4 sm:$0xff]
        %s2366 = scalar_lea.vmem %s0, 34
        %v2367 = vld [vmem:[%s2366] ss:$4 sm:$0xff]
        %v2370 = vcombine.low %v2365, %v2367
        %v2371 = vcombine.high %v2365, %v2367
        %v2373 = vunpack.c.l.s4 1966171168
        %v2374 = vunpack.c.0.s8 %v2373
        %v2375 = vlaneseq
        %v2376 = vshrl.u32 %v2375, 7
        %v2377 = vsub.s32 %v2374, %v2376
        %v2378 = vrot.slane %v2370, %v2377
        %v2380 = vunpack.c.l.s4 1966171168
        %v2381 = vunpack.c.0.s8 %v2380
        %v2382 = vlaneseq
        %v2383 = vshrl.u32 %v2382, 7
        %v2384 = vsub.s32 %v2381, %v2383
        %v2385 = vrot.slane %v2371, %v2384
        %v2386 = vcombine.high %v2378, %v2378
        %v2387 = vcombine.high %v2385, %v2385
        %v2389 = vunpack.c.l.s4 1966171168
        %v2390 = vunpack.c.0.s8 %v2389
        %v2391 = vlaneseq
        %v2392 = vshrl.u32 %v2391, 7
        %v2393 = vsub.s32 %v2390, %v2392
        %v2394 = vrot.slane %v2378, %v2393
        %v2396 = vunpack.c.l.s4 1966171168
        %v2397 = vunpack.c.0.s8 %v2396
        %v2398 = vlaneseq
        %v2399 = vshrl.u32 %v2398, 7
        %v2400 = vsub.s32 %v2397, %v2399
        %v2401 = vrot.slane %v2385, %v2400
        %v2403 = vunpack.c.l.s4 1966171168
        %v2404 = vunpack.c.0.s8 %v2403
        %v2405 = vlaneseq
        %v2406 = vshrl.u32 %v2405, 7
        %v2407 = vsub.s32 %v2404, %v2406
        %v2408 = vrot.slane %v2386, %v2407
        %v2410 = vunpack.c.l.s4 1966171168
        %v2411 = vunpack.c.0.s8 %v2410
        %v2412 = vlaneseq
        %v2413 = vshrl.u32 %v2412, 7
        %v2414 = vsub.s32 %v2411, %v2413
        %v2415 = vrot.slane %v2387, %v2414
        %v2416 = vcombine.high %v2394, %v2394
        %v2417 = vcombine.high %v2401, %v2401
        %v2418 = vcombine.high %v2408, %v2408
        %v2419 = vcombine.high %v2415, %v2415
        %2428 = vmatprep.subr.mxu0 %v586
        %2429 = vmatpush1.msra.mxu0 %v585
        %2430 = vmatprep.subr.mxu0 %v590
        %2431 = vmatpush1.msra.mxu0 %v589
        %2432 = vmatprep.subr.mxu0 %v594
        %2433 = vmatpush1.msra.mxu0 %v593
        %2434 = vmatprep.subr.mxu0 %v598
        %2435 = vmatpush1.msra.mxu0 %v597
        %2436 = vmatprep.subr.mxu0 %v602
        %2437 = vmatpush1.msra.mxu0 %v601
        %2438 = vmatprep.subr.mxu0 %v606
        %2439 = vmatpush1.msra.mxu0 %v605
        %2440 = vmatprep.subr.mxu0 %v610
        %2441 = vmatpush1.msra.mxu0 %v609
        %2442 = vmatprep.subr.mxu0 %v614
        %2443 = vmatpush1.msra.mxu0 %v613
        %2444 = vmatprep.subr.mxu0 %v618
        %2445 = vmatpush1.msra.mxu0 %v617
        %2446 = vmatprep.subr.mxu0 %v622
        %2447 = vmatpush1.msra.mxu0 %v621
        %2448 = vmatprep.subr.mxu0 %v626
        %2449 = vmatpush1.msra.mxu0 %v625
        %2450 = vmatprep.subr.mxu0 %v630
        %2451 = vmatpush1.msra.mxu0 %v629
        %2452 = vmatprep.subr.mxu0 %v634
        %2453 = vmatpush1.msra.mxu0 %v633
        %2454 = vmatprep.subr.mxu0 %v638
        %2455 = vmatpush1.msra.mxu0 %v637
        %2456 = vmatprep.subr.mxu0 %v642
        %2457 = vmatpush1.msra.mxu0 %v641
        %2458 = vmatprep.subr.mxu0 %v646
        %2459 = vmatpush1.msra.mxu0 %v645
        %2460 = vmatprep.subr.mxu0 %v650
        %2461 = vmatpush1.msra.mxu0 %v649
        %2462 = vmatprep.subr.mxu0 %v654
        %2463 = vmatpush1.msra.mxu0 %v653
        %2464 = vmatprep.subr.mxu0 %v658
        %2465 = vmatpush1.msra.mxu0 %v657
        %2466 = vmatprep.subr.mxu0 %v662
        %2467 = vmatpush1.msra.mxu0 %v661
        %2468 = vmatprep.subr.mxu0 %v666
        %2469 = vmatpush1.msra.mxu0 %v665
        %2470 = vmatprep.subr.mxu0 %v670
        %2471 = vmatpush1.msra.mxu0 %v669
        %2472 = vmatprep.subr.mxu0 %v674
        %2473 = vmatpush1.msra.mxu0 %v673
        %2474 = vmatprep.subr.mxu0 %v678
        %2475 = vmatpush1.msra.mxu0 %v677
        %2476 = vmatprep.subr.mxu0 %v682
        %2477 = vmatpush1.msra.mxu0 %v681
        %2478 = vmatprep.subr.mxu0 %v686
        %2479 = vmatpush1.msra.mxu0 %v685
        %2480 = vmatprep.subr.mxu0 %v690
        %2481 = vmatpush1.msra.mxu0 %v689
        %2482 = vmatprep.subr.mxu0 %v694
        %2483 = vmatpush1.msra.mxu0 %v693
        %2484 = vmatprep.subr.mxu0 %v698
        %2485 = vmatpush1.msra.mxu0 %v697
        %2486 = vmatprep.subr.mxu0 %v702
        %2487 = vmatpush1.msra.mxu0 %v701
        %2488 = vmatprep.subr.mxu0 %v706
        %2489 = vmatpush1.msra.mxu0 %v705
        %2490 = vmatprep.subr.mxu0 %v710
        %2491 = vmatpush1.msra.mxu0 %v709
        %2492 = vmatprep.mubr.f32.mxu0 %v2408
        %2493 = vmatmul.mubr.f32.gmra.mrb[0].mxu0 %v2394
        %v2494 = vpop.f32.mrb[0].mxu0
        %v2495 = vadd.f32 0.0, %v2494
        %v2496 = vpop.f32.mrb[0].mxu0
        %v2497 = vadd.f32 0.0, %v2496
        %2498 = vdwg.mxu0
        %2499 = vmatprep.subr.mxu0 %v714
        %2500 = vmatpush1.msra.mxu0 %v713
        %2501 = vmatprep.subr.mxu0 %v718
        %2502 = vmatpush1.msra.mxu0 %v717
        %2503 = vmatprep.subr.mxu0 %v722
        %2504 = vmatpush1.msra.mxu0 %v721
        %2505 = vmatprep.subr.mxu0 %v726
        %2506 = vmatpush1.msra.mxu0 %v725
        %2507 = vmatprep.subr.mxu0 %v730
        %2508 = vmatpush1.msra.mxu0 %v729
        %2509 = vmatprep.subr.mxu0 %v734
        %2510 = vmatpush1.msra.mxu0 %v733
        %2511 = vmatprep.subr.mxu0 %v738
        %2512 = vmatpush1.msra.mxu0 %v737
        %2513 = vmatprep.subr.mxu0 %v742
        %2514 = vmatpush1.msra.mxu0 %v741
        %2515 = vmatprep.subr.mxu0 %v746
        %2516 = vmatpush1.msra.mxu0 %v745
        %2517 = vmatprep.subr.mxu0 %v750
        %2518 = vmatpush1.msra.mxu0 %v749
        %2519 = vmatprep.subr.mxu0 %v754
        %2520 = vmatpush1.msra.mxu0 %v753
        %2521 = vmatprep.subr.mxu0 %v758
        %2522 = vmatpush1.msra.mxu0 %v757
        %2523 = vmatprep.subr.mxu0 %v762
        %2524 = vmatpush1.msra.mxu0 %v761
        %2525 = vmatprep.subr.mxu0 %v766
        %2526 = vmatpush1.msra.mxu0 %v765
        %2527 = vmatprep.subr.mxu0 %v770
        %2528 = vmatpush1.msra.mxu0 %v769
        %2529 = vmatprep.subr.mxu0 %v774
        %2530 = vmatpush1.msra.mxu0 %v773
        %2531 = vmatprep.subr.mxu0 %v778
        %2532 = vmatpush1.msra.mxu0 %v777
        %2533 = vmatprep.subr.mxu0 %v782
        %2534 = vmatpush1.msra.mxu0 %v781
        %2535 = vmatprep.subr.mxu0 %v786
        %2536 = vmatpush1.msra.mxu0 %v785
        %2537 = vmatprep.subr.mxu0 %v790
        %2538 = vmatpush1.msra.mxu0 %v789
        %2539 = vmatprep.subr.mxu0 %v794
        %2540 = vmatpush1.msra.mxu0 %v793
        %2541 = vmatprep.subr.mxu0 %v798
        %2542 = vmatpush1.msra.mxu0 %v797
        %2543 = vmatprep.subr.mxu0 %v802
        %2544 = vmatpush1.msra.mxu0 %v801
        %2545 = vmatprep.subr.mxu0 %v806
        %2546 = vmatpush1.msra.mxu0 %v805
        %2547 = vmatprep.subr.mxu0 %v810
        %2548 = vmatpush1.msra.mxu0 %v809
        %2549 = vmatprep.subr.mxu0 %v814
        %2550 = vmatpush1.msra.mxu0 %v813
        %2551 = vmatprep.subr.mxu0 %v818
        %2552 = vmatpush1.msra.mxu0 %v817
        %2553 = vmatprep.subr.mxu0 %v822
        %2554 = vmatpush1.msra.mxu0 %v821
        %2555 = vmatprep.subr.mxu0 %v826
        %2556 = vmatpush1.msra.mxu0 %v825
        %2557 = vmatprep.subr.mxu0 %v830
        %2558 = vmatpush1.msra.mxu0 %v829
        %2559 = vmatprep.subr.mxu0 %v834
        %2560 = vmatpush1.msra.mxu0 %v833
        %2561 = vmatprep.subr.mxu0 %v838
        %2562 = vmatpush1.msra.mxu0 %v837
        %2563 = vmatprep.mubr.f32.mxu0 %v2418
        %2564 = vmatmul.mubr.f32.gmra.mrb[0].mxu0 %v2416
        %v2565 = vpop.f32.mrb[0].mxu0
        %v2566 = vadd.f32 %v2495, %v2565
        %v2567 = vpop.f32.mrb[0].mxu0
        %v2568 = vadd.f32 %v2497, %v2567
        %2569 = vdwg.mxu0
        %2570 = vmatprep.subr.mxu0 %v842
        %2571 = vmatpush1.msra.mxu0 %v841
        %2572 = vmatprep.subr.mxu0 %v846
        %2573 = vmatpush1.msra.mxu0 %v845
        %2574 = vmatprep.subr.mxu0 %v850
        %2575 = vmatpush1.msra.mxu0 %v849
        %2576 = vmatprep.subr.mxu0 %v854
        %2577 = vmatpush1.msra.mxu0 %v853
        %2578 = vmatprep.subr.mxu0 %v858
        %2579 = vmatpush1.msra.mxu0 %v857
        %2580 = vmatprep.subr.mxu0 %v862
        %2581 = vmatpush1.msra.mxu0 %v861
        %2582 = vmatprep.subr.mxu0 %v866
        %2583 = vmatpush1.msra.mxu0 %v865
        %2584 = vmatprep.subr.mxu0 %v870
        %2585 = vmatpush1.msra.mxu0 %v869
        %2586 = vmatprep.subr.mxu0 %v874
        %2587 = vmatpush1.msra.mxu0 %v873
        %2588 = vmatprep.subr.mxu0 %v878
        %2589 = vmatpush1.msra.mxu0 %v877
        %2590 = vmatprep.subr.mxu0 %v882
        %2591 = vmatpush1.msra.mxu0 %v881
        %2592 = vmatprep.subr.mxu0 %v886
        %2593 = vmatpush1.msra.mxu0 %v885
        %2594 = vmatprep.subr.mxu0 %v890
        %2595 = vmatpush1.msra.mxu0 %v889
        %2596 = vmatprep.subr.mxu0 %v894
        %2597 = vmatpush1.msra.mxu0 %v893
        %2598 = vmatprep.subr.mxu0 %v898
        %2599 = vmatpush1.msra.mxu0 %v897
        %2600 = vmatprep.subr.mxu0 %v902
        %2601 = vmatpush1.msra.mxu0 %v901
        %2602 = vmatprep.subr.mxu0 %v906
        %2603 = vmatpush1.msra.mxu0 %v905
        %2604 = vmatprep.subr.mxu0 %v910
        %2605 = vmatpush1.msra.mxu0 %v909
        %2606 = vmatprep.subr.mxu0 %v914
        %2607 = vmatpush1.msra.mxu0 %v913
        %2608 = vmatprep.subr.mxu0 %v918
        %2609 = vmatpush1.msra.mxu0 %v917
        %2610 = vmatprep.subr.mxu0 %v922
        %2611 = vmatpush1.msra.mxu0 %v921
        %2612 = vmatprep.subr.mxu0 %v926
        %2613 = vmatpush1.msra.mxu0 %v925
        %2614 = vmatprep.subr.mxu0 %v930
        %2615 = vmatpush1.msra.mxu0 %v929
        %2616 = vmatprep.subr.mxu0 %v934
        %2617 = vmatpush1.msra.mxu0 %v933
        %2618 = vmatprep.subr.mxu0 %v938
        %2619 = vmatpush1.msra.mxu0 %v937
        %2620 = vmatprep.subr.mxu0 %v942
        %2621 = vmatpush1.msra.mxu0 %v941
        %2622 = vmatprep.subr.mxu0 %v946
        %2623 = vmatpush1.msra.mxu0 %v945
        %2624 = vmatprep.subr.mxu0 %v950
        %2625 = vmatpush1.msra.mxu0 %v949
        %2626 = vmatprep.subr.mxu0 %v954
        %2627 = vmatpush1.msra.mxu0 %v953
        %2628 = vmatprep.subr.mxu0 %v958
        %2629 = vmatpush1.msra.mxu0 %v957
        %2630 = vmatprep.subr.mxu0 %v962
        %2631 = vmatpush1.msra.mxu0 %v961
        %2632 = vmatprep.subr.mxu0 %v966
        %2633 = vmatpush1.msra.mxu0 %v965
        %2634 = vmatprep.mubr.f32.mxu0 %v2415
        %2635 = vmatmul.mubr.f32.gmra.mrb[0].mxu0 %v2401
        %v2636 = vpop.f32.mrb[0].mxu0
        %v2637 = vadd.f32 %v2566, %v2636
        %v2638 = vpop.f32.mrb[0].mxu0
        %v2639 = vadd.f32 %v2568, %v2638
        %2640 = vdwg.mxu0
        %2641 = vmatprep.subr.mxu0 %v970
        %2642 = vmatpush1.msra.mxu0 %v969
        %2643 = vmatprep.subr.mxu0 %v974
        %2644 = vmatpush1.msra.mxu0 %v973
        %2645 = vmatprep.subr.mxu0 %v978
        %2646 = vmatpush1.msra.mxu0 %v977
        %2647 = vmatprep.subr.mxu0 %v982
        %2648 = vmatpush1.msra.mxu0 %v981
        %2649 = vmatprep.subr.mxu0 %v986
        %2650 = vmatpush1.msra.mxu0 %v985
        %2651 = vmatprep.subr.mxu0 %v990
        %2652 = vmatpush1.msra.mxu0 %v989
        %2653 = vmatprep.subr.mxu0 %v994
        %2654 = vmatpush1.msra.mxu0 %v993
        %2655 = vmatprep.subr.mxu0 %v998
        %2656 = vmatpush1.msra.mxu0 %v997
        %2657 = vmatprep.subr.mxu0 %v1002
        %2658 = vmatpush1.msra.mxu0 %v1001
        %2659 = vmatprep.subr.mxu0 %v1006
        %2660 = vmatpush1.msra.mxu0 %v1005
        %2661 = vmatprep.subr.mxu0 %v1010
        %2662 = vmatpush1.msra.mxu0 %v1009
        %2663 = vmatprep.subr.mxu0 %v1014
        %2664 = vmatpush1.msra.mxu0 %v1013
        %2665 = vmatprep.subr.mxu0 %v1018
        %2666 = vmatpush1.msra.mxu0 %v1017
        %2667 = vmatprep.subr.mxu0 %v1022
        %2668 = vmatpush1.msra.mxu0 %v1021
        %2669 = vmatprep.subr.mxu0 %v1026
        %2670 = vmatpush1.msra.mxu0 %v1025
        %2671 = vmatprep.subr.mxu0 %v1030
        %2672 = vmatpush1.msra.mxu0 %v1029
        %2673 = vmatprep.subr.mxu0 %v1034
        %2674 = vmatpush1.msra.mxu0 %v1033
        %2675 = vmatprep.subr.mxu0 %v1038
        %2676 = vmatpush1.msra.mxu0 %v1037
        %2677 = vmatprep.subr.mxu0 %v1042
        %2678 = vmatpush1.msra.mxu0 %v1041
        %2679 = vmatprep.subr.mxu0 %v1046
        %2680 = vmatpush1.msra.mxu0 %v1045
        %2681 = vmatprep.subr.mxu0 %v1050
        %2682 = vmatpush1.msra.mxu0 %v1049
        %2683 = vmatprep.subr.mxu0 %v1054
        %2684 = vmatpush1.msra.mxu0 %v1053
        %2685 = vmatprep.subr.mxu0 %v1058
        %2686 = vmatpush1.msra.mxu0 %v1057
        %2687 = vmatprep.subr.mxu0 %v1062
        %2688 = vmatpush1.msra.mxu0 %v1061
        %2689 = vmatprep.subr.mxu0 %v1066
        %2690 = vmatpush1.msra.mxu0 %v1065
        %2691 = vmatprep.subr.mxu0 %v1070
        %2692 = vmatpush1.msra.mxu0 %v1069
        %2693 = vmatprep.subr.mxu0 %v1074
        %2694 = vmatpush1.msra.mxu0 %v1073
        %2695 = vmatprep.subr.mxu0 %v1078
        %2696 = vmatpush1.msra.mxu0 %v1077
        %2697 = vmatprep.subr.mxu0 %v1082
        %2698 = vmatpush1.msra.mxu0 %v1081
        %2699 = vmatprep.subr.mxu0 %v1086
        %2700 = vmatpush1.msra.mxu0 %v1085
        %2701 = vmatprep.subr.mxu0 %v1090
        %2702 = vmatpush1.msra.mxu0 %v1089
        %2703 = vmatprep.subr.mxu0 %v1094
        %2704 = vmatpush1.msra.mxu0 %v1093
        %2705 = vmatprep.mubr.f32.mxu0 %v2419
        %2706 = vmatmul.mubr.f32.gmra.mrb[0].mxu0 %v2417
        %v2707 = vpop.f32.mrb[0].mxu0
        %v2708 = vadd.f32 %v2637, %v2707
        %v2709 = vpop.f32.mrb[0].mxu0
        %v2710 = vadd.f32 %v2639, %v2709
        %2711 = vdwg.mxu0
        %2712 = vmatprep.subr.mxu0 %v588
        %2713 = vmatpush1.msra.mxu0 %v587
        %2714 = vmatprep.subr.mxu0 %v592
        %2715 = vmatpush1.msra.mxu0 %v591
        %2716 = vmatprep.subr.mxu0 %v596
        %2717 = vmatpush1.msra.mxu0 %v595
        %2718 = vmatprep.subr.mxu0 %v600
        %2719 = vmatpush1.msra.mxu0 %v599
        %2720 = vmatprep.subr.mxu0 %v604
        %2721 = vmatpush1.msra.mxu0 %v603
        %2722 = vmatprep.subr.mxu0 %v608
        %2723 = vmatpush1.msra.mxu0 %v607
        %2724 = vmatprep.subr.mxu0 %v612
        %2725 = vmatpush1.msra.mxu0 %v611
        %2726 = vmatprep.subr.mxu0 %v616
        %2727 = vmatpush1.msra.mxu0 %v615
        %2728 = vmatprep.subr.mxu0 %v620
        %2729 = vmatpush1.msra.mxu0 %v619
        %2730 = vmatprep.subr.mxu0 %v624
        %2731 = vmatpush1.msra.mxu0 %v623
        %2732 = vmatprep.subr.mxu0 %v628
        %2733 = vmatpush1.msra.mxu0 %v627
        %2734 = vmatprep.subr.mxu0 %v632
        %2735 = vmatpush1.msra.mxu0 %v631
        %2736 = vmatprep.subr.mxu0 %v636
        %2737 = vmatpush1.msra.mxu0 %v635
        %2738 = vmatprep.subr.mxu0 %v640
        %2739 = vmatpush1.msra.mxu0 %v639
        %2740 = vmatprep.subr.mxu0 %v644
        %2741 = vmatpush1.msra.mxu0 %v643
        %2742 = vmatprep.subr.mxu0 %v648
        %2743 = vmatpush1.msra.mxu0 %v647
        %2744 = vmatprep.subr.mxu0 %v652
        %2745 = vmatpush1.msra.mxu0 %v651
        %2746 = vmatprep.subr.mxu0 %v656
        %2747 = vmatpush1.msra.mxu0 %v655
        %2748 = vmatprep.subr.mxu0 %v660
        %2749 = vmatpush1.msra.mxu0 %v659
        %2750 = vmatprep.subr.mxu0 %v664
        %2751 = vmatpush1.msra.mxu0 %v663
        %2752 = vmatprep.subr.mxu0 %v668
        %2753 = vmatpush1.msra.mxu0 %v667
        %2754 = vmatprep.subr.mxu0 %v672
        %2755 = vmatpush1.msra.mxu0 %v671
        %2756 = vmatprep.subr.mxu0 %v676
        %2757 = vmatpush1.msra.mxu0 %v675
        %2758 = vmatprep.subr.mxu0 %v680
        %2759 = vmatpush1.msra.mxu0 %v679
        %2760 = vmatprep.subr.mxu0 %v684
        %2761 = vmatpush1.msra.mxu0 %v683
        %2762 = vmatprep.subr.mxu0 %v688
        %2763 = vmatpush1.msra.mxu0 %v687
        %2764 = vmatprep.subr.mxu0 %v692
        %2765 = vmatpush1.msra.mxu0 %v691
        %2766 = vmatprep.subr.mxu0 %v696
        %2767 = vmatpush1.msra.mxu0 %v695
        %2768 = vmatprep.subr.mxu0 %v700
        %2769 = vmatpush1.msra.mxu0 %v699
        %2770 = vmatprep.subr.mxu0 %v704
        %2771 = vmatpush1.msra.mxu0 %v703
        %2772 = vmatprep.subr.mxu0 %v708
        %2773 = vmatpush1.msra.mxu0 %v707
        %2774 = vmatprep.subr.mxu0 %v712
        %2775 = vmatpush1.msra.mxu0 %v711
        %2776 = vmatprep.mubr.f32.mxu0 %v2408
        %2777 = vmatmul.mubr.f32.gmra.mrb[0].mxu0 %v2394
        %v2778 = vpop.f32.mrb[0].mxu0
        %v2779 = vadd.f32 0.0, %v2778
        %v2780 = vpop.f32.mrb[0].mxu0
        %v2781 = vadd.f32 0.0, %v2780
        %2782 = vdwg.mxu0
        %2783 = vmatprep.subr.mxu0 %v716
        %2784 = vmatpush1.msra.mxu0 %v715
        %2785 = vmatprep.subr.mxu0 %v720
        %2786 = vmatpush1.msra.mxu0 %v719
        %2787 = vmatprep.subr.mxu0 %v724
        %2788 = vmatpush1.msra.mxu0 %v723
        %2789 = vmatprep.subr.mxu0 %v728
        %2790 = vmatpush1.msra.mxu0 %v727
        %2791 = vmatprep.subr.mxu0 %v732
        %2792 = vmatpush1.msra.mxu0 %v731
        %2793 = vmatprep.subr.mxu0 %v736
        %2794 = vmatpush1.msra.mxu0 %v735
        %2795 = vmatprep.subr.mxu0 %v740
        %2796 = vmatpush1.msra.mxu0 %v739
        %2797 = vmatprep.subr.mxu0 %v744
        %2798 = vmatpush1.msra.mxu0 %v743
        %2799 = vmatprep.subr.mxu0 %v748
        %2800 = vmatpush1.msra.mxu0 %v747
        %2801 = vmatprep.subr.mxu0 %v752
        %2802 = vmatpush1.msra.mxu0 %v751
        %2803 = vmatprep.subr.mxu0 %v756
        %2804 = vmatpush1.msra.mxu0 %v755
        %2805 = vmatprep.subr.mxu0 %v760
        %2806 = vmatpush1.msra.mxu0 %v759
        %2807 = vmatprep.subr.mxu0 %v764
        %2808 = vmatpush1.msra.mxu0 %v763
        %2809 = vmatprep.subr.mxu0 %v768
        %2810 = vmatpush1.msra.mxu0 %v767
        %2811 = vmatprep.subr.mxu0 %v772
        %2812 = vmatpush1.msra.mxu0 %v771
        %2813 = vmatprep.subr.mxu0 %v776
        %2814 = vmatpush1.msra.mxu0 %v775
        %2815 = vmatprep.subr.mxu0 %v780
        %2816 = vmatpush1.msra.mxu0 %v779
        %2817 = vmatprep.subr.mxu0 %v784
        %2818 = vmatpush1.msra.mxu0 %v783
        %2819 = vmatprep.subr.mxu0 %v788
        %2820 = vmatpush1.msra.mxu0 %v787
        %2821 = vmatprep.subr.mxu0 %v792
        %2822 = vmatpush1.msra.mxu0 %v791
        %2823 = vmatprep.subr.mxu0 %v796
        %2824 = vmatpush1.msra.mxu0 %v795
        %2825 = vmatprep.subr.mxu0 %v800
        %2826 = vmatpush1.msra.mxu0 %v799
        %2827 = vmatprep.subr.mxu0 %v804
        %2828 = vmatpush1.msra.mxu0 %v803
        %2829 = vmatprep.subr.mxu0 %v808
        %2830 = vmatpush1.msra.mxu0 %v807
        %2831 = vmatprep.subr.mxu0 %v812
        %2832 = vmatpush1.msra.mxu0 %v811
        %2833 = vmatprep.subr.mxu0 %v816
        %2834 = vmatpush1.msra.mxu0 %v815
        %2835 = vmatprep.subr.mxu0 %v820
        %2836 = vmatpush1.msra.mxu0 %v819
        %2837 = vmatprep.subr.mxu0 %v824
        %2838 = vmatpush1.msra.mxu0 %v823
        %2839 = vmatprep.subr.mxu0 %v828
        %2840 = vmatpush1.msra.mxu0 %v827
        %2841 = vmatprep.subr.mxu0 %v832
        %2842 = vmatpush1.msra.mxu0 %v831
        %2843 = vmatprep.subr.mxu0 %v836
        %2844 = vmatpush1.msra.mxu0 %v835
        %2845 = vmatprep.subr.mxu0 %v840
        %2846 = vmatpush1.msra.mxu0 %v839
        %2847 = vmatprep.mubr.f32.mxu0 %v2418
        %2848 = vmatmul.mubr.f32.gmra.mrb[0].mxu0 %v2416
        %v2849 = vpop.f32.mrb[0].mxu0
        %v2850 = vadd.f32 %v2779, %v2849
        %v2851 = vpop.f32.mrb[0].mxu0
        %v2852 = vadd.f32 %v2781, %v2851
        %2853 = vdwg.mxu0
        %2854 = vmatprep.subr.mxu0 %v844
        %2855 = vmatpush1.msra.mxu0 %v843
        %2856 = vmatprep.subr.mxu0 %v848
        %2857 = vmatpush1.msra.mxu0 %v847
        %2858 = vmatprep.subr.mxu0 %v852
        %2859 = vmatpush1.msra.mxu0 %v851
        %2860 = vmatprep.subr.mxu0 %v856
        %2861 = vmatpush1.msra.mxu0 %v855
        %2862 = vmatprep.subr.mxu0 %v860
        %2863 = vmatpush1.msra.mxu0 %v859
        %2864 = vmatprep.subr.mxu0 %v864
        %2865 = vmatpush1.msra.mxu0 %v863
        %2866 = vmatprep.subr.mxu0 %v868
        %2867 = vmatpush1.msra.mxu0 %v867
        %2868 = vmatprep.subr.mxu0 %v872
        %2869 = vmatpush1.msra.mxu0 %v871
        %2870 = vmatprep.subr.mxu0 %v876
        %2871 = vmatpush1.msra.mxu0 %v875
        %2872 = vmatprep.subr.mxu0 %v880
        %2873 = vmatpush1.msra.mxu0 %v879
        %2874 = vmatprep.subr.mxu0 %v884
        %2875 = vmatpush1.msra.mxu0 %v883
        %2876 = vmatprep.subr.mxu0 %v888
        %2877 = vmatpush1.msra.mxu0 %v887
        %2878 = vmatprep.subr.mxu0 %v892
        %2879 = vmatpush1.msra.mxu0 %v891
        %2880 = vmatprep.subr.mxu0 %v896
        %2881 = vmatpush1.msra.mxu0 %v895
        %2882 = vmatprep.subr.mxu0 %v900
        %2883 = vmatpush1.msra.mxu0 %v899
        %2884 = vmatprep.subr.mxu0 %v904
        %2885 = vmatpush1.msra.mxu0 %v903
        %2886 = vmatprep.subr.mxu0 %v908
        %2887 = vmatpush1.msra.mxu0 %v907
        %2888 = vmatprep.subr.mxu0 %v912
        %2889 = vmatpush1.msra.mxu0 %v911
        %2890 = vmatprep.subr.mxu0 %v916
        %2891 = vmatpush1.msra.mxu0 %v915
        %2892 = vmatprep.subr.mxu0 %v920
        %2893 = vmatpush1.msra.mxu0 %v919
        %2894 = vmatprep.subr.mxu0 %v924
        %2895 = vmatpush1.msra.mxu0 %v923
        %2896 = vmatprep.subr.mxu0 %v928
        %2897 = vmatpush1.msra.mxu0 %v927
        %2898 = vmatprep.subr.mxu0 %v932
        %2899 = vmatpush1.msra.mxu0 %v931
        %2900 = vmatprep.subr.mxu0 %v936
        %2901 = vmatpush1.msra.mxu0 %v935
        %2902 = vmatprep.subr.mxu0 %v940
        %2903 = vmatpush1.msra.mxu0 %v939
        %2904 = vmatprep.subr.mxu0 %v944
        %2905 = vmatpush1.msra.mxu0 %v943
        %2906 = vmatprep.subr.mxu0 %v948
        %2907 = vmatpush1.msra.mxu0 %v947
        %2908 = vmatprep.subr.mxu0 %v952
        %2909 = vmatpush1.msra.mxu0 %v951
        %2910 = vmatprep.subr.mxu0 %v956
        %2911 = vmatpush1.msra.mxu0 %v955
        %2912 = vmatprep.subr.mxu0 %v960
        %2913 = vmatpush1.msra.mxu0 %v959
        %2914 = vmatprep.subr.mxu0 %v964
        %2915 = vmatpush1.msra.mxu0 %v963
        %2916 = vmatprep.subr.mxu0 %v968
        %2917 = vmatpush1.msra.mxu0 %v967
        %2918 = vmatprep.mubr.f32.mxu0 %v2415
        %2919 = vmatmul.mubr.f32.gmra.mrb[0].mxu0 %v2401
        %v2920 = vpop.f32.mrb[0].mxu0
        %v2921 = vadd.f32 %v2850, %v2920
        %v2922 = vpop.f32.mrb[0].mxu0
        %v2923 = vadd.f32 %v2852, %v2922
        %2924 = vdwg.mxu0
        %2925 = vmatprep.subr.mxu0 %v972
        %2926 = vmatpush1.msra.mxu0 %v971
        %2927 = vmatprep.subr.mxu0 %v976
        %2928 = vmatpush1.msra.mxu0 %v975
        %2929 = vmatprep.subr.mxu0 %v980
        %2930 = vmatpush1.msra.mxu0 %v979
        %2931 = vmatprep.subr.mxu0 %v984
        %2932 = vmatpush1.msra.mxu0 %v983
        %2933 = vmatprep.subr.mxu0 %v988
        %2934 = vmatpush1.msra.mxu0 %v987
        %2935 = vmatprep.subr.mxu0 %v992
        %2936 = vmatpush1.msra.mxu0 %v991
        %2937 = vmatprep.subr.mxu0 %v996
        %2938 = vmatpush1.msra.mxu0 %v995
        %2939 = vmatprep.subr.mxu0 %v1000
        %2940 = vmatpush1.msra.mxu0 %v999
        %2941 = vmatprep.subr.mxu0 %v1004
        %2942 = vmatpush1.msra.mxu0 %v1003
        %2943 = vmatprep.subr.mxu0 %v1008
        %2944 = vmatpush1.msra.mxu0 %v1007
        %2945 = vmatprep.subr.mxu0 %v1012
        %2946 = vmatpush1.msra.mxu0 %v1011
        %2947 = vmatprep.subr.mxu0 %v1016
        %2948 = vmatpush1.msra.mxu0 %v1015
        %2949 = vmatprep.subr.mxu0 %v1020
        %2950 = vmatpush1.msra.mxu0 %v1019
        %2951 = vmatprep.subr.mxu0 %v1024
        %2952 = vmatpush1.msra.mxu0 %v1023
        %2953 = vmatprep.subr.mxu0 %v1028
        %2954 = vmatpush1.msra.mxu0 %v1027
        %2955 = vmatprep.subr.mxu0 %v1032
        %2956 = vmatpush1.msra.mxu0 %v1031
        %2957 = vmatprep.subr.mxu0 %v1036
        %2958 = vmatpush1.msra.mxu0 %v1035
        %2959 = vmatprep.subr.mxu0 %v1040
        %2960 = vmatpush1.msra.mxu0 %v1039
        %2961 = vmatprep.subr.mxu0 %v1044
        %2962 = vmatpush1.msra.mxu0 %v1043
        %2963 = vmatprep.subr.mxu0 %v1048
        %2964 = vmatpush1.msra.mxu0 %v1047
        %2965 = vmatprep.subr.mxu0 %v1052
        %2966 = vmatpush1.msra.mxu0 %v1051
        %2967 = vmatprep.subr.mxu0 %v1056
        %2968 = vmatpush1.msra.mxu0 %v1055
        %2969 = vmatprep.subr.mxu0 %v1060
        %2970 = vmatpush1.msra.mxu0 %v1059
        %2971 = vmatprep.subr.mxu0 %v1064
        %2972 = vmatpush1.msra.mxu0 %v1063
        %2973 = vmatprep.subr.mxu0 %v1068
        %2974 = vmatpush1.msra.mxu0 %v1067
        %2975 = vmatprep.subr.mxu0 %v1072
        %2976 = vmatpush1.msra.mxu0 %v1071
        %2977 = vmatprep.subr.mxu0 %v1076
        %2978 = vmatpush1.msra.mxu0 %v1075
        %2979 = vmatprep.subr.mxu0 %v1080
        %2980 = vmatpush1.msra.mxu0 %v1079
        %2981 = vmatprep.subr.mxu0 %v1084
        %2982 = vmatpush1.msra.mxu0 %v1083
        %2983 = vmatprep.subr.mxu0 %v1088
        %2984 = vmatpush1.msra.mxu0 %v1087
        %2985 = vmatprep.subr.mxu0 %v1092
        %2986 = vmatpush1.msra.mxu0 %v1091
        %2987 = vmatprep.subr.mxu0 %v1096
        %2988 = vmatpush1.msra.mxu0 %v1095
        %2989 = vmatprep.mubr.f32.mxu0 %v2419
        %2990 = vmatmul.mubr.f32.gmra.mrb[0].mxu0 %v2417
        %v2991 = vpop.f32.mrb[0].mxu0
        %v2992 = vadd.f32 %v2921, %v2991
        %v2993 = vpop.f32.mrb[0].mxu0
        %v2994 = vadd.f32 %v2923, %v2993
        %2995 = vdwg.mxu0
        %v2996 = vmax.f32 %v2360, %v2708
        %v2997 = vmax.f32 %v2361, %v2710
        %v2998 = vmax.f32 %v2362, %v2992
        %v2999 = vmax.f32 %v2363, %v2994
        %v3004 = vcombine.low %v2996, %v2997
        %v3005 = vcombine.low %v2998, %v2999
        %v3007 = vunpack.c.l.s4 1983009808
        %v3008 = vunpack.c.0.s8 %v3007
        %v3009 = vlaneseq
        %v3010 = vshrl.u32 %v3009, 7
        %v3011 = vsub.s32 %v3008, %v3010
        %v3012 = vrot.slane %v3004, %v3011
        %v3014 = vunpack.c.l.s4 1983009808
        %v3015 = vunpack.c.0.s8 %v3014
        %v3016 = vlaneseq
        %v3017 = vshrl.u32 %v3016, 7
        %v3018 = vsub.s32 %v3015, %v3017
        %v3019 = vrot.slane %v3005, %v3018
        %v3020 = vcombine.low %v3012, %v3019
        %3022 = vst [vmem:[%s584] sm:$0xff] %v3020
        %vm3023 = vcmask 1041408
        %v3024 = vsel %vm3023, %v2996, 0.0
        %v3025 = vsel %vm3023, %v2997, 0.0
        %v3026 = vadd.f32 %v3024, %v3025
        %v3027 = vsel %vm3023, %v2998, 0.0
        %v3028 = vadd.f32 %v3026, %v3027
        %v3029 = vsel %vm3023, %v2999, 0.0
        %v3030 = vadd.f32 %v3028, %v3029
        %3031 = vadd.xlane.f32.xlu0 %v3030
        %v3032 = vpop.xlane.xlu0 %3031
        %v3033 = vrcp.pop 512.0
        %v3034 = vmul.f32 %v3032, %v3033
        %v3035 = vsub.f32 %v2996, %v3034
        %v3036 = vsub.f32 %v2997, %v3034
        %v3037 = vsub.f32 %v2998, %v3034
        %v3038 = vsub.f32 %v2999, %v3034
        %v3039 = vmul.f32 %v3035, %v3035
        %v3040 = vmul.f32 %v3036, %v3036
        %v3041 = vmul.f32 %v3037, %v3037
        %v3042 = vmul.f32 %v3038, %v3038
        %v3043 = vsel %vm3023, %v3039, 0.0
        %v3044 = vsel %vm3023, %v3040, 0.0
        %v3045 = vadd.f32 %v3043, %v3044
        %v3046 = vsel %vm3023, %v3041, 0.0
        %v3047 = vadd.f32 %v3045, %v3046
        %v3048 = vsel %vm3023, %v3042, 0.0
        %v3049 = vadd.f32 %v3047, %v3048
        %3050 = vadd.xlane.f32.xlu0 %v3049
        %v3051 = vpop.xlane.xlu0 %3050
        %v3052 = vmul.f32 %v3051, %v3033
        %v3053 = vadd.f32 %v3052, 1e-05
        %v3054 = vrsqrt.pop %v3053
        %v3055 = vmul.f32 %v3035, %v3054
        %v3056 = vmul.f32 %v3036, %v3054
        %v3057 = vmul.f32 %v3037, %v3054
        %v3058 = vmul.f32 %v3038, %v3054
        %v3059 = vld [vmem:[%s2] sm:$0xf]
        %v3061 = vlaneseq
        %v3062 = vshrl.u32 %v3061, 7
        %v3063 = vsub.s32 0, %v3062
        %v3064 = vrot.slane %v3059, %v3063
        %v3065 = vlaneseq
        %v3066 = vshrl.u32 %v3065, 7
        %v3067 = vsub.s32 1, %v3066
        %v3068 = vrot.slane %v3059, %v3067
        %v3069 = vlaneseq
        %v3070 = vshrl.u32 %v3069, 7
        %v3071 = vsub.s32 2, %v3070
        %v3072 = vrot.slane %v3059, %v3071
        %v3073 = vlaneseq
        %v3074 = vshrl.u32 %v3073, 7
        %v3075 = vsub.s32 3, %v3074
        %v3076 = vrot.slane %v3059, %v3075
        %v3081 = vmul.f32 %v3055, %v3064
        %v3082 = vmul.f32 %v3056, %v3068
        %v3083 = vmul.f32 %v3057, %v3072
        %v3084 = vmul.f32 %v3058, %v3076
        %v3085 = vld [vmem:[%s3] sm:$0xf]
        %v3087 = vlaneseq
        %v3088 = vshrl.u32 %v3087, 7
        %v3089 = vsub.s32 0, %v3088
        %v3090 = vrot.slane %v3085, %v3089
        %v3091 = vlaneseq
        %v3092 = vshrl.u32 %v3091, 7
        %v3093 = vsub.s32 1, %v3092
        %v3094 = vrot.slane %v3085, %v3093
        %v3095 = vlaneseq
        %v3096 = vshrl.u32 %v3095, 7
        %v3097 = vsub.s32 2, %v3096
        %v3098 = vrot.slane %v3085, %v3097
        %v3099 = vlaneseq
        %v3100 = vshrl.u32 %v3099, 7
        %v3101 = vsub.s32 3, %v3100
        %v3102 = vrot.slane %v3085, %v3101
        %v3107 = vadd.f32 %v3081, %v3090
        %v3108 = vadd.f32 %v3082, %v3094
        %v3109 = vadd.f32 %v3083, %v3098
        %v3110 = vadd.f32 %v3084, %v3102
        %v3111 = vpack.c.bf16 %v3107, %v3107
        %v3112 = vpack.c.bf16 %v3108, %v3108
        %v3113 = vpack.c.bf16 %v3109, %v3109
        %v3114 = vpack.c.bf16 %v3110, %v3110
        %v3115 = vld [vmem:[%s535] sm:$0xff]
        %v3116 = vld [vmem:[%s535 + $0x8] sm:$0xff]
        %v3117 = vld [vmem:[%s535 + $0x10] sm:$0xff]
        %v3118 = vld [vmem:[%s535 + $0x18] sm:$0xff]
        %v3119 = vld [vmem:[%s535 + $0x20] sm:$0xff]
        %v3120 = vld [vmem:[%s535 + $0x28] sm:$0xff]
        %v3121 = vld [vmem:[%s535 + $0x30] sm:$0xff]
        %v3122 = vld [vmem:[%s535 + $0x38] sm:$0xff]
        %v3123 = vld [vmem:[%s535 + $0x40] sm:$0xff]
        %v3124 = vld [vmem:[%s535 + $0x48] sm:$0xff]
        %v3125 = vld [vmem:[%s535 + $0x50] sm:$0xff]
        %v3126 = vld [vmem:[%s535 + $0x58] sm:$0xff]
        %v3127 = vld [vmem:[%s535 + $0x60] sm:$0xff]
        %v3128 = vld [vmem:[%s535 + $0x68] sm:$0xff]
        %v3129 = vld [vmem:[%s535 + $0x70] sm:$0xff]
        %v3130 = vld [vmem:[%s535 + $0x78] sm:$0xff]
        %v3131 = vld [vmem:[%s535 + $0x80] sm:$0xff]
        %v3132 = vld [vmem:[%s535 + $0x88] sm:$0xff]
        %v3133 = vld [vmem:[%s535 + $0x90] sm:$0xff]
        %v3134 = vld [vmem:[%s535 + $0x98] sm:$0xff]
        %v3135 = vld [vmem:[%s535 + $0xa0] sm:$0xff]
        %v3136 = vld [vmem:[%s535 + $0xa8] sm:$0xff]
        %v3137 = vld [vmem:[%s535 + $0xb0] sm:$0xff]
        %v3138 = vld [vmem:[%s535 + $0xb8] sm:$0xff]
        %v3139 = vld [vmem:[%s535 + $0xc0] sm:$0xff]
        %v3140 = vld [vmem:[%s535 + $0xc8] sm:$0xff]
        %v3141 = vld [vmem:[%s535 + $0xd0] sm:$0xff]
        %v3142 = vld [vmem:[%s535 + $0xd8] sm:$0xff]
        %v3143 = vld [vmem:[%s535 + $0xe0] sm:$0xff]
        %v3144 = vld [vmem:[%s535 + $0xe8] sm:$0xff]
        %v3145 = vld [vmem:[%s535 + $0xf0] sm:$0xff]
        %v3146 = vld [vmem:[%s535 + $0xf8] sm:$0xff]
        %v3147 = vld [vmem:[%s535 + $0x100] sm:$0xff]
        %v3148 = vld [vmem:[%s535 + $0x108] sm:$0xff]
        %v3149 = vld [vmem:[%s535 + $0x110] sm:$0xff]
        %v3150 = vld [vmem:[%s535 + $0x118] sm:$0xff]
        %v3151 = vld [vmem:[%s535 + $0x120] sm:$0xff]
        %v3152 = vld [vmem:[%s535 + $0x128] sm:$0xff]
        %v3153 = vld [vmem:[%s535 + $0x130] sm:$0xff]
        %v3154 = vld [vmem:[%s535 + $0x138] sm:$0xff]
        %v3155 = vld [vmem:[%s535 + $0x140] sm:$0xff]
        %v3156 = vld [vmem:[%s535 + $0x148] sm:$0xff]
        %v3157 = vld [vmem:[%s535 + $0x150] sm:$0xff]
        %v3158 = vld [vmem:[%s535 + $0x158] sm:$0xff]
        %v3159 = vld [vmem:[%s535 + $0x160] sm:$0xff]
        %v3160 = vld [vmem:[%s535 + $0x168] sm:$0xff]
        %v3161 = vld [vmem:[%s535 + $0x170] sm:$0xff]
        %v3162 = vld [vmem:[%s535 + $0x178] sm:$0xff]
        %v3163 = vld [vmem:[%s535 + $0x180] sm:$0xff]
        %v3164 = vld [vmem:[%s535 + $0x188] sm:$0xff]
        %v3165 = vld [vmem:[%s535 + $0x190] sm:$0xff]
        %v3166 = vld [vmem:[%s535 + $0x198] sm:$0xff]
        %v3167 = vld [vmem:[%s535 + $0x1a0] sm:$0xff]
        %v3168 = vld [vmem:[%s535 + $0x1a8] sm:$0xff]
        %v3169 = vld [vmem:[%s535 + $0x1b0] sm:$0xff]
        %v3170 = vld [vmem:[%s535 + $0x1b8] sm:$0xff]
        %v3171 = vld [vmem:[%s535 + $0x1c0] sm:$0xff]
        %v3172 = vld [vmem:[%s535 + $0x1c8] sm:$0xff]
        %v3173 = vld [vmem:[%s535 + $0x1d0] sm:$0xff]
        %v3174 = vld [vmem:[%s535 + $0x1d8] sm:$0xff]
        %v3175 = vld [vmem:[%s535 + $0x1e0] sm:$0xff]
        %v3176 = vld [vmem:[%s535 + $0x1e8] sm:$0xff]
        %v3177 = vld [vmem:[%s535 + $0x1f0] sm:$0xff]
        %v3178 = vld [vmem:[%s535 + $0x1f8] sm:$0xff]
        %v3179 = vld [vmem:[%s535 + $0x200] sm:$0xff]
        %v3180 = vld [vmem:[%s535 + $0x208] sm:$0xff]
        %v3181 = vld [vmem:[%s535 + $0x210] sm:$0xff]
        %v3182 = vld [vmem:[%s535 + $0x218] sm:$0xff]
        %v3183 = vld [vmem:[%s535 + $0x220] sm:$0xff]
        %v3184 = vld [vmem:[%s535 + $0x228] sm:$0xff]
        %v3185 = vld [vmem:[%s535 + $0x230] sm:$0xff]
        %v3186 = vld [vmem:[%s535 + $0x238] sm:$0xff]
        %v3187 = vld [vmem:[%s535 + $0x240] sm:$0xff]
        %v3188 = vld [vmem:[%s535 + $0x248] sm:$0xff]
        %v3189 = vld [vmem:[%s535 + $0x250] sm:$0xff]
        %v3190 = vld [vmem:[%s535 + $0x258] sm:$0xff]
        %v3191 = vld [vmem:[%s535 + $0x260] sm:$0xff]
        %v3192 = vld [vmem:[%s535 + $0x268] sm:$0xff]
        %v3193 = vld [vmem:[%s535 + $0x270] sm:$0xff]
        %v3194 = vld [vmem:[%s535 + $0x278] sm:$0xff]
        %v3195 = vld [vmem:[%s535 + $0x280] sm:$0xff]
        %v3196 = vld [vmem:[%s535 + $0x288] sm:$0xff]
        %v3197 = vld [vmem:[%s535 + $0x290] sm:$0xff]
        %v3198 = vld [vmem:[%s535 + $0x298] sm:$0xff]
        %v3199 = vld [vmem:[%s535 + $0x2a0] sm:$0xff]
        %v3200 = vld [vmem:[%s535 + $0x2a8] sm:$0xff]
        %v3201 = vld [vmem:[%s535 + $0x2b0] sm:$0xff]
        %v3202 = vld [vmem:[%s535 + $0x2b8] sm:$0xff]
        %v3203 = vld [vmem:[%s535 + $0x2c0] sm:$0xff]
        %v3204 = vld [vmem:[%s535 + $0x2c8] sm:$0xff]
        %v3205 = vld [vmem:[%s535 + $0x2d0] sm:$0xff]
        %v3206 = vld [vmem:[%s535 + $0x2d8] sm:$0xff]
        %v3207 = vld [vmem:[%s535 + $0x2e0] sm:$0xff]
        %v3208 = vld [vmem:[%s535 + $0x2e8] sm:$0xff]
        %v3209 = vld [vmem:[%s535 + $0x2f0] sm:$0xff]
        %v3210 = vld [vmem:[%s535 + $0x2f8] sm:$0xff]
        %v3211 = vld [vmem:[%s535 + $0x300] sm:$0xff]
        %v3212 = vld [vmem:[%s535 + $0x308] sm:$0xff]
        %v3213 = vld [vmem:[%s535 + $0x310] sm:$0xff]
        %v3214 = vld [vmem:[%s535 + $0x318] sm:$0xff]
        %v3215 = vld [vmem:[%s535 + $0x320] sm:$0xff]
        %v3216 = vld [vmem:[%s535 + $0x328] sm:$0xff]
        %v3217 = vld [vmem:[%s535 + $0x330] sm:$0xff]
        %v3218 = vld [vmem:[%s535 + $0x338] sm:$0xff]
        %v3219 = vld [vmem:[%s535 + $0x340] sm:$0xff]
        %v3220 = vld [vmem:[%s535 + $0x348] sm:$0xff]
        %v3221 = vld [vmem:[%s535 + $0x350] sm:$0xff]
        %v3222 = vld [vmem:[%s535 + $0x358] sm:$0xff]
        %v3223 = vld [vmem:[%s535 + $0x360] sm:$0xff]
        %v3224 = vld [vmem:[%s535 + $0x368] sm:$0xff]
        %v3225 = vld [vmem:[%s535 + $0x370] sm:$0xff]
        %v3226 = vld [vmem:[%s535 + $0x378] sm:$0xff]
        %v3227 = vld [vmem:[%s535 + $0x380] sm:$0xff]
        %v3228 = vld [vmem:[%s535 + $0x388] sm:$0xff]
        %v3229 = vld [vmem:[%s535 + $0x390] sm:$0xff]
        %v3230 = vld [vmem:[%s535 + $0x398] sm:$0xff]
        %v3231 = vld [vmem:[%s535 + $0x3a0] sm:$0xff]
        %v3232 = vld [vmem:[%s535 + $0x3a8] sm:$0xff]
        %v3233 = vld [vmem:[%s535 + $0x3b0] sm:$0xff]
        %v3234 = vld [vmem:[%s535 + $0x3b8] sm:$0xff]
        %v3235 = vld [vmem:[%s535 + $0x3c0] sm:$0xff]
        %v3236 = vld [vmem:[%s535 + $0x3c8] sm:$0xff]
        %v3237 = vld [vmem:[%s535 + $0x3d0] sm:$0xff]
        %v3238 = vld [vmem:[%s535 + $0x3d8] sm:$0xff]
        %v3239 = vld [vmem:[%s535 + $0x3e0] sm:$0xff]
        %v3240 = vld [vmem:[%s535 + $0x3e8] sm:$0xff]
        %v3241 = vld [vmem:[%s535 + $0x3f0] sm:$0xff]
        %v3242 = vld [vmem:[%s535 + $0x3f8] sm:$0xff]
        %v3243 = vld [vmem:[%s577] sm:$0xf]
        %v3245 = vlaneseq
        %v3246 = vshrl.u32 %v3245, 7
        %v3247 = vsub.s32 0, %v3246
        %v3248 = vrot.slane %v3243, %v3247
        %v3249 = vlaneseq
        %v3250 = vshrl.u32 %v3249, 7
        %v3251 = vsub.s32 1, %v3250
        %v3252 = vrot.slane %v3243, %v3251
        %v3253 = vlaneseq
        %v3254 = vshrl.u32 %v3253, 7
        %v3255 = vsub.s32 2, %v3254
        %v3256 = vrot.slane %v3243, %v3255
        %v3257 = vlaneseq
        %v3258 = vshrl.u32 %v3257, 7
        %v3259 = vsub.s32 3, %v3258
        %v3260 = vrot.slane %v3243, %v3259
        %v3393 = vunpack.c.l.b16 %v3115
        %v3394 = vunpack.c.h.b16 %v3115
        %v3395 = vunpack.c.l.b16 %v3116
        %v3396 = vunpack.c.h.b16 %v3116
        %v3397 = vunpack.c.l.b16 %v3117
        %v3398 = vunpack.c.h.b16 %v3117
        %v3399 = vunpack.c.l.b16 %v3118
        %v3400 = vunpack.c.h.b16 %v3118
        %v3401 = vunpack.c.l.b16 %v3119
        %v3402 = vunpack.c.h.b16 %v3119
        %v3403 = vunpack.c.l.b16 %v3120
        %v3404 = vunpack.c.h.b16 %v3120
        %v3405 = vunpack.c.l.b16 %v3121
        %v3406 = vunpack.c.h.b16 %v3121
        %v3407 = vunpack.c.l.b16 %v3122
        %v3408 = vunpack.c.h.b16 %v3122
        %v3409 = vunpack.c.l.b16 %v3123
        %v3410 = vunpack.c.h.b16 %v3123
        %v3411 = vunpack.c.l.b16 %v3124
        %v3412 = vunpack.c.h.b16 %v3124
        %v3413 = vunpack.c.l.b16 %v3125
        %v3414 = vunpack.c.h.b16 %v3125
        %v3415 = vunpack.c.l.b16 %v3126
        %v3416 = vunpack.c.h.b16 %v3126
        %v3417 = vunpack.c.l.b16 %v3127
        %v3418 = vunpack.c.h.b16 %v3127
        %v3419 = vunpack.c.l.b16 %v3128
        %v3420 = vunpack.c.h.b16 %v3128
        %v3421 = vunpack.c.l.b16 %v3129
        %v3422 = vunpack.c.h.b16 %v3129
        %v3423 = vunpack.c.l.b16 %v3130
        %v3424 = vunpack.c.h.b16 %v3130
        %v3425 = vunpack.c.l.b16 %v3131
        %v3426 = vunpack.c.h.b16 %v3131
        %v3427 = vunpack.c.l.b16 %v3132
        %v3428 = vunpack.c.h.b16 %v3132
        %v3429 = vunpack.c.l.b16 %v3133
        %v3430 = vunpack.c.h.b16 %v3133
        %v3431 = vunpack.c.l.b16 %v3134
        %v3432 = vunpack.c.h.b16 %v3134
        %v3433 = vunpack.c.l.b16 %v3135
        %v3434 = vunpack.c.h.b16 %v3135
        %v3435 = vunpack.c.l.b16 %v3136
        %v3436 = vunpack.c.h.b16 %v3136
        %v3437 = vunpack.c.l.b16 %v3137
        %v3438 = vunpack.c.h.b16 %v3137
        %v3439 = vunpack.c.l.b16 %v3138
        %v3440 = vunpack.c.h.b16 %v3138
        %v3441 = vunpack.c.l.b16 %v3139
        %v3442 = vunpack.c.h.b16 %v3139
        %v3443 = vunpack.c.l.b16 %v3140
        %v3444 = vunpack.c.h.b16 %v3140
        %v3445 = vunpack.c.l.b16 %v3141
        %v3446 = vunpack.c.h.b16 %v3141
        %v3447 = vunpack.c.l.b16 %v3142
        %v3448 = vunpack.c.h.b16 %v3142
        %v3449 = vunpack.c.l.b16 %v3143
        %v3450 = vunpack.c.h.b16 %v3143
        %v3451 = vunpack.c.l.b16 %v3144
        %v3452 = vunpack.c.h.b16 %v3144
        %v3453 = vunpack.c.l.b16 %v3145
        %v3454 = vunpack.c.h.b16 %v3145
        %v3455 = vunpack.c.l.b16 %v3146
        %v3456 = vunpack.c.h.b16 %v3146
        %v3457 = vunpack.c.l.b16 %v3147
        %v3458 = vunpack.c.h.b16 %v3147
        %v3459 = vunpack.c.l.b16 %v3148
        %v3460 = vunpack.c.h.b16 %v3148
        %v3461 = vunpack.c.l.b16 %v3149
        %v3462 = vunpack.c.h.b16 %v3149
        %v3463 = vunpack.c.l.b16 %v3150
        %v3464 = vunpack.c.h.b16 %v3150
        %v3465 = vunpack.c.l.b16 %v3151
        %v3466 = vunpack.c.h.b16 %v3151
        %v3467 = vunpack.c.l.b16 %v3152
        %v3468 = vunpack.c.h.b16 %v3152
        %v3469 = vunpack.c.l.b16 %v3153
        %v3470 = vunpack.c.h.b16 %v3153
        %v3471 = vunpack.c.l.b16 %v3154
        %v3472 = vunpack.c.h.b16 %v3154
        %v3473 = vunpack.c.l.b16 %v3155
        %v3474 = vunpack.c.h.b16 %v3155
        %v3475 = vunpack.c.l.b16 %v3156
        %v3476 = vunpack.c.h.b16 %v3156
        %v3477 = vunpack.c.l.b16 %v3157
        %v3478 = vunpack.c.h.b16 %v3157
        %v3479 = vunpack.c.l.b16 %v3158
        %v3480 = vunpack.c.h.b16 %v3158
        %v3481 = vunpack.c.l.b16 %v3159
        %v3482 = vunpack.c.h.b16 %v3159
        %v3483 = vunpack.c.l.b16 %v3160
        %v3484 = vunpack.c.h.b16 %v3160
        %v3485 = vunpack.c.l.b16 %v3161
        %v3486 = vunpack.c.h.b16 %v3161
        %v3487 = vunpack.c.l.b16 %v3162
        %v3488 = vunpack.c.h.b16 %v3162
        %v3489 = vunpack.c.l.b16 %v3163
        %v3490 = vunpack.c.h.b16 %v3163
        %v3491 = vunpack.c.l.b16 %v3164
        %v3492 = vunpack.c.h.b16 %v3164
        %v3493 = vunpack.c.l.b16 %v3165
        %v3494 = vunpack.c.h.b16 %v3165
        %v3495 = vunpack.c.l.b16 %v3166
        %v3496 = vunpack.c.h.b16 %v3166
        %v3497 = vunpack.c.l.b16 %v3167
        %v3498 = vunpack.c.h.b16 %v3167
        %v3499 = vunpack.c.l.b16 %v3168
        %v3500 = vunpack.c.h.b16 %v3168
        %v3501 = vunpack.c.l.b16 %v3169
        %v3502 = vunpack.c.h.b16 %v3169
        %v3503 = vunpack.c.l.b16 %v3170
        %v3504 = vunpack.c.h.b16 %v3170
        %v3505 = vunpack.c.l.b16 %v3171
        %v3506 = vunpack.c.h.b16 %v3171
        %v3507 = vunpack.c.l.b16 %v3172
        %v3508 = vunpack.c.h.b16 %v3172
        %v3509 = vunpack.c.l.b16 %v3173
        %v3510 = vunpack.c.h.b16 %v3173
        %v3511 = vunpack.c.l.b16 %v3174
        %v3512 = vunpack.c.h.b16 %v3174
        %v3513 = vunpack.c.l.b16 %v3175
        %v3514 = vunpack.c.h.b16 %v3175
        %v3515 = vunpack.c.l.b16 %v3176
        %v3516 = vunpack.c.h.b16 %v3176
        %v3517 = vunpack.c.l.b16 %v3177
        %v3518 = vunpack.c.h.b16 %v3177
        %v3519 = vunpack.c.l.b16 %v3178
        %v3520 = vunpack.c.h.b16 %v3178
        %v3521 = vunpack.c.l.b16 %v3179
        %v3522 = vunpack.c.h.b16 %v3179
        %v3523 = vunpack.c.l.b16 %v3180
        %v3524 = vunpack.c.h.b16 %v3180
        %v3525 = vunpack.c.l.b16 %v3181
        %v3526 = vunpack.c.h.b16 %v3181
        %v3527 = vunpack.c.l.b16 %v3182
        %v3528 = vunpack.c.h.b16 %v3182
        %v3529 = vunpack.c.l.b16 %v3183
        %v3530 = vunpack.c.h.b16 %v3183
        %v3531 = vunpack.c.l.b16 %v3184
        %v3532 = vunpack.c.h.b16 %v3184
        %v3533 = vunpack.c.l.b16 %v3185
        %v3534 = vunpack.c.h.b16 %v3185
        %v3535 = vunpack.c.l.b16 %v3186
        %v3536 = vunpack.c.h.b16 %v3186
        %v3537 = vunpack.c.l.b16 %v3187
        %v3538 = vunpack.c.h.b16 %v3187
        %v3539 = vunpack.c.l.b16 %v3188
        %v3540 = vunpack.c.h.b16 %v3188
        %v3541 = vunpack.c.l.b16 %v3189
        %v3542 = vunpack.c.h.b16 %v3189
        %v3543 = vunpack.c.l.b16 %v3190
        %v3544 = vunpack.c.h.b16 %v3190
        %v3545 = vunpack.c.l.b16 %v3191
        %v3546 = vunpack.c.h.b16 %v3191
        %v3547 = vunpack.c.l.b16 %v3192
        %v3548 = vunpack.c.h.b16 %v3192
        %v3549 = vunpack.c.l.b16 %v3193
        %v3550 = vunpack.c.h.b16 %v3193
        %v3551 = vunpack.c.l.b16 %v3194
        %v3552 = vunpack.c.h.b16 %v3194
        %v3553 = vunpack.c.l.b16 %v3195
        %v3554 = vunpack.c.h.b16 %v3195
        %v3555 = vunpack.c.l.b16 %v3196
        %v3556 = vunpack.c.h.b16 %v3196
        %v3557 = vunpack.c.l.b16 %v3197
        %v3558 = vunpack.c.h.b16 %v3197
        %v3559 = vunpack.c.l.b16 %v3198
        %v3560 = vunpack.c.h.b16 %v3198
        %v3561 = vunpack.c.l.b16 %v3199
        %v3562 = vunpack.c.h.b16 %v3199
        %v3563 = vunpack.c.l.b16 %v3200
        %v3564 = vunpack.c.h.b16 %v3200
        %v3565 = vunpack.c.l.b16 %v3201
        %v3566 = vunpack.c.h.b16 %v3201
        %v3567 = vunpack.c.l.b16 %v3202
        %v3568 = vunpack.c.h.b16 %v3202
        %v3569 = vunpack.c.l.b16 %v3203
        %v3570 = vunpack.c.h.b16 %v3203
        %v3571 = vunpack.c.l.b16 %v3204
        %v3572 = vunpack.c.h.b16 %v3204
        %v3573 = vunpack.c.l.b16 %v3205
        %v3574 = vunpack.c.h.b16 %v3205
        %v3575 = vunpack.c.l.b16 %v3206
        %v3576 = vunpack.c.h.b16 %v3206
        %v3577 = vunpack.c.l.b16 %v3207
        %v3578 = vunpack.c.h.b16 %v3207
        %v3579 = vunpack.c.l.b16 %v3208
        %v3580 = vunpack.c.h.b16 %v3208
        %v3581 = vunpack.c.l.b16 %v3209
        %v3582 = vunpack.c.h.b16 %v3209
        %v3583 = vunpack.c.l.b16 %v3210
        %v3584 = vunpack.c.h.b16 %v3210
        %v3585 = vunpack.c.l.b16 %v3211
        %v3586 = vunpack.c.h.b16 %v3211
        %v3587 = vunpack.c.l.b16 %v3212
        %v3588 = vunpack.c.h.b16 %v3212
        %v3589 = vunpack.c.l.b16 %v3213
        %v3590 = vunpack.c.h.b16 %v3213
        %v3591 = vunpack.c.l.b16 %v3214
        %v3592 = vunpack.c.h.b16 %v3214
        %v3593 = vunpack.c.l.b16 %v3215
        %v3594 = vunpack.c.h.b16 %v3215
        %v3595 = vunpack.c.l.b16 %v3216
        %v3596 = vunpack.c.h.b16 %v3216
        %v3597 = vunpack.c.l.b16 %v3217
        %v3598 = vunpack.c.h.b16 %v3217
        %v3599 = vunpack.c.l.b16 %v3218
        %v3600 = vunpack.c.h.b16 %v3218
        %v3601 = vunpack.c.l.b16 %v3219
        %v3602 = vunpack.c.h.b16 %v3219
        %v3603 = vunpack.c.l.b16 %v3220
        %v3604 = vunpack.c.h.b16 %v3220
        %v3605 = vunpack.c.l.b16 %v3221
        %v3606 = vunpack.c.h.b16 %v3221
        %v3607 = vunpack.c.l.b16 %v3222
        %v3608 = vunpack.c.h.b16 %v3222
        %v3609 = vunpack.c.l.b16 %v3223
        %v3610 = vunpack.c.h.b16 %v3223
        %v3611 = vunpack.c.l.b16 %v3224
        %v3612 = vunpack.c.h.b16 %v3224
        %v3613 = vunpack.c.l.b16 %v3225
        %v3614 = vunpack.c.h.b16 %v3225
        %v3615 = vunpack.c.l.b16 %v3226
        %v3616 = vunpack.c.h.b16 %v3226
        %v3617 = vunpack.c.l.b16 %v3227
        %v3618 = vunpack.c.h.b16 %v3227
        %v3619 = vunpack.c.l.b16 %v3228
        %v3620 = vunpack.c.h.b16 %v3228
        %v3621 = vunpack.c.l.b16 %v3229
        %v3622 = vunpack.c.h.b16 %v3229
        %v3623 = vunpack.c.l.b16 %v3230
        %v3624 = vunpack.c.h.b16 %v3230
        %v3625 = vunpack.c.l.b16 %v3231
        %v3626 = vunpack.c.h.b16 %v3231
        %v3627 = vunpack.c.l.b16 %v3232
        %v3628 = vunpack.c.h.b16 %v3232
        %v3629 = vunpack.c.l.b16 %v3233
        %v3630 = vunpack.c.h.b16 %v3233
        %v3631 = vunpack.c.l.b16 %v3234
        %v3632 = vunpack.c.h.b16 %v3234
        %v3633 = vunpack.c.l.b16 %v3235
        %v3634 = vunpack.c.h.b16 %v3235
        %v3635 = vunpack.c.l.b16 %v3236
        %v3636 = vunpack.c.h.b16 %v3236
        %v3637 = vunpack.c.l.b16 %v3237
        %v3638 = vunpack.c.h.b16 %v3237
        %v3639 = vunpack.c.l.b16 %v3238
        %v3640 = vunpack.c.h.b16 %v3238
        %v3641 = vunpack.c.l.b16 %v3239
        %v3642 = vunpack.c.h.b16 %v3239
        %v3643 = vunpack.c.l.b16 %v3240
        %v3644 = vunpack.c.h.b16 %v3240
        %v3645 = vunpack.c.l.b16 %v3241
        %v3646 = vunpack.c.h.b16 %v3241
        %v3647 = vunpack.c.l.b16 %v3242
        %v3648 = vunpack.c.h.b16 %v3242
        %v3649 = vpack.c.b16 %v3397, %v3393
        %v3650 = vpack.c.b16 %v3398, %v3394
        %v3651 = vpack.c.b16 %v3399, %v3395
        %v3652 = vpack.c.b16 %v3400, %v3396
        %v3653 = vpack.c.b16 %v3405, %v3401
        %v3654 = vpack.c.b16 %v3406, %v3402
        %v3655 = vpack.c.b16 %v3407, %v3403
        %v3656 = vpack.c.b16 %v3408, %v3404
        %v3657 = vpack.c.b16 %v3413, %v3409
        %v3658 = vpack.c.b16 %v3414, %v3410
        %v3659 = vpack.c.b16 %v3415, %v3411
        %v3660 = vpack.c.b16 %v3416, %v3412
        %v3661 = vpack.c.b16 %v3421, %v3417
        %v3662 = vpack.c.b16 %v3422, %v3418
        %v3663 = vpack.c.b16 %v3423, %v3419
        %v3664 = vpack.c.b16 %v3424, %v3420
        %v3665 = vpack.c.b16 %v3429, %v3425
        %v3666 = vpack.c.b16 %v3430, %v3426
        %v3667 = vpack.c.b16 %v3431, %v3427
        %v3668 = vpack.c.b16 %v3432, %v3428
        %v3669 = vpack.c.b16 %v3437, %v3433
        %v3670 = vpack.c.b16 %v3438, %v3434
        %v3671 = vpack.c.b16 %v3439, %v3435
        %v3672 = vpack.c.b16 %v3440, %v3436
        %v3673 = vpack.c.b16 %v3445, %v3441
        %v3674 = vpack.c.b16 %v3446, %v3442
        %v3675 = vpack.c.b16 %v3447, %v3443
        %v3676 = vpack.c.b16 %v3448, %v3444
        %v3677 = vpack.c.b16 %v3453, %v3449
        %v3678 = vpack.c.b16 %v3454, %v3450
        %v3679 = vpack.c.b16 %v3455, %v3451
        %v3680 = vpack.c.b16 %v3456, %v3452
        %v3681 = vpack.c.b16 %v3461, %v3457
        %v3682 = vpack.c.b16 %v3462, %v3458
        %v3683 = vpack.c.b16 %v3463, %v3459
        %v3684 = vpack.c.b16 %v3464, %v3460
        %v3685 = vpack.c.b16 %v3469, %v3465
        %v3686 = vpack.c.b16 %v3470, %v3466
        %v3687 = vpack.c.b16 %v3471, %v3467
        %v3688 = vpack.c.b16 %v3472, %v3468
        %v3689 = vpack.c.b16 %v3477, %v3473
        %v3690 = vpack.c.b16 %v3478, %v3474
        %v3691 = vpack.c.b16 %v3479, %v3475
        %v3692 = vpack.c.b16 %v3480, %v3476
        %v3693 = vpack.c.b16 %v3485, %v3481
        %v3694 = vpack.c.b16 %v3486, %v3482
        %v3695 = vpack.c.b16 %v3487, %v3483
        %v3696 = vpack.c.b16 %v3488, %v3484
        %v3697 = vpack.c.b16 %v3493, %v3489
        %v3698 = vpack.c.b16 %v3494, %v3490
        %v3699 = vpack.c.b16 %v3495, %v3491
        %v3700 = vpack.c.b16 %v3496, %v3492
        %v3701 = vpack.c.b16 %v3501, %v3497
        %v3702 = vpack.c.b16 %v3502, %v3498
        %v3703 = vpack.c.b16 %v3503, %v3499
        %v3704 = vpack.c.b16 %v3504, %v3500
        %v3705 = vpack.c.b16 %v3509, %v3505
        %v3706 = vpack.c.b16 %v3510, %v3506
        %v3707 = vpack.c.b16 %v3511, %v3507
        %v3708 = vpack.c.b16 %v3512, %v3508
        %v3709 = vpack.c.b16 %v3517, %v3513
        %v3710 = vpack.c.b16 %v3518, %v3514
        %v3711 = vpack.c.b16 %v3519, %v3515
        %v3712 = vpack.c.b16 %v3520, %v3516
        %v3713 = vpack.c.b16 %v3525, %v3521
        %v3714 = vpack.c.b16 %v3526, %v3522
        %v3715 = vpack.c.b16 %v3527, %v3523
        %v3716 = vpack.c.b16 %v3528, %v3524
        %v3717 = vpack.c.b16 %v3533, %v3529
        %v3718 = vpack.c.b16 %v3534, %v3530
        %v3719 = vpack.c.b16 %v3535, %v3531
        %v3720 = vpack.c.b16 %v3536, %v3532
        %v3721 = vpack.c.b16 %v3541, %v3537
        %v3722 = vpack.c.b16 %v3542, %v3538
        %v3723 = vpack.c.b16 %v3543, %v3539
        %v3724 = vpack.c.b16 %v3544, %v3540
        %v3725 = vpack.c.b16 %v3549, %v3545
        %v3726 = vpack.c.b16 %v3550, %v3546
        %v3727 = vpack.c.b16 %v3551, %v3547
        %v3728 = vpack.c.b16 %v3552, %v3548
        %v3729 = vpack.c.b16 %v3557, %v3553
        %v3730 = vpack.c.b16 %v3558, %v3554
        %v3731 = vpack.c.b16 %v3559, %v3555
        %v3732 = vpack.c.b16 %v3560, %v3556
        %v3733 = vpack.c.b16 %v3565, %v3561
        %v3734 = vpack.c.b16 %v3566, %v3562
        %v3735 = vpack.c.b16 %v3567, %v3563
        %v3736 = vpack.c.b16 %v3568, %v3564
        %v3737 = vpack.c.b16 %v3573, %v3569
        %v3738 = vpack.c.b16 %v3574, %v3570
        %v3739 = vpack.c.b16 %v3575, %v3571
        %v3740 = vpack.c.b16 %v3576, %v3572
        %v3741 = vpack.c.b16 %v3581, %v3577
        %v3742 = vpack.c.b16 %v3582, %v3578
        %v3743 = vpack.c.b16 %v3583, %v3579
        %v3744 = vpack.c.b16 %v3584, %v3580
        %v3745 = vpack.c.b16 %v3589, %v3585
        %v3746 = vpack.c.b16 %v3590, %v3586
        %v3747 = vpack.c.b16 %v3591, %v3587
        %v3748 = vpack.c.b16 %v3592, %v3588
        %v3749 = vpack.c.b16 %v3597, %v3593
        %v3750 = vpack.c.b16 %v3598, %v3594
        %v3751 = vpack.c.b16 %v3599, %v3595
        %v3752 = vpack.c.b16 %v3600, %v3596
        %v3753 = vpack.c.b16 %v3605, %v3601
        %v3754 = vpack.c.b16 %v3606, %v3602
        %v3755 = vpack.c.b16 %v3607, %v3603
        %v3756 = vpack.c.b16 %v3608, %v3604
        %v3757 = vpack.c.b16 %v3613, %v3609
        %v3758 = vpack.c.b16 %v3614, %v3610
        %v3759 = vpack.c.b16 %v3615, %v3611
        %v3760 = vpack.c.b16 %v3616, %v3612
        %v3761 = vpack.c.b16 %v3621, %v3617
        %v3762 = vpack.c.b16 %v3622, %v3618
        %v3763 = vpack.c.b16 %v3623, %v3619
        %v3764 = vpack.c.b16 %v3624, %v3620
        %v3765 = vpack.c.b16 %v3629, %v3625
        %v3766 = vpack.c.b16 %v3630, %v3626
        %v3767 = vpack.c.b16 %v3631, %v3627
        %v3768 = vpack.c.b16 %v3632, %v3628
        %v3769 = vpack.c.b16 %v3637, %v3633
        %v3770 = vpack.c.b16 %v3638, %v3634
        %v3771 = vpack.c.b16 %v3639, %v3635
        %v3772 = vpack.c.b16 %v3640, %v3636
        %v3773 = vpack.c.b16 %v3645, %v3641
        %v3774 = vpack.c.b16 %v3646, %v3642
        %v3775 = vpack.c.b16 %v3647, %v3643
        %v3776 = vpack.c.b16 %v3648, %v3644
        %3905 = vmatprep.subr.bf16.mxu0 %v3650
        %3906 = vmatpush1.bf16.msra.mxu0 %v3649
        %3907 = vmatprep.subr.bf16.mxu0 %v3654
        %3908 = vmatpush1.bf16.msra.mxu0 %v3653
        %3909 = vmatprep.subr.bf16.mxu0 %v3658
        %3910 = vmatpush1.bf16.msra.mxu0 %v3657
        %3911 = vmatprep.subr.bf16.mxu0 %v3662
        %3912 = vmatpush1.bf16.msra.mxu0 %v3661
        %3913 = vmatprep.subr.bf16.mxu0 %v3666
        %3914 = vmatpush1.bf16.msra.mxu0 %v3665
        %3915 = vmatprep.subr.bf16.mxu0 %v3670
        %3916 = vmatpush1.bf16.msra.mxu0 %v3669
        %3917 = vmatprep.subr.bf16.mxu0 %v3674
        %3918 = vmatpush1.bf16.msra.mxu0 %v3673
        %3919 = vmatprep.subr.bf16.mxu0 %v3678
        %3920 = vmatpush1.bf16.msra.mxu0 %v3677
        %3921 = vmatprep.subr.bf16.mxu0 %v3682
        %3922 = vmatpush1.bf16.msra.mxu0 %v3681
        %3923 = vmatprep.subr.bf16.mxu0 %v3686
        %3924 = vmatpush1.bf16.msra.mxu0 %v3685
        %3925 = vmatprep.subr.bf16.mxu0 %v3690
        %3926 = vmatpush1.bf16.msra.mxu0 %v3689
        %3927 = vmatprep.subr.bf16.mxu0 %v3694
        %3928 = vmatpush1.bf16.msra.mxu0 %v3693
        %3929 = vmatprep.subr.bf16.mxu0 %v3698
        %3930 = vmatpush1.bf16.msra.mxu0 %v3697
        %3931 = vmatprep.subr.bf16.mxu0 %v3702
        %3932 = vmatpush1.bf16.msra.mxu0 %v3701
        %3933 = vmatprep.subr.bf16.mxu0 %v3706
        %3934 = vmatpush1.bf16.msra.mxu0 %v3705
        %3935 = vmatprep.subr.bf16.mxu0 %v3710
        %3936 = vmatpush1.bf16.msra.mxu0 %v3709
        %3937 = vmatprep.mubr.bf16.mxu0 %v3112
        %3938 = vmatmul.mubr.bf16.gmra.mrb[0].mxu0 %v3111
        %v3939 = vpop.f32.mrb[0].mxu0
        %v3940 = vadd.f32 %v3248, %v3939
        %v3941 = vpop.f32.mrb[0].mxu0
        %v3942 = vadd.f32 %v3252, %v3941
        %v3943 = vpop.f32.mrb[0].mxu0
        %v3944 = vpop.f32.mrb[0].mxu0
        %3945 = vdwg.mxu0
        %3946 = vmatprep.subr.bf16.mxu0 %v3714
        %3947 = vmatpush1.bf16.msra.mxu0 %v3713
        %3948 = vmatprep.subr.bf16.mxu0 %v3718
        %3949 = vmatpush1.bf16.msra.mxu0 %v3717
        %3950 = vmatprep.subr.bf16.mxu0 %v3722
        %3951 = vmatpush1.bf16.msra.mxu0 %v3721
        %3952 = vmatprep.subr.bf16.mxu0 %v3726
        %3953 = vmatpush1.bf16.msra.mxu0 %v3725
        %3954 = vmatprep.subr.bf16.mxu0 %v3730
        %3955 = vmatpush1.bf16.msra.mxu0 %v3729
        %3956 = vmatprep.subr.bf16.mxu0 %v3734
        %3957 = vmatpush1.bf16.msra.mxu0 %v3733
        %3958 = vmatprep.subr.bf16.mxu0 %v3738
        %3959 = vmatpush1.bf16.msra.mxu0 %v3737
        %3960 = vmatprep.subr.bf16.mxu0 %v3742
        %3961 = vmatpush1.bf16.msra.mxu0 %v3741
        %3962 = vmatprep.subr.bf16.mxu0 %v3746
        %3963 = vmatpush1.bf16.msra.mxu0 %v3745
        %3964 = vmatprep.subr.bf16.mxu0 %v3750
        %3965 = vmatpush1.bf16.msra.mxu0 %v3749
        %3966 = vmatprep.subr.bf16.mxu0 %v3754
        %3967 = vmatpush1.bf16.msra.mxu0 %v3753
        %3968 = vmatprep.subr.bf16.mxu0 %v3758
        %3969 = vmatpush1.bf16.msra.mxu0 %v3757
        %3970 = vmatprep.subr.bf16.mxu0 %v3762
        %3971 = vmatpush1.bf16.msra.mxu0 %v3761
        %3972 = vmatprep.subr.bf16.mxu0 %v3766
        %3973 = vmatpush1.bf16.msra.mxu0 %v3765
        %3974 = vmatprep.subr.bf16.mxu0 %v3770
        %3975 = vmatpush1.bf16.msra.mxu0 %v3769
        %3976 = vmatprep.subr.bf16.mxu0 %v3774
        %3977 = vmatpush1.bf16.msra.mxu0 %v3773
        %3978 = vmatprep.mubr.bf16.mxu0 %v3114
        %3979 = vmatmul.mubr.bf16.gmra.mrb[0].mxu0 %v3113
        %v3980 = vpop.f32.mrb[0].mxu0
        %v3981 = vadd.f32 %v3940, %v3980
        %v3982 = vpop.f32.mrb[0].mxu0
        %v3983 = vadd.f32 %v3942, %v3982
        %v3984 = vpop.f32.mrb[0].mxu0
        %v3985 = vpop.f32.mrb[0].mxu0
        %3986 = vdwg.mxu0
        %3987 = vmatprep.subr.bf16.mxu0 %v3652
        %3988 = vmatpush1.bf16.msra.mxu0 %v3651
        %3989 = vmatprep.subr.bf16.mxu0 %v3656
        %3990 = vmatpush1.bf16.msra.mxu0 %v3655
        %3991 = vmatprep.subr.bf16.mxu0 %v3660
        %3992 = vmatpush1.bf16.msra.mxu0 %v3659
        %3993 = vmatprep.subr.bf16.mxu0 %v3664
        %3994 = vmatpush1.bf16.msra.mxu0 %v3663
        %3995 = vmatprep.subr.bf16.mxu0 %v3668
        %3996 = vmatpush1.bf16.msra.mxu0 %v3667
        %3997 = vmatprep.subr.bf16.mxu0 %v3672
        %3998 = vmatpush1.bf16.msra.mxu0 %v3671
        %3999 = vmatprep.subr.bf16.mxu0 %v3676
        %4000 = vmatpush1.bf16.msra.mxu0 %v3675
        %4001 = vmatprep.subr.bf16.mxu0 %v3680
        %4002 = vmatpush1.bf16.msra.mxu0 %v3679
        %4003 = vmatprep.subr.bf16.mxu0 %v3684
        %4004 = vmatpush1.bf16.msra.mxu0 %v3683
        %4005 = vmatprep.subr.bf16.mxu0 %v3688
        %4006 = vmatpush1.bf16.msra.mxu0 %v3687
        %4007 = vmatprep.subr.bf16.mxu0 %v3692
        %4008 = vmatpush1.bf16.msra.mxu0 %v3691
        %4009 = vmatprep.subr.bf16.mxu0 %v3696
        %4010 = vmatpush1.bf16.msra.mxu0 %v3695
        %4011 = vmatprep.subr.bf16.mxu0 %v3700
        %4012 = vmatpush1.bf16.msra.mxu0 %v3699
        %4013 = vmatprep.subr.bf16.mxu0 %v3704
        %4014 = vmatpush1.bf16.msra.mxu0 %v3703
        %4015 = vmatprep.subr.bf16.mxu0 %v3708
        %4016 = vmatpush1.bf16.msra.mxu0 %v3707
        %4017 = vmatprep.subr.bf16.mxu0 %v3712
        %4018 = vmatpush1.bf16.msra.mxu0 %v3711
        %4019 = vmatprep.mubr.bf16.mxu0 %v3112
        %4020 = vmatmul.mubr.bf16.gmra.mrb[0].mxu0 %v3111
        %v4021 = vpop.f32.mrb[0].mxu0
        %v4022 = vadd.f32 %v3256, %v4021
        %v4023 = vpop.f32.mrb[0].mxu0
        %v4024 = vadd.f32 %v3260, %v4023
        %v4025 = vpop.f32.mrb[0].mxu0
        %v4026 = vpop.f32.mrb[0].mxu0
        %4027 = vdwg.mxu0
        %4028 = vmatprep.subr.bf16.mxu0 %v3716
        %4029 = vmatpush1.bf16.msra.mxu0 %v3715
        %4030 = vmatprep.subr.bf16.mxu0 %v3720
        %4031 = vmatpush1.bf16.msra.mxu0 %v3719
        %4032 = vmatprep.subr.bf16.mxu0 %v3724
        %4033 = vmatpush1.bf16.msra.mxu0 %v3723
        %4034 = vmatprep.subr.bf16.mxu0 %v3728
        %4035 = vmatpush1.bf16.msra.mxu0 %v3727
        %4036 = vmatprep.subr.bf16.mxu0 %v3732
        %4037 = vmatpush1.bf16.msra.mxu0 %v3731
        %4038 = vmatprep.subr.bf16.mxu0 %v3736
        %4039 = vmatpush1.bf16.msra.mxu0 %v3735
        %4040 = vmatprep.subr.bf16.mxu0 %v3740
        %4041 = vmatpush1.bf16.msra.mxu0 %v3739
        %4042 = vmatprep.subr.bf16.mxu0 %v3744
        %4043 = vmatpush1.bf16.msra.mxu0 %v3743
        %4044 = vmatprep.subr.bf16.mxu0 %v3748
        %4045 = vmatpush1.bf16.msra.mxu0 %v3747
        %4046 = vmatprep.subr.bf16.mxu0 %v3752
        %4047 = vmatpush1.bf16.msra.mxu0 %v3751
        %4048 = vmatprep.subr.bf16.mxu0 %v3756
        %4049 = vmatpush1.bf16.msra.mxu0 %v3755
        %4050 = vmatprep.subr.bf16.mxu0 %v3760
        %4051 = vmatpush1.bf16.msra.mxu0 %v3759
        %4052 = vmatprep.subr.bf16.mxu0 %v3764
        %4053 = vmatpush1.bf16.msra.mxu0 %v3763
        %4054 = vmatprep.subr.bf16.mxu0 %v3768
        %4055 = vmatpush1.bf16.msra.mxu0 %v3767
        %4056 = vmatprep.subr.bf16.mxu0 %v3772
        %4057 = vmatpush1.bf16.msra.mxu0 %v3771
        %4058 = vmatprep.subr.bf16.mxu0 %v3776
        %4059 = vmatpush1.bf16.msra.mxu0 %v3775
        %4060 = vmatprep.mubr.bf16.mxu0 %v3114
        %4061 = vmatmul.mubr.bf16.gmra.mrb[0].mxu0 %v3113
        %v4062 = vpop.f32.mrb[0].mxu0
        %v4063 = vadd.f32 %v4022, %v4062
        %v4064 = vpop.f32.mrb[0].mxu0
        %v4065 = vadd.f32 %v4024, %v4064
        %v4066 = vpop.f32.mrb[0].mxu0
        %v4067 = vpop.f32.mrb[0].mxu0
        %4068 = vdwg.mxu0
        %v4073 = vcombine.low %v3981, %v3983
        %v4074 = vcombine.low %v4063, %v4065
        %v4076 = vunpack.c.l.s4 1983009808
        %v4077 = vunpack.c.0.s8 %v4076
        %v4078 = vlaneseq
        %v4079 = vshrl.u32 %v4078, 7
        %v4080 = vsub.s32 %v4077, %v4079
        %v4081 = vrot.slane %v4073, %v4080
        %v4083 = vunpack.c.l.s4 1983009808
        %v4084 = vunpack.c.0.s8 %v4083
        %v4085 = vlaneseq
        %v4086 = vshrl.u32 %v4085, 7
        %v4087 = vsub.s32 %v4084, %v4086
        %v4088 = vrot.slane %v4074, %v4087
        %v4089 = vcombine.low %v4081, %v4088
        %4091 = vst [vmem:[%s565] sm:$0xff] %v4089
        %s4092 = sand.u32 %s166, 1
        %s4093 = scalar_lea.sflag [#allocation4], %s4092
        %s4094 = sand.u32 %s166, 1
        %s4095 = smul.addr %s4094, 8
        %s4096 = scalar_lea.vmem [#allocation3], %s4095
        %p4097 = scmp.lt.s32.totalorder %s22, 1
        %s4098 = scalar_select %p4097, %s22, 1
        %s4099 = smul.addr %s4098, 4
        %s4100 = smul.addr %s4099, 2
        %s4101 = scalar_lea.vmem %s7, %s4100
        // Predicated region
        $region68: #{resnet_forward.1} parent=62 // pred_check
          %p4102 = pneg %p176
        $region69: #{resnet_forward.1} parent=62 // pred_check_branch
          %4104 = sbr.rel (%p4102) target = $region71
        $region70: #{resnet_forward.1} parent=62 // pred_region
          %s4105 = smul.u32 4, %s22
          %s4107 = ssub.s32 128, 128
          %4108 = vsyncadd %s4093, %s4107
          %s4109 = smul.addr %s4105, 32
          %s4110 = scalar_lea.hbm %s6, %s4109
          %s4112 = sshll.u32 %s4096, 4
          %s4113 = int_to_ptr.vmem [resolvable:$true] %s4112
          %4115 = dma.vmem_to_hbm [thread:$0]  %s4113, 128, %s4110, %s4093
        $region71: #{resnet_forward.1} parent=62 // pred_fallthru
          _
        // Predicated region
        $region72: #{resnet_forward.1} parent=62 // pred_check
          %p4116 = pneg %p202
        $region73: #{resnet_forward.1} parent=62 // pred_check_branch
          %4118 = sbr.rel (%p4116) target = $region75
        $region74: #{resnet_forward.1} parent=62 // pred_region
          _
        $region75: #{resnet_forward.1} parent=62 // pred_fallthru
          _
      $region63: #{resnet_forward.1} parent=5 // pred_fallthru
        _
      %p4119 = scmp.le.s32.totalorder 2, %s17
      // Predicated region
      $region76: #{resnet_forward.1} parent=5 // pred_check
        %p4120 = pneg %p4119
      $region77: #{resnet_forward.1} parent=5 // pred_check_branch
        %4122 = sbr.rel (%p4120) target = $region79
      $region78: #{resnet_forward.1} parent=5 // pred_region
        %s4123 = ssub.s32 %s17, 2
        // Predicated region
        $region80: #{resnet_forward.1} parent=78 // pred_check
          %p4124 = pneg %p182
        $region81: #{resnet_forward.1} parent=78 // pred_check_branch
          %4126 = sbr.rel (%p4124) target = $region83
        $region82: #{resnet_forward.1} parent=78 // pred_region
          %s4127 = sand.u32 %s167, 1
          %s4128 = scalar_lea.sflag [#allocation4], %s4127
          %s4129 = sand.u32 %s167, 1
          %s4130 = smul.addr %s4129, 8
          %s4131 = scalar_lea.vmem [#allocation3], %s4130
          %4132 = dma.done %s4128, 128
        $region83: #{resnet_forward.1} parent=78 // pred_fallthru
          _
        // Predicated region
        $region84: #{resnet_forward.1} parent=78 // pred_check
          %p4133 = pneg %p208
        $region85: #{resnet_forward.1} parent=78 // pred_check_branch
          %4135 = sbr.rel (%p4133) target = $region87
        $region86: #{resnet_forward.1} parent=78 // pred_region
          %p4136 = scmp.lt.s32.totalorder %s23, 1
          %s4137 = scalar_select %p4136, %s23, 1
          %s4138 = smul.addr %s4137, 4
          %s4139 = smul.addr %s4138, 2
          %s4140 = scalar_lea.vmem %s7, %s4139
        $region87: #{resnet_forward.1} parent=78 // pred_fallthru
          _
      $region79: #{resnet_forward.1} parent=5 // pred_fallthru
        _
    $region6: #{resnet_forward.1} parent=1 // loop_footer
      %s21 = sadd.s32 1, %s17
    $region7: #{resnet_forward.1} parent=1 // loop_footer_branch
      %16 = sbr.rel target = $region3
    $region8: #{resnet_forward.1} parent=1 // loop_exit
      _
    %4141 = vsyncpa [#allocation4], 1
    %s4142 = scalar_lea.sflag [#allocation4], 1
    %4143 = vsyncpa %s4142, 1

</llo_original>
